<compile_context>
chip_gen: v7x
topology: tpu7x:2x2x1
jax: 0.10.0
libtpu: 0.0.40
codegen_flags: <defaults>
</compile_context>

<pallas_src>
import functools

import jax
import jax.numpy as jnp
from jax.experimental import pallas as pl
from jax.experimental.pallas import tpu as pltpu

BN_EPS = 0.001


def pointnet_kernel(x_ref, w_ref, shift_ref, out_ref, *, points):
    """One tile of pillars: (x @ W_folded + shift) -> relu -> per-pillar max -> concat."""
    rows, _ = x_ref.shape            # rows = tile_n * points (fixed block size)
    ch = w_ref.shape[1]
    tn = rows // points

    # Linear with inference-mode BN folded into the weight; f32 MXU accumulate.
    y = jnp.dot(x_ref[...], w_ref[...], preferred_element_type=jnp.float32)
    y = jnp.maximum(y + shift_ref[...], 0.0)                 # folded BN shift + ReLU

    # Per-pillar max over points. The (rows, ch) -> (tn, points, ch) reshape is a
    # free sublane split only when `points` is a multiple of 8 (P=32 here).
    y3 = y.reshape(tn, points, ch)
    y_max = jnp.max(y3, axis=1, keepdims=True)               # (tn, 1, ch)

    # Assemble the full-width tile once and store it with a single unmasked
    # 64-lane-wide write (no separate y_rep temp, no half-width masked stores).
    full = jnp.concatenate([y3, jnp.broadcast_to(y_max, y3.shape)], axis=-1)
    out_ref[...] = full.reshape(rows, 2 * ch).astype(out_ref.dtype)


def _pick_tiling():
    """Generation-dependent default (tile_n, vmem_limit_bytes)."""
    try:
        vmem = pltpu.get_tpu_info().vmem_capacity_bytes
    except Exception:  # non-TPU backend / interpret mode / older runtime
        vmem = 64 * 1024 * 1024
    if vmem >= 100 * 1024 * 1024:
        # v5e / v6e (128 MiB VMEM): bigger tiles halve the per-step overhead.
        return 512, 96 * 1024 * 1024
    # v7x (64 MiB per TensorCore): keep the tile at 256 until the lane-padded
    # input footprint is reduced (see TODO at top of file).
    return 256, 44 * 1024 * 1024


def pointnet_forward(inputs, weight, gamma, beta, running_mean, running_var,
                     *, tile_n=None, bn_eps=BN_EPS, vmem_limit_bytes=None):
    """inputs: (N, P, C_in) f32; weight: (C_in, C_half); BN params: (C_half,)."""
    n, p, cin = inputs.shape
    ch = weight.shape[1]

    # ---- Fold inference-mode BatchNorm1d into the linear weight + shift. ----
    scale = gamma.reshape(-1).astype(jnp.float32) * jax.lax.rsqrt(
        running_var.reshape(-1).astype(jnp.float32) + bn_eps)
    shift = (beta.reshape(-1).astype(jnp.float32)
             - running_mean.reshape(-1).astype(jnp.float32) * scale).reshape(1, ch)
    w_folded = weight.astype(jnp.float32) * scale[None, :]

    default_tile, default_vmem = _pick_tiling()
    if tile_n is None:
        tile_n = default_tile
    if vmem_limit_bytes is None:
        vmem_limit_bytes = default_vmem

    tile = max(1, min(tile_n, n))
    rows = tile * p                       # pillar-tile of points (block rows)
    grid = (pl.cdiv(n, tile),)            # ragged tail -> Pallas partial last block

    # Free row-major reshape to a 2-D slab; no padding / trailing slice copies.
    x2 = inputs.astype(jnp.float32).reshape(n * p, cin)

    out2 = pl.pallas_call(
        functools.partial(pointnet_kernel, points=p),
        out_shape=jax.ShapeDtypeStruct((n * p, 2 * ch), jnp.float32),
        grid_spec=pltpu.PrefetchScalarGridSpec(
            num_scalar_prefetch=0,
            grid=grid,
            in_specs=[
                pl.BlockSpec((rows, cin), lambda i: (i, 0)),   # pillar-tile of points
                pl.BlockSpec((cin, ch), lambda i: (0, 0)),     # folded weight (resident)
                pl.BlockSpec((1, ch), lambda i: (0, 0)),       # folded BN shift
            ],
            out_specs=pl.BlockSpec((rows, 2 * ch), lambda i: (i, 0)),
        ),
        compiler_params=pltpu.CompilerParams(
            # "parallel" keeps the pillar grid sharded across v7x's two TCs.
            dimension_semantics=("parallel",),
            vmem_limit_bytes=vmem_limit_bytes,
        ),
    )(x2, w_folded, shift)

    return out2.reshape(n, p, 2 * ch)


def pointnet_reference(inputs, weight, gamma, beta, running_mean, running_var):
    """Pure-JAX reference of the same forward pass (inference-mode BN)."""
    y = jnp.einsum("npc,ch->nph", inputs, weight,
                   precision=jax.lax.Precision.HIGHEST)
    scale = gamma * jax.lax.rsqrt(running_var + BN_EPS)
    shift = beta - running_mean * scale
    y = jnp.maximum(y * scale + shift, 0.0)
    y_max = jnp.max(y, axis=1, keepdims=True)
    return jnp.concatenate([y, jnp.broadcast_to(y_max, y.shape)], axis=2)


if __name__ == "__main__":
    # Module config: in_channels=10, out_channels=64, use_norm=True, last_layer=False
    # -> internal linear width = 32, final concat width = 64.
    IN_CHANNELS = 10
    OUT_CHANNELS = 64
    C_HALF = OUT_CHANNELS // 2
    N_PILLARS = 130          # deliberately NOT a multiple of the tile (real N=31530 isn't either)
    P_POINTS = 32

    key = jax.random.PRNGKey(0)
    k_in, k_w, k_g, k_b, k_m, k_v = jax.random.split(key, 6)

    inputs = jax.random.normal(k_in, (N_PILLARS, P_POINTS, IN_CHANNELS), jnp.float32)
    # nn.Linear(in, out, bias=False).weight is (out, in); we store its transpose.
    weight = jax.random.normal(k_w, (IN_CHANNELS, C_HALF), jnp.float32) * 0.1
    gamma = 1.0 + 0.1 * jax.random.normal(k_g, (C_HALF,), jnp.float32)
    beta = 0.1 * jax.random.normal(k_b, (C_HALF,), jnp.float32)
    running_mean = 0.1 * jax.random.normal(k_m, (C_HALF,), jnp.float32)
    running_var = jnp.abs(jax.random.normal(k_v, (C_HALF,), jnp.float32)) + 0.5

    ref = pointnet_reference(inputs, weight, gamma, beta, running_mean, running_var)

    # 1) Small tile to exercise a multi-step grid with a ragged (partial) last tile.
    out = pointnet_forward(inputs, weight, gamma, beta, running_mean, running_var,
                           tile_n=64)
    out = jax.block_until_ready(out)
    assert out.shape == (N_PILLARS, P_POINTS, OUT_CHANNELS), out.shape
    assert jnp.allclose(out, ref, atol=1e-4, rtol=1e-4), "mismatch vs reference (tile_n=64)"

    # 2) Generation-tuned default tile (clamps to N here -> single-step grid).
    out2 = pointnet_forward(inputs, weight, gamma, beta, running_mean, running_var)
    out2 = jax.block_until_ready(out2)
    assert jnp.allclose(out2, ref, atol=1e-4, rtol=1e-4), "mismatch vs reference (default tile)"

    print("KERNEL_OK")
</pallas_src>

<mosaic_0001>
module attributes {stable_mosaic.version = 11 : i64} {
  func.func @pointnet_kernel(%arg0: i32, %arg1: memref<2048x10xf32, #tpu.memory_space<vmem>>, %arg2: memref<10x32xf32, #tpu.memory_space<vmem>>, %arg3: memref<1x32xf32, #tpu.memory_space<vmem>>, %arg4: memref<2048x64xf32, #tpu.memory_space<vmem>>) attributes {dimension_semantics = [#tpu.dimension_semantics<parallel>], iteration_bounds = array<i64: 3>, scalar_prefetch = 0 : i64, scratch_operands = 0 : i64, tpu.core_type = #tpu.core_type<tc>, window_params = [{transform_indices = @transform_0, window_bounds = array<i64: 2048, 10>}, {pipeline_mode = #tpu.pipeline_mode<synchronous>, transform_indices = @transform_1, window_bounds = array<i64: 10, 32>}, {pipeline_mode = #tpu.pipeline_mode<synchronous>, transform_indices = @transform_2, window_bounds = array<i64: 1, 32>}, {transform_indices = @transform_3, window_bounds = array<i64: 2048, 64>}]} {
    %c0 = arith.constant 0 : index
    %c0_0 = arith.constant 0 : index
    %0 = vector.load %arg1[%c0, %c0_0] : memref<2048x10xf32, #tpu.memory_space<vmem>>, vector<2048x10xf32>
    %c0_1 = arith.constant 0 : index
    %c0_2 = arith.constant 0 : index
    %1 = vector.load %arg2[%c0_1, %c0_2] : memref<10x32xf32, #tpu.memory_space<vmem>>, vector<10x32xf32>
    %cst = arith.constant dense<0.000000e+00> : vector<2048x32xf32>
    %2 = tpu.matmul %0, %1, %cst {dimension_numbers = #tpu.dot_dimension_numbers<[1], [0], [0], [1], [0, 0, 1, 1], [], []>} : vector<2048x10xf32>, vector<10x32xf32>, vector<2048x32xf32> -> vector<2048x32xf32>
    %c0_3 = arith.constant 0 : index
    %c0_4 = arith.constant 0 : index
    %3 = vector.load %arg3[%c0_3, %c0_4] : memref<1x32xf32, #tpu.memory_space<vmem>>, vector<1x32xf32>
    %4 = vector.broadcast %3 : vector<1x32xf32> to vector<2048x32xf32>
    %5 = arith.addf %2, %4 : vector<2048x32xf32>
    %cst_5 = arith.constant 0.000000e+00 : f32
    %6 = vector.broadcast %cst_5 : f32 to vector<2048x32xf32>
    %7 = arith.maximumf %5, %6 : vector<2048x32xf32>
    %8 = vector.shape_cast %7 : vector<2048x32xf32> to vector<64x32x32xf32>
    %cst_6 = arith.constant dense<0xFF800000> : vector<64x32xf32>
    %9 = vector.multi_reduction <maximumf>, %8, %cst_6 [1] : vector<64x32x32xf32> to vector<64x32xf32>
    %10 = vector.shape_cast %9 : vector<64x32xf32> to vector<64x1x32xf32>
    %11 = vector.shape_cast %10 : vector<64x1x32xf32> to vector<64x1x32xf32>
    %12 = vector.broadcast %11 : vector<64x1x32xf32> to vector<64x32x32xf32>
    %13 = tpu.concatenate %8, %12 in 2 : vector<64x32x32xf32>, vector<64x32x32xf32> -> vector<64x32x64xf32>
    %14 = vector.shape_cast %13 : vector<64x32x64xf32> to vector<2048x64xf32>
    %c0_7 = arith.constant 0 : index
    %c0_8 = arith.constant 0 : index
    %15 = vector.load %arg4[%c0_7, %c0_8] : memref<2048x64xf32, #tpu.memory_space<vmem>>, vector<2048x64xf32>
    tpu.vector_store %arg4[%c0_7, %c0_8], %14 {strides = array<i32>} : memref<2048x64xf32, #tpu.memory_space<vmem>>, vector<2048x64xf32>,
    return
  }
  func.func @transform_0(%arg0: i32) -> (i32, i32) {
    %c0_i32 = arith.constant 0 : i32
    %c0_i32_0 = arith.constant 0 : i32
    return %arg0, %c0_i32 : i32, i32
  }
  func.func @transform_1(%arg0: i32) -> (i32, i32) {
    %c0_i32 = arith.constant 0 : i32
    %c0_i32_0 = arith.constant 0 : i32
    %c0_i32_1 = arith.constant 0 : i32
    return %c0_i32, %c0_i32_0 : i32, i32
  }
  func.func @transform_2(%arg0: i32) -> (i32, i32) {
    %c0_i32 = arith.constant 0 : i32
    %c0_i32_0 = arith.constant 0 : i32
    %c0_i32_1 = arith.constant 0 : i32
    return %c0_i32, %c0_i32_0 : i32, i32
  }
  func.func @transform_3(%arg0: i32) -> (i32, i32) {
    %c0_i32 = arith.constant 0 : i32
    %c0_i32_0 = arith.constant 0 : i32
    return %arg0, %c0_i32 : i32, i32
  }
}

</mosaic_0001>

<llo_original>
// kernel: tpu_custom_call.1
$region0: #{tpu_custom_call.1}
  #allocation0 [shape = 'u32[]', space=smem, size = 0x4, offset = 0x4, fixed_abs, tag = 'smem constant byte address 0x4 - core index']
  #allocation1 [shape = 'u32[144,128]{1,0:T(1,128)}', space=vmem, size = 0x12000, scoped, tag = 'internal scratch']
  %s0 = inlined_call_operand.vmem [shape: f32[4160,10], index: 0, kind: input, shape index: {}]
  %s1 = inlined_call_operand.vmem [shape: f32[10,32], index: 1, kind: input, shape index: {}]
  %s2 = inlined_call_operand.vmem [shape: f32[1,32], index: 2, kind: input, shape index: {}]
  %s3 = inlined_call_operand.vmem [shape: f32[4160,64], index: 3, kind: output, shape index: {}]
  %s4 = sld [smem:[#allocation0]]
  $region93: #{tpu_custom_call.1} parent=0
    _
  %s6 = ssub.s32 1, %s4
  %s7 = scalar_select 0, %s6, %s4
  $region1: #{tpu_custom_call.1} parent=0
    #allocation2 [shape = 'u8[2097152]{0}', space=vmem, size = 0x200000, scoped, tag = 'output window, operand 0']
    loop: start=0, step=1, limit=5
    $region2: #{tpu_custom_call.1} parent=1 // loop_pre_header
      _
    $region3: #{tpu_custom_call.1} parent=1 // loop_header
      %s9 = sphi 0, %s13
      %p10 = scmp.ge.s32.totalorder %s9, 5
      %s19 = sphi 0, %s21
      %s22 = sphi 0, %s19
      %s23 = sphi 0, %s22
      %s39 = sphi 0, %s23
      %s43 = sphi 0, %s43
      %s45 = sphi 0, %s43
      %s46 = sphi 0, %s45
      %s60 = sphi 0, %s46
      %s64 = sphi 0, %s64
      %s66 = sphi 0, %s64
      %s67 = sphi 0, %s66
      %s81 = sphi 0, %s67
      %s87 = sphi 0, %s89
      %s90 = sphi 0, %s87
      %s91 = sphi 0, %s90
      %s107 = sphi 0, %s91
    $region4: #{tpu_custom_call.1} parent=1 // loop_header_branch
      %12 = sbr.rel (%p10) target = $region8
    $region5: #{tpu_custom_call.1} parent=1 // loop_body
      %s14 = ssub.s32 %s9, 1
      %s15 = ssub.s32 %s9, 2
      %s16 = sadd.s32 %s9, 1
      %s17 = ssub.s32 %s9, %s16
      %p18 = scmp.eq.s32.totalorder %s17, 0
      %s20 = sadd.s32 %s19, 1
      %s21 = scalar_select %p18, %s19, %s20
      %p24 = pneg %p18
      %p25 = scmp.eq.s32.totalorder %s9, 2
      %p26 = por %p24, %p25
      %p27 = scmp.ne.s32.totalorder %s19, %s22
      %p28 = scmp.eq.s32.totalorder %s9, 0
      %p29 = por %p27, %p28
      %p30 = scmp.ne.s32.totalorder %s19, %s22
      %p31 = scmp.eq.s32.totalorder %s14, 2
      %p32 = por %p30, %p31
      %p33 = scmp.ne.s32.totalorder %s22, %s23
      %p34 = scmp.eq.s32.totalorder %s14, 0
      %p35 = por %p33, %p34
      %p36 = scmp.ne.s32.totalorder %s22, %s23
      %p37 = scmp.eq.s32.totalorder %s15, 2
      %p38 = por %p36, %p37
      %p40 = scmp.ne.s32.totalorder %s23, %s39
      %p41 = scmp.eq.s32.totalorder %s15, 0
      %p42 = por %p40, %p41
      %s44 = sadd.s32 %s43, 1
      %p47 = scmp.eq.s32.totalorder %s9, 2
      %p48 = scmp.ne.s32.totalorder %s43, %s45
      %p49 = scmp.eq.s32.totalorder %s9, 0
      %p50 = por %p48, %p49
      %p51 = scmp.ne.s32.totalorder %s43, %s45
      %p52 = scmp.eq.s32.totalorder %s14, 2
      %p53 = por %p51, %p52
      %p54 = scmp.ne.s32.totalorder %s45, %s46
      %p55 = scmp.eq.s32.totalorder %s14, 0
      %p56 = por %p54, %p55
      %p57 = scmp.ne.s32.totalorder %s45, %s46
      %p58 = scmp.eq.s32.totalorder %s15, 2
      %p59 = por %p57, %p58
      %p61 = scmp.ne.s32.totalorder %s46, %s60
      %p62 = scmp.eq.s32.totalorder %s15, 0
      %p63 = por %p61, %p62
      %s65 = sadd.s32 %s64, 1
      %p68 = scmp.eq.s32.totalorder %s9, 2
      %p69 = scmp.ne.s32.totalorder %s64, %s66
      %p70 = scmp.eq.s32.totalorder %s9, 0
      %p71 = por %p69, %p70
      %p72 = scmp.ne.s32.totalorder %s64, %s66
      %p73 = scmp.eq.s32.totalorder %s14, 2
      %p74 = por %p72, %p73
      %p75 = scmp.ne.s32.totalorder %s66, %s67
      %p76 = scmp.eq.s32.totalorder %s14, 0
      %p77 = por %p75, %p76
      %p78 = scmp.ne.s32.totalorder %s66, %s67
      %p79 = scmp.eq.s32.totalorder %s15, 2
      %p80 = por %p78, %p79
      %p82 = scmp.ne.s32.totalorder %s67, %s81
      %p83 = scmp.eq.s32.totalorder %s15, 0
      %p84 = por %p82, %p83
      %s85 = ssub.s32 %s9, %s16
      %p86 = scmp.eq.s32.totalorder %s85, 0
      %s88 = sadd.s32 %s87, 1
      %s89 = scalar_select %p86, %s87, %s88
      %p92 = pneg %p86
      %p93 = scmp.eq.s32.totalorder %s9, 2
      %p94 = por %p92, %p93
      %p95 = scmp.ne.s32.totalorder %s87, %s90
      %p96 = scmp.eq.s32.totalorder %s9, 0
      %p97 = por %p95, %p96
      %p98 = scmp.ne.s32.totalorder %s87, %s90
      %p99 = scmp.eq.s32.totalorder %s14, 2
      %p100 = por %p98, %p99
      %p101 = scmp.ne.s32.totalorder %s90, %s91
      %p102 = scmp.eq.s32.totalorder %s14, 0
      %p103 = por %p101, %p102
      %p104 = scmp.ne.s32.totalorder %s90, %s91
      %p105 = scmp.eq.s32.totalorder %s15, 2
      %p106 = por %p104, %p105
      %p108 = scmp.ne.s32.totalorder %s91, %s107
      %p109 = scmp.eq.s32.totalorder %s15, 0
      %p110 = por %p108, %p109
      %p111 = scmp.le.s32.totalorder 1, %s9
      %p112 = scmp.lt.s32.totalorder %s9, 4
      %p113 = pnand %p111, %p112
      %p114 = pneg %p113
      // Predicated region
      $region9: #{tpu_custom_call.1} parent=5 // pred_check
        _
      $region10: #{tpu_custom_call.1} parent=5 // pred_check_branch
        %116 = sbr.rel (%p113) target = $region12
      $region11: #{tpu_custom_call.1} parent=5 // pred_region
        %s117 = ssub.s32 %s9, 1
        // Predicated region
        $region13: #{tpu_custom_call.1} parent=11 // pred_check
          %p118 = pneg %p56
        $region14: #{tpu_custom_call.1} parent=11 // pred_check_branch
          %120 = sbr.rel (%p118) target = $region16
        $region15: #{tpu_custom_call.1} parent=11 // pred_region
          _
        $region16: #{tpu_custom_call.1} parent=11 // pred_fallthru
          _
        // Predicated region
        $region17: #{tpu_custom_call.1} parent=11 // pred_check
          %p121 = pneg %p77
        $region18: #{tpu_custom_call.1} parent=11 // pred_check_branch
          %123 = sbr.rel (%p121) target = $region20
        $region19: #{tpu_custom_call.1} parent=11 // pred_region
          _
        $region20: #{tpu_custom_call.1} parent=11 // pred_fallthru
          _
      $region12: #{tpu_custom_call.1} parent=5 // pred_fallthru
        _
      %p124 = scmp.lt.s32.totalorder %s9, 3
      // Predicated region
      $region21: #{tpu_custom_call.1} parent=5 // pred_check
        %p125 = pneg %p124
      $region22: #{tpu_custom_call.1} parent=5 // pred_check_branch
        %127 = sbr.rel (%p125) target = $region24
      $region23: #{tpu_custom_call.1} parent=5 // pred_region
        // Predicated region
        $region25: #{tpu_custom_call.1} parent=23 // pred_check
          %p128 = pneg %p29
        $region26: #{tpu_custom_call.1} parent=23 // pred_check_branch
          %130 = sbr.rel (%p128) target = $region28
        $region27: #{tpu_custom_call.1} parent=23 // pred_region
          %s131 = smul.u32 256, %s9
          %s132 = ssub.s32 520, %s131
          %p133 = scmp.lt.s32.totalorder %s132, 256
          %s134 = scalar_select %p133, %s132, 256
          %s135 = smul.u32 128, %s134
          %p136 = scmp.lt.s32.totalorder %s131, 519
          %s137 = scalar_select %p136, %s131, 519
          %s138 = smul.addr %s137, 8
          %s139 = scalar_lea.vmem %s0, %s138
          %s140 = smul.u32 256, %s9
          %s141 = ssub.s32 520, %s140
          %p142 = scmp.lt.s32.totalorder %s141, 256
          %s143 = scalar_select %p142, %s141, 256
          %s144 = smul.u32 128, %s143
        $region28: #{tpu_custom_call.1} parent=23 // pred_fallthru
          _
      $region24: #{tpu_custom_call.1} parent=5 // pred_fallthru
        _
      %p145 = scmp.le.s32.totalorder 1, %s9
      %p146 = scmp.lt.s32.totalorder %s9, 4
      %p147 = pnand %p145, %p146
      %p148 = pneg %p147
      // Predicated region
      $region29: #{tpu_custom_call.1} parent=5 // pred_check
        _
      $region30: #{tpu_custom_call.1} parent=5 // pred_check_branch
        %150 = sbr.rel (%p147) target = $region32
      $region31: #{tpu_custom_call.1} parent=5 // pred_region
        %s151 = ssub.s32 %s9, 1
        %s152 = smul.u32 256, %s14
        %s153 = ssub.s32 520, %s152
        %p154 = scmp.lt.s32.totalorder %s153, 256
        %s155 = scalar_select %p154, %s153, 256
        %s156 = smul.u32 128, %s155
        %p157 = scmp.lt.s32.totalorder %s152, 519
        %s158 = scalar_select %p157, %s152, 519
        %s159 = smul.addr %s158, 8
        %s160 = scalar_lea.vmem %s0, %s159
        %p161 = pneg %p35
        %p162 = pneg %p32
        %p163 = pneg %p56
        %p164 = pneg %p53
        %p165 = pneg %p77
        %p166 = pneg %p74
        %p167 = pneg %p103
        %p168 = pneg %p100
        %s169 = sand.u32 %s90, 1
        %s170 = sand.u32 %s90, 1
        %s171 = smul.addr %s170, 2048
        %s172 = scalar_lea.vmem [#allocation2], %s171
        %s173 = smul.u32 256, %s14
        %s174 = ssub.s32 520, %s173
        %p175 = scmp.lt.s32.totalorder %s174, 256
        %s176 = scalar_select %p175, %s174, 256
        %s177 = smul.u32 128, %s176
        %p178 = scmp.lt.s32.totalorder %s173, 519
        %s179 = scalar_select %p178, %s173, 519
        %s180 = smul.addr %s179, 8
        %s181 = scalar_lea.vmem %s0, %s180
        %s182 = smul.u32 256, %s14
        %s183 = ssub.s32 520, %s182
        %p184 = scmp.lt.s32.totalorder %s183, 256
        %s185 = scalar_select %p184, %s183, 256
        %s186 = smul.u32 128, %s185
        %s187 = smul.u32 256, %s14
        %s188 = ssub.s32 520, %s187
        %p189 = scmp.lt.s32.totalorder %s188, 256
        %s190 = scalar_select %p189, %s188, 256
        %s191 = smul.u32 128, %s190
        %v192 = vld [vmem:[%s181] sm:$0xff]
        %v193 = vld [vmem:[%s181 + $0x8] sm:$0xff]
        %v194 = vld [vmem:[%s181 + $0x10] sm:$0xff]
        %v195 = vld [vmem:[%s181 + $0x18] sm:$0xff]
        %v196 = vld [vmem:[%s181 + $0x20] sm:$0xff]
        %v197 = vld [vmem:[%s181 + $0x28] sm:$0xff]
        %v198 = vld [vmem:[%s181 + $0x30] sm:$0xff]
        %v199 = vld [vmem:[%s181 + $0x38] sm:$0xff]
        %v200 = vld [vmem:[%s181 + $0x40] sm:$0xff]
        %v201 = vld [vmem:[%s181 + $0x48] sm:$0xff]
        %v202 = vld [vmem:[%s181 + $0x50] sm:$0xff]
        %v203 = vld [vmem:[%s181 + $0x58] sm:$0xff]
        %v204 = vld [vmem:[%s181 + $0x60] sm:$0xff]
        %v205 = vld [vmem:[%s181 + $0x68] sm:$0xff]
        %v206 = vld [vmem:[%s181 + $0x70] sm:$0xff]
        %v207 = vld [vmem:[%s181 + $0x78] sm:$0xff]
        %v208 = vld [vmem:[%s181 + $0x80] sm:$0xff]
        %v209 = vld [vmem:[%s181 + $0x88] sm:$0xff]
        %v210 = vld [vmem:[%s181 + $0x90] sm:$0xff]
        %v211 = vld [vmem:[%s181 + $0x98] sm:$0xff]
        %v212 = vld [vmem:[%s181 + $0xa0] sm:$0xff]
        %v213 = vld [vmem:[%s181 + $0xa8] sm:$0xff]
        %v214 = vld [vmem:[%s181 + $0xb0] sm:$0xff]
        %v215 = vld [vmem:[%s181 + $0xb8] sm:$0xff]
        %v216 = vld [vmem:[%s181 + $0xc0] sm:$0xff]
        %v217 = vld [vmem:[%s181 + $0xc8] sm:$0xff]
        %v218 = vld [vmem:[%s181 + $0xd0] sm:$0xff]
        %v219 = vld [vmem:[%s181 + $0xd8] sm:$0xff]
        %v220 = vld [vmem:[%s181 + $0xe0] sm:$0xff]
        %v221 = vld [vmem:[%s181 + $0xe8] sm:$0xff]
        %v222 = vld [vmem:[%s181 + $0xf0] sm:$0xff]
        %v223 = vld [vmem:[%s181 + $0xf8] sm:$0xff]
        %v224 = vld [vmem:[%s181 + $0x100] sm:$0xff]
        %v225 = vld [vmem:[%s181 + $0x108] sm:$0xff]
        %v226 = vld [vmem:[%s181 + $0x110] sm:$0xff]
        %v227 = vld [vmem:[%s181 + $0x118] sm:$0xff]
        %v228 = vld [vmem:[%s181 + $0x120] sm:$0xff]
        %v229 = vld [vmem:[%s181 + $0x128] sm:$0xff]
        %v230 = vld [vmem:[%s181 + $0x130] sm:$0xff]
        %v231 = vld [vmem:[%s181 + $0x138] sm:$0xff]
        %v232 = vld [vmem:[%s181 + $0x140] sm:$0xff]
        %v233 = vld [vmem:[%s181 + $0x148] sm:$0xff]
        %v234 = vld [vmem:[%s181 + $0x150] sm:$0xff]
        %v235 = vld [vmem:[%s181 + $0x158] sm:$0xff]
        %v236 = vld [vmem:[%s181 + $0x160] sm:$0xff]
        %v237 = vld [vmem:[%s181 + $0x168] sm:$0xff]
        %v238 = vld [vmem:[%s181 + $0x170] sm:$0xff]
        %v239 = vld [vmem:[%s181 + $0x178] sm:$0xff]
        %v240 = vld [vmem:[%s181 + $0x180] sm:$0xff]
        %v241 = vld [vmem:[%s181 + $0x188] sm:$0xff]
        %v242 = vld [vmem:[%s181 + $0x190] sm:$0xff]
        %v243 = vld [vmem:[%s181 + $0x198] sm:$0xff]
        %v244 = vld [vmem:[%s181 + $0x1a0] sm:$0xff]
        %v245 = vld [vmem:[%s181 + $0x1a8] sm:$0xff]
        %v246 = vld [vmem:[%s181 + $0x1b0] sm:$0xff]
        %v247 = vld [vmem:[%s181 + $0x1b8] sm:$0xff]
        %v248 = vld [vmem:[%s181 + $0x1c0] sm:$0xff]
        %v249 = vld [vmem:[%s181 + $0x1c8] sm:$0xff]
        %v250 = vld [vmem:[%s181 + $0x1d0] sm:$0xff]
        %v251 = vld [vmem:[%s181 + $0x1d8] sm:$0xff]
        %v252 = vld [vmem:[%s181 + $0x1e0] sm:$0xff]
        %v253 = vld [vmem:[%s181 + $0x1e8] sm:$0xff]
        %v254 = vld [vmem:[%s181 + $0x1f0] sm:$0xff]
        %v255 = vld [vmem:[%s181 + $0x1f8] sm:$0xff]
        %v256 = vld [vmem:[%s181 + $0x200] sm:$0xff]
        %v257 = vld [vmem:[%s181 + $0x208] sm:$0xff]
        %v258 = vld [vmem:[%s181 + $0x210] sm:$0xff]
        %v259 = vld [vmem:[%s181 + $0x218] sm:$0xff]
        %v260 = vld [vmem:[%s181 + $0x220] sm:$0xff]
        %v261 = vld [vmem:[%s181 + $0x228] sm:$0xff]
        %v262 = vld [vmem:[%s181 + $0x230] sm:$0xff]
        %v263 = vld [vmem:[%s181 + $0x238] sm:$0xff]
        %v264 = vld [vmem:[%s181 + $0x240] sm:$0xff]
        %v265 = vld [vmem:[%s181 + $0x248] sm:$0xff]
        %v266 = vld [vmem:[%s181 + $0x250] sm:$0xff]
        %v267 = vld [vmem:[%s181 + $0x258] sm:$0xff]
        %v268 = vld [vmem:[%s181 + $0x260] sm:$0xff]
        %v269 = vld [vmem:[%s181 + $0x268] sm:$0xff]
        %v270 = vld [vmem:[%s181 + $0x270] sm:$0xff]
        %v271 = vld [vmem:[%s181 + $0x278] sm:$0xff]
        %v272 = vld [vmem:[%s181 + $0x280] sm:$0xff]
        %v273 = vld [vmem:[%s181 + $0x288] sm:$0xff]
        %v274 = vld [vmem:[%s181 + $0x290] sm:$0xff]
        %v275 = vld [vmem:[%s181 + $0x298] sm:$0xff]
        %v276 = vld [vmem:[%s181 + $0x2a0] sm:$0xff]
        %v277 = vld [vmem:[%s181 + $0x2a8] sm:$0xff]
        %v278 = vld [vmem:[%s181 + $0x2b0] sm:$0xff]
        %v279 = vld [vmem:[%s181 + $0x2b8] sm:$0xff]
        %v280 = vld [vmem:[%s181 + $0x2c0] sm:$0xff]
        %v281 = vld [vmem:[%s181 + $0x2c8] sm:$0xff]
        %v282 = vld [vmem:[%s181 + $0x2d0] sm:$0xff]
        %v283 = vld [vmem:[%s181 + $0x2d8] sm:$0xff]
        %v284 = vld [vmem:[%s181 + $0x2e0] sm:$0xff]
        %v285 = vld [vmem:[%s181 + $0x2e8] sm:$0xff]
        %v286 = vld [vmem:[%s181 + $0x2f0] sm:$0xff]
        %v287 = vld [vmem:[%s181 + $0x2f8] sm:$0xff]
        %v288 = vld [vmem:[%s181 + $0x300] sm:$0xff]
        %v289 = vld [vmem:[%s181 + $0x308] sm:$0xff]
        %v290 = vld [vmem:[%s181 + $0x310] sm:$0xff]
        %v291 = vld [vmem:[%s181 + $0x318] sm:$0xff]
        %v292 = vld [vmem:[%s181 + $0x320] sm:$0xff]
        %v293 = vld [vmem:[%s181 + $0x328] sm:$0xff]
        %v294 = vld [vmem:[%s181 + $0x330] sm:$0xff]
        %v295 = vld [vmem:[%s181 + $0x338] sm:$0xff]
        %v296 = vld [vmem:[%s181 + $0x340] sm:$0xff]
        %v297 = vld [vmem:[%s181 + $0x348] sm:$0xff]
        %v298 = vld [vmem:[%s181 + $0x350] sm:$0xff]
        %v299 = vld [vmem:[%s181 + $0x358] sm:$0xff]
        %v300 = vld [vmem:[%s181 + $0x360] sm:$0xff]
        %v301 = vld [vmem:[%s181 + $0x368] sm:$0xff]
        %v302 = vld [vmem:[%s181 + $0x370] sm:$0xff]
        %v303 = vld [vmem:[%s181 + $0x378] sm:$0xff]
        %v304 = vld [vmem:[%s181 + $0x380] sm:$0xff]
        %v305 = vld [vmem:[%s181 + $0x388] sm:$0xff]
        %v306 = vld [vmem:[%s181 + $0x390] sm:$0xff]
        %v307 = vld [vmem:[%s181 + $0x398] sm:$0xff]
        %v308 = vld [vmem:[%s181 + $0x3a0] sm:$0xff]
        %v309 = vld [vmem:[%s181 + $0x3a8] sm:$0xff]
        %v310 = vld [vmem:[%s181 + $0x3b0] sm:$0xff]
        %v311 = vld [vmem:[%s181 + $0x3b8] sm:$0xff]
        %v312 = vld [vmem:[%s181 + $0x3c0] sm:$0xff]
        %v313 = vld [vmem:[%s181 + $0x3c8] sm:$0xff]
        %v314 = vld [vmem:[%s181 + $0x3d0] sm:$0xff]
        %v315 = vld [vmem:[%s181 + $0x3d8] sm:$0xff]
        %v316 = vld [vmem:[%s181 + $0x3e0] sm:$0xff]
        %v317 = vld [vmem:[%s181 + $0x3e8] sm:$0xff]
        %v318 = vld [vmem:[%s181 + $0x3f0] sm:$0xff]
        %v319 = vld [vmem:[%s181 + $0x3f8] sm:$0xff]
        %v320 = vld [vmem:[%s181 + $0x400] sm:$0xff]
        %v321 = vld [vmem:[%s181 + $0x408] sm:$0xff]
        %v322 = vld [vmem:[%s181 + $0x410] sm:$0xff]
        %v323 = vld [vmem:[%s181 + $0x418] sm:$0xff]
        %v324 = vld [vmem:[%s181 + $0x420] sm:$0xff]
        %v325 = vld [vmem:[%s181 + $0x428] sm:$0xff]
        %v326 = vld [vmem:[%s181 + $0x430] sm:$0xff]
        %v327 = vld [vmem:[%s181 + $0x438] sm:$0xff]
        %v328 = vld [vmem:[%s181 + $0x440] sm:$0xff]
        %v329 = vld [vmem:[%s181 + $0x448] sm:$0xff]
        %v330 = vld [vmem:[%s181 + $0x450] sm:$0xff]
        %v331 = vld [vmem:[%s181 + $0x458] sm:$0xff]
        %v332 = vld [vmem:[%s181 + $0x460] sm:$0xff]
        %v333 = vld [vmem:[%s181 + $0x468] sm:$0xff]
        %v334 = vld [vmem:[%s181 + $0x470] sm:$0xff]
        %v335 = vld [vmem:[%s181 + $0x478] sm:$0xff]
        %v336 = vld [vmem:[%s181 + $0x480] sm:$0xff]
        %v337 = vld [vmem:[%s181 + $0x488] sm:$0xff]
        %v338 = vld [vmem:[%s181 + $0x490] sm:$0xff]
        %v339 = vld [vmem:[%s181 + $0x498] sm:$0xff]
        %v340 = vld [vmem:[%s181 + $0x4a0] sm:$0xff]
        %v341 = vld [vmem:[%s181 + $0x4a8] sm:$0xff]
        %v342 = vld [vmem:[%s181 + $0x4b0] sm:$0xff]
        %v343 = vld [vmem:[%s181 + $0x4b8] sm:$0xff]
        %v344 = vld [vmem:[%s181 + $0x4c0] sm:$0xff]
        %v345 = vld [vmem:[%s181 + $0x4c8] sm:$0xff]
        %v346 = vld [vmem:[%s181 + $0x4d0] sm:$0xff]
        %v347 = vld [vmem:[%s181 + $0x4d8] sm:$0xff]
        %v348 = vld [vmem:[%s181 + $0x4e0] sm:$0xff]
        %v349 = vld [vmem:[%s181 + $0x4e8] sm:$0xff]
        %v350 = vld [vmem:[%s181 + $0x4f0] sm:$0xff]
        %v351 = vld [vmem:[%s181 + $0x4f8] sm:$0xff]
        %v352 = vld [vmem:[%s181 + $0x500] sm:$0xff]
        %v353 = vld [vmem:[%s181 + $0x508] sm:$0xff]
        %v354 = vld [vmem:[%s181 + $0x510] sm:$0xff]
        %v355 = vld [vmem:[%s181 + $0x518] sm:$0xff]
        %v356 = vld [vmem:[%s181 + $0x520] sm:$0xff]
        %v357 = vld [vmem:[%s181 + $0x528] sm:$0xff]
        %v358 = vld [vmem:[%s181 + $0x530] sm:$0xff]
        %v359 = vld [vmem:[%s181 + $0x538] sm:$0xff]
        %v360 = vld [vmem:[%s181 + $0x540] sm:$0xff]
        %v361 = vld [vmem:[%s181 + $0x548] sm:$0xff]
        %v362 = vld [vmem:[%s181 + $0x550] sm:$0xff]
        %v363 = vld [vmem:[%s181 + $0x558] sm:$0xff]
        %v364 = vld [vmem:[%s181 + $0x560] sm:$0xff]
        %v365 = vld [vmem:[%s181 + $0x568] sm:$0xff]
        %v366 = vld [vmem:[%s181 + $0x570] sm:$0xff]
        %v367 = vld [vmem:[%s181 + $0x578] sm:$0xff]
        %v368 = vld [vmem:[%s181 + $0x580] sm:$0xff]
        %v369 = vld [vmem:[%s181 + $0x588] sm:$0xff]
        %v370 = vld [vmem:[%s181 + $0x590] sm:$0xff]
        %v371 = vld [vmem:[%s181 + $0x598] sm:$0xff]
        %v372 = vld [vmem:[%s181 + $0x5a0] sm:$0xff]
        %v373 = vld [vmem:[%s181 + $0x5a8] sm:$0xff]
        %v374 = vld [vmem:[%s181 + $0x5b0] sm:$0xff]
        %v375 = vld [vmem:[%s181 + $0x5b8] sm:$0xff]
        %v376 = vld [vmem:[%s181 + $0x5c0] sm:$0xff]
        %v377 = vld [vmem:[%s181 + $0x5c8] sm:$0xff]
        %v378 = vld [vmem:[%s181 + $0x5d0] sm:$0xff]
        %v379 = vld [vmem:[%s181 + $0x5d8] sm:$0xff]
        %v380 = vld [vmem:[%s181 + $0x5e0] sm:$0xff]
        %v381 = vld [vmem:[%s181 + $0x5e8] sm:$0xff]
        %v382 = vld [vmem:[%s181 + $0x5f0] sm:$0xff]
        %v383 = vld [vmem:[%s181 + $0x5f8] sm:$0xff]
        %v384 = vld [vmem:[%s181 + $0x600] sm:$0xff]
        %v385 = vld [vmem:[%s181 + $0x608] sm:$0xff]
        %v386 = vld [vmem:[%s181 + $0x610] sm:$0xff]
        %v387 = vld [vmem:[%s181 + $0x618] sm:$0xff]
        %v388 = vld [vmem:[%s181 + $0x620] sm:$0xff]
        %v389 = vld [vmem:[%s181 + $0x628] sm:$0xff]
        %v390 = vld [vmem:[%s181 + $0x630] sm:$0xff]
        %v391 = vld [vmem:[%s181 + $0x638] sm:$0xff]
        %v392 = vld [vmem:[%s181 + $0x640] sm:$0xff]
        %v393 = vld [vmem:[%s181 + $0x648] sm:$0xff]
        %v394 = vld [vmem:[%s181 + $0x650] sm:$0xff]
        %v395 = vld [vmem:[%s181 + $0x658] sm:$0xff]
        %v396 = vld [vmem:[%s181 + $0x660] sm:$0xff]
        %v397 = vld [vmem:[%s181 + $0x668] sm:$0xff]
        %v398 = vld [vmem:[%s181 + $0x670] sm:$0xff]
        %v399 = vld [vmem:[%s181 + $0x678] sm:$0xff]
        %v400 = vld [vmem:[%s181 + $0x680] sm:$0xff]
        %v401 = vld [vmem:[%s181 + $0x688] sm:$0xff]
        %v402 = vld [vmem:[%s181 + $0x690] sm:$0xff]
        %v403 = vld [vmem:[%s181 + $0x698] sm:$0xff]
        %v404 = vld [vmem:[%s181 + $0x6a0] sm:$0xff]
        %v405 = vld [vmem:[%s181 + $0x6a8] sm:$0xff]
        %v406 = vld [vmem:[%s181 + $0x6b0] sm:$0xff]
        %v407 = vld [vmem:[%s181 + $0x6b8] sm:$0xff]
        %v408 = vld [vmem:[%s181 + $0x6c0] sm:$0xff]
        %v409 = vld [vmem:[%s181 + $0x6c8] sm:$0xff]
        %v410 = vld [vmem:[%s181 + $0x6d0] sm:$0xff]
        %v411 = vld [vmem:[%s181 + $0x6d8] sm:$0xff]
        %v412 = vld [vmem:[%s181 + $0x6e0] sm:$0xff]
        %v413 = vld [vmem:[%s181 + $0x6e8] sm:$0xff]
        %v414 = vld [vmem:[%s181 + $0x6f0] sm:$0xff]
        %v415 = vld [vmem:[%s181 + $0x6f8] sm:$0xff]
        %v416 = vld [vmem:[%s181 + $0x700] sm:$0xff]
        %v417 = vld [vmem:[%s181 + $0x708] sm:$0xff]
        %v418 = vld [vmem:[%s181 + $0x710] sm:$0xff]
        %v419 = vld [vmem:[%s181 + $0x718] sm:$0xff]
        %v420 = vld [vmem:[%s181 + $0x720] sm:$0xff]
        %v421 = vld [vmem:[%s181 + $0x728] sm:$0xff]
        %v422 = vld [vmem:[%s181 + $0x730] sm:$0xff]
        %v423 = vld [vmem:[%s181 + $0x738] sm:$0xff]
        %v424 = vld [vmem:[%s181 + $0x740] sm:$0xff]
        %v425 = vld [vmem:[%s181 + $0x748] sm:$0xff]
        %v426 = vld [vmem:[%s181 + $0x750] sm:$0xff]
        %v427 = vld [vmem:[%s181 + $0x758] sm:$0xff]
        %v428 = vld [vmem:[%s181 + $0x760] sm:$0xff]
        %v429 = vld [vmem:[%s181 + $0x768] sm:$0xff]
        %v430 = vld [vmem:[%s181 + $0x770] sm:$0xff]
        %v431 = vld [vmem:[%s181 + $0x778] sm:$0xff]
        %v432 = vld [vmem:[%s181 + $0x780] sm:$0xff]
        %v433 = vld [vmem:[%s181 + $0x788] sm:$0xff]
        %v434 = vld [vmem:[%s181 + $0x790] sm:$0xff]
        %v435 = vld [vmem:[%s181 + $0x798] sm:$0xff]
        %v436 = vld [vmem:[%s181 + $0x7a0] sm:$0xff]
        %v437 = vld [vmem:[%s181 + $0x7a8] sm:$0xff]
        %v438 = vld [vmem:[%s181 + $0x7b0] sm:$0xff]
        %v439 = vld [vmem:[%s181 + $0x7b8] sm:$0xff]
        %v440 = vld [vmem:[%s181 + $0x7c0] sm:$0xff]
        %v441 = vld [vmem:[%s181 + $0x7c8] sm:$0xff]
        %v442 = vld [vmem:[%s181 + $0x7d0] sm:$0xff]
        %v443 = vld [vmem:[%s181 + $0x7d8] sm:$0xff]
        %v444 = vld [vmem:[%s181 + $0x7e0] sm:$0xff]
        %v445 = vld [vmem:[%s181 + $0x7e8] sm:$0xff]
        %v446 = vld [vmem:[%s181 + $0x7f0] sm:$0xff]
        %v447 = vld [vmem:[%s181 + $0x7f8] sm:$0xff]
        %v448 = vld [vmem:[%s1] sm:$0xff]
        %v449 = vld [vmem:[%s1 + $0x8] sm:$0x3]
        %v450 = vld [vmem:[%s2] sm:$0x1]
        %v452 = vlaneseq
        %v453 = vshrl.u32 %v452, 7
        %v454 = vsub.s32 0, %v453
        %v455 = vrot.slane %v450, %v454
        %vm457 = vcmask 80896
        %v459 = vsel %vm457, %v192, 0
        %v462 = vsel %vm457, %v193, 0
        %v465 = vsel %vm457, %v194, 0
        %v468 = vsel %vm457, %v195, 0
        %v471 = vsel %vm457, %v196, 0
        %v474 = vsel %vm457, %v197, 0
        %v477 = vsel %vm457, %v198, 0
        %v480 = vsel %vm457, %v199, 0
        %v483 = vsel %vm457, %v200, 0
        %v486 = vsel %vm457, %v201, 0
        %v489 = vsel %vm457, %v202, 0
        %v492 = vsel %vm457, %v203, 0
        %v495 = vsel %vm457, %v204, 0
        %v498 = vsel %vm457, %v205, 0
        %v501 = vsel %vm457, %v206, 0
        %v504 = vsel %vm457, %v207, 0
        %v507 = vsel %vm457, %v208, 0
        %v510 = vsel %vm457, %v209, 0
        %v513 = vsel %vm457, %v210, 0
        %v516 = vsel %vm457, %v211, 0
        %v519 = vsel %vm457, %v212, 0
        %v522 = vsel %vm457, %v213, 0
        %v525 = vsel %vm457, %v214, 0
        %v528 = vsel %vm457, %v215, 0
        %v531 = vsel %vm457, %v216, 0
        %v534 = vsel %vm457, %v217, 0
        %v537 = vsel %vm457, %v218, 0
        %v540 = vsel %vm457, %v219, 0
        %v543 = vsel %vm457, %v220, 0
        %v546 = vsel %vm457, %v221, 0
        %v549 = vsel %vm457, %v222, 0
        %v552 = vsel %vm457, %v223, 0
        %v555 = vsel %vm457, %v224, 0
        %v558 = vsel %vm457, %v225, 0
        %v561 = vsel %vm457, %v226, 0
        %v564 = vsel %vm457, %v227, 0
        %v567 = vsel %vm457, %v228, 0
        %v570 = vsel %vm457, %v229, 0
        %v573 = vsel %vm457, %v230, 0
        %v576 = vsel %vm457, %v231, 0
        %v579 = vsel %vm457, %v232, 0
        %v582 = vsel %vm457, %v233, 0
        %v585 = vsel %vm457, %v234, 0
        %v588 = vsel %vm457, %v235, 0
        %v591 = vsel %vm457, %v236, 0
        %v594 = vsel %vm457, %v237, 0
        %v597 = vsel %vm457, %v238, 0
        %v600 = vsel %vm457, %v239, 0
        %v603 = vsel %vm457, %v240, 0
        %v606 = vsel %vm457, %v241, 0
        %v609 = vsel %vm457, %v242, 0
        %v612 = vsel %vm457, %v243, 0
        %v615 = vsel %vm457, %v244, 0
        %v618 = vsel %vm457, %v245, 0
        %v621 = vsel %vm457, %v246, 0
        %v624 = vsel %vm457, %v247, 0
        %v627 = vsel %vm457, %v248, 0
        %v630 = vsel %vm457, %v249, 0
        %v633 = vsel %vm457, %v250, 0
        %v636 = vsel %vm457, %v251, 0
        %v639 = vsel %vm457, %v252, 0
        %v642 = vsel %vm457, %v253, 0
        %v645 = vsel %vm457, %v254, 0
        %v648 = vsel %vm457, %v255, 0
        %v651 = vsel %vm457, %v256, 0
        %v654 = vsel %vm457, %v257, 0
        %v657 = vsel %vm457, %v258, 0
        %v660 = vsel %vm457, %v259, 0
        %v663 = vsel %vm457, %v260, 0
        %v666 = vsel %vm457, %v261, 0
        %v669 = vsel %vm457, %v262, 0
        %v672 = vsel %vm457, %v263, 0
        %v675 = vsel %vm457, %v264, 0
        %v678 = vsel %vm457, %v265, 0
        %v681 = vsel %vm457, %v266, 0
        %v684 = vsel %vm457, %v267, 0
        %v687 = vsel %vm457, %v268, 0
        %v690 = vsel %vm457, %v269, 0
        %v693 = vsel %vm457, %v270, 0
        %v696 = vsel %vm457, %v271, 0
        %v699 = vsel %vm457, %v272, 0
        %v702 = vsel %vm457, %v273, 0
        %v705 = vsel %vm457, %v274, 0
        %v708 = vsel %vm457, %v275, 0
        %v711 = vsel %vm457, %v276, 0
        %v714 = vsel %vm457, %v277, 0
        %v717 = vsel %vm457, %v278, 0
        %v720 = vsel %vm457, %v279, 0
        %v723 = vsel %vm457, %v280, 0
        %v726 = vsel %vm457, %v281, 0
        %v729 = vsel %vm457, %v282, 0
        %v732 = vsel %vm457, %v283, 0
        %v735 = vsel %vm457, %v284, 0
        %v738 = vsel %vm457, %v285, 0
        %v741 = vsel %vm457, %v286, 0
        %v744 = vsel %vm457, %v287, 0
        %v747 = vsel %vm457, %v288, 0
        %v750 = vsel %vm457, %v289, 0
        %v753 = vsel %vm457, %v290, 0
        %v756 = vsel %vm457, %v291, 0
        %v759 = vsel %vm457, %v292, 0
        %v762 = vsel %vm457, %v293, 0
        %v765 = vsel %vm457, %v294, 0
        %v768 = vsel %vm457, %v295, 0
        %v771 = vsel %vm457, %v296, 0
        %v774 = vsel %vm457, %v297, 0
        %v777 = vsel %vm457, %v298, 0
        %v780 = vsel %vm457, %v299, 0
        %v783 = vsel %vm457, %v300, 0
        %v786 = vsel %vm457, %v301, 0
        %v789 = vsel %vm457, %v302, 0
        %v792 = vsel %vm457, %v303, 0
        %v795 = vsel %vm457, %v304, 0
        %v798 = vsel %vm457, %v305, 0
        %v801 = vsel %vm457, %v306, 0
        %v804 = vsel %vm457, %v307, 0
        %v807 = vsel %vm457, %v308, 0
        %v810 = vsel %vm457, %v309, 0
        %v813 = vsel %vm457, %v310, 0
        %v816 = vsel %vm457, %v311, 0
        %v819 = vsel %vm457, %v312, 0
        %v822 = vsel %vm457, %v313, 0
        %v825 = vsel %vm457, %v314, 0
        %v828 = vsel %vm457, %v315, 0
        %v831 = vsel %vm457, %v316, 0
        %v834 = vsel %vm457, %v317, 0
        %v837 = vsel %vm457, %v318, 0
        %v840 = vsel %vm457, %v319, 0
        %v843 = vsel %vm457, %v320, 0
        %v846 = vsel %vm457, %v321, 0
        %v849 = vsel %vm457, %v322, 0
        %v852 = vsel %vm457, %v323, 0
        %v855 = vsel %vm457, %v324, 0
        %v858 = vsel %vm457, %v325, 0
        %v861 = vsel %vm457, %v326, 0
        %v864 = vsel %vm457, %v327, 0
        %v867 = vsel %vm457, %v328, 0
        %v870 = vsel %vm457, %v329, 0
        %v873 = vsel %vm457, %v330, 0
        %v876 = vsel %vm457, %v331, 0
        %v879 = vsel %vm457, %v332, 0
        %v882 = vsel %vm457, %v333, 0
        %v885 = vsel %vm457, %v334, 0
        %v888 = vsel %vm457, %v335, 0
        %v891 = vsel %vm457, %v336, 0
        %v894 = vsel %vm457, %v337, 0
        %v897 = vsel %vm457, %v338, 0
        %v900 = vsel %vm457, %v339, 0
        %v903 = vsel %vm457, %v340, 0
        %v906 = vsel %vm457, %v341, 0
        %v909 = vsel %vm457, %v342, 0
        %v912 = vsel %vm457, %v343, 0
        %v915 = vsel %vm457, %v344, 0
        %v918 = vsel %vm457, %v345, 0
        %v921 = vsel %vm457, %v346, 0
        %v924 = vsel %vm457, %v347, 0
        %v927 = vsel %vm457, %v348, 0
        %v930 = vsel %vm457, %v349, 0
        %v933 = vsel %vm457, %v350, 0
        %v936 = vsel %vm457, %v351, 0
        %v939 = vsel %vm457, %v352, 0
        %v942 = vsel %vm457, %v353, 0
        %v945 = vsel %vm457, %v354, 0
        %v948 = vsel %vm457, %v355, 0
        %v951 = vsel %vm457, %v356, 0
        %v954 = vsel %vm457, %v357, 0
        %v957 = vsel %vm457, %v358, 0
        %v960 = vsel %vm457, %v359, 0
        %v963 = vsel %vm457, %v360, 0
        %v966 = vsel %vm457, %v361, 0
        %v969 = vsel %vm457, %v362, 0
        %v972 = vsel %vm457, %v363, 0
        %v975 = vsel %vm457, %v364, 0
        %v978 = vsel %vm457, %v365, 0
        %v981 = vsel %vm457, %v366, 0
        %v984 = vsel %vm457, %v367, 0
        %v987 = vsel %vm457, %v368, 0
        %v990 = vsel %vm457, %v369, 0
        %v993 = vsel %vm457, %v370, 0
        %v996 = vsel %vm457, %v371, 0
        %v999 = vsel %vm457, %v372, 0
        %v1002 = vsel %vm457, %v373, 0
        %v1005 = vsel %vm457, %v374, 0
        %v1008 = vsel %vm457, %v375, 0
        %v1011 = vsel %vm457, %v376, 0
        %v1014 = vsel %vm457, %v377, 0
        %v1017 = vsel %vm457, %v378, 0
        %v1020 = vsel %vm457, %v379, 0
        %v1023 = vsel %vm457, %v380, 0
        %v1026 = vsel %vm457, %v381, 0
        %v1029 = vsel %vm457, %v382, 0
        %v1032 = vsel %vm457, %v383, 0
        %v1035 = vsel %vm457, %v384, 0
        %v1038 = vsel %vm457, %v385, 0
        %v1041 = vsel %vm457, %v386, 0
        %v1044 = vsel %vm457, %v387, 0
        %v1047 = vsel %vm457, %v388, 0
        %v1050 = vsel %vm457, %v389, 0
        %v1053 = vsel %vm457, %v390, 0
        %v1056 = vsel %vm457, %v391, 0
        %v1059 = vsel %vm457, %v392, 0
        %v1062 = vsel %vm457, %v393, 0
        %v1065 = vsel %vm457, %v394, 0
        %v1068 = vsel %vm457, %v395, 0
        %v1071 = vsel %vm457, %v396, 0
        %v1074 = vsel %vm457, %v397, 0
        %v1077 = vsel %vm457, %v398, 0
        %v1080 = vsel %vm457, %v399, 0
        %v1083 = vsel %vm457, %v400, 0
        %v1086 = vsel %vm457, %v401, 0
        %v1089 = vsel %vm457, %v402, 0
        %v1092 = vsel %vm457, %v403, 0
        %v1095 = vsel %vm457, %v404, 0
        %v1098 = vsel %vm457, %v405, 0
        %v1101 = vsel %vm457, %v406, 0
        %v1104 = vsel %vm457, %v407, 0
        %v1107 = vsel %vm457, %v408, 0
        %v1110 = vsel %vm457, %v409, 0
        %v1113 = vsel %vm457, %v410, 0
        %v1116 = vsel %vm457, %v411, 0
        %v1119 = vsel %vm457, %v412, 0
        %v1122 = vsel %vm457, %v413, 0
        %v1125 = vsel %vm457, %v414, 0
        %v1128 = vsel %vm457, %v415, 0
        %v1131 = vsel %vm457, %v416, 0
        %v1134 = vsel %vm457, %v417, 0
        %v1137 = vsel %vm457, %v418, 0
        %v1140 = vsel %vm457, %v419, 0
        %v1143 = vsel %vm457, %v420, 0
        %v1146 = vsel %vm457, %v421, 0
        %v1149 = vsel %vm457, %v422, 0
        %v1152 = vsel %vm457, %v423, 0
        %v1155 = vsel %vm457, %v424, 0
        %v1158 = vsel %vm457, %v425, 0
        %v1161 = vsel %vm457, %v426, 0
        %v1164 = vsel %vm457, %v427, 0
        %v1167 = vsel %vm457, %v428, 0
        %v1170 = vsel %vm457, %v429, 0
        %v1173 = vsel %vm457, %v430, 0
        %v1176 = vsel %vm457, %v431, 0
        %v1179 = vsel %vm457, %v432, 0
        %v1182 = vsel %vm457, %v433, 0
        %v1185 = vsel %vm457, %v434, 0
        %v1188 = vsel %vm457, %v435, 0
        %v1191 = vsel %vm457, %v436, 0
        %v1194 = vsel %vm457, %v437, 0
        %v1197 = vsel %vm457, %v438, 0
        %v1200 = vsel %vm457, %v439, 0
        %v1203 = vsel %vm457, %v440, 0
        %v1206 = vsel %vm457, %v441, 0
        %v1209 = vsel %vm457, %v442, 0
        %v1212 = vsel %vm457, %v443, 0
        %v1215 = vsel %vm457, %v444, 0
        %v1218 = vsel %vm457, %v445, 0
        %v1221 = vsel %vm457, %v446, 0
        %v1224 = vsel %vm457, %v447, 0
        %vm1226 = vcmask 1041408
        %v1228 = vsel %vm1226, %v449, 0
        %1230 = vmatprep.subr.mxu0 0.0
        %1231 = vmatpush1.msra.mxu0 %v448
        %1232 = vmatprep.subr.mxu0 0.0
        %1233 = vmatpush1.msra.mxu0 %v1228
        %1234 = vmatprep.subr.mxu0 0.0
        %1235 = vmatpush1.msra.mxu0 0.0
        %1236 = vmatprep.subr.mxu0 0.0
        %1237 = vmatpush1.msra.mxu0 0.0
        %1238 = vmatprep.subr.mxu0 0.0
        %1239 = vmatpush1.msra.mxu0 0.0
        %1240 = vmatprep.subr.mxu0 0.0
        %1241 = vmatpush1.msra.mxu0 0.0
        %1242 = vmatprep.subr.mxu0 0.0
        %1243 = vmatpush1.msra.mxu0 0.0
        %1244 = vmatprep.subr.mxu0 0.0
        %1245 = vmatpush1.msra.mxu0 0.0
        %1246 = vmatprep.subr.mxu0 0.0
        %1247 = vmatpush1.msra.mxu0 0.0
        %1248 = vmatprep.subr.mxu0 0.0
        %1249 = vmatpush1.msra.mxu0 0.0
        %1250 = vmatprep.subr.mxu0 0.0
        %1251 = vmatpush1.msra.mxu0 0.0
        %1252 = vmatprep.subr.mxu0 0.0
        %1253 = vmatpush1.msra.mxu0 0.0
        %1254 = vmatprep.subr.mxu0 0.0
        %1255 = vmatpush1.msra.mxu0 0.0
        %1256 = vmatprep.subr.mxu0 0.0
        %1257 = vmatpush1.msra.mxu0 0.0
        %1258 = vmatprep.subr.mxu0 0.0
        %1259 = vmatpush1.msra.mxu0 0.0
        %1260 = vmatprep.subr.mxu0 0.0
        %1261 = vmatpush1.msra.mxu0 0.0
        %1262 = vmatprep.subr.mxu0 0.0
        %1263 = vmatpush1.msra.mxu0 0.0
        %1264 = vmatprep.subr.mxu0 0.0
        %1265 = vmatpush1.msra.mxu0 0.0
        %1266 = vmatprep.subr.mxu0 0.0
        %1267 = vmatpush1.msra.mxu0 0.0
        %1268 = vmatprep.subr.mxu0 0.0
        %1269 = vmatpush1.msra.mxu0 0.0
        %1270 = vmatprep.subr.mxu0 0.0
        %1271 = vmatpush1.msra.mxu0 0.0
        %1272 = vmatprep.subr.mxu0 0.0
        %1273 = vmatpush1.msra.mxu0 0.0
        %1274 = vmatprep.subr.mxu0 0.0
        %1275 = vmatpush1.msra.mxu0 0.0
        %1276 = vmatprep.subr.mxu0 0.0
        %1277 = vmatpush1.msra.mxu0 0.0
        %1278 = vmatprep.subr.mxu0 0.0
        %1279 = vmatpush1.msra.mxu0 0.0
        %1280 = vmatprep.subr.mxu0 0.0
        %1281 = vmatpush1.msra.mxu0 0.0
        %1282 = vmatprep.subr.mxu0 0.0
        %1283 = vmatpush1.msra.mxu0 0.0
        %1284 = vmatprep.subr.mxu0 0.0
        %1285 = vmatpush1.msra.mxu0 0.0
        %1286 = vmatprep.subr.mxu0 0.0
        %1287 = vmatpush1.msra.mxu0 0.0
        %1288 = vmatprep.subr.mxu0 0.0
        %1289 = vmatpush1.msra.mxu0 0.0
        %1290 = vmatprep.subr.mxu0 0.0
        %1291 = vmatpush1.msra.mxu0 0.0
        %1292 = vmatprep.subr.mxu0 0.0
        %1293 = vmatpush1.msra.mxu0 0.0
        %1294 = vmatprep.mubr.f32.mxu0 0.0
        %1295 = vmatmul.mubr.f32.gmra.mrb[0].mxu0 %v459
        %v1296 = vpop.f32.mrb[0].mxu0
        %v1297 = vadd.f32 %v455, %v1296
        %v1298 = vpop.f32.mrb[0].mxu0
        %1299 = vmatprep.mubr.f32.mxu0 0.0
        %1300 = vmatmul.mubr.f32.gmra.mrb[0].mxu0 %v462
        %v1301 = vpop.f32.mrb[0].mxu0
        %v1302 = vadd.f32 %v455, %v1301
        %v1303 = vpop.f32.mrb[0].mxu0
        %1304 = vmatprep.mubr.f32.mxu0 0.0
        %1305 = vmatmul.mubr.f32.gmra.mrb[0].mxu0 %v465
        %v1306 = vpop.f32.mrb[0].mxu0
        %v1307 = vadd.f32 %v455, %v1306
        %v1308 = vpop.f32.mrb[0].mxu0
        %1309 = vmatprep.mubr.f32.mxu0 0.0
        %1310 = vmatmul.mubr.f32.gmra.mrb[0].mxu0 %v468
        %v1311 = vpop.f32.mrb[0].mxu0
        %v1312 = vadd.f32 %v455, %v1311
        %v1313 = vpop.f32.mrb[0].mxu0
        %1314 = vmatprep.mubr.f32.mxu0 0.0
        %1315 = vmatmul.mubr.f32.gmra.mrb[0].mxu0 %v471
        %v1316 = vpop.f32.mrb[0].mxu0
        %v1317 = vadd.f32 %v455, %v1316
        %v1318 = vpop.f32.mrb[0].mxu0
        %1319 = vmatprep.mubr.f32.mxu0 0.0
        %1320 = vmatmul.mubr.f32.gmra.mrb[0].mxu0 %v474
        %v1321 = vpop.f32.mrb[0].mxu0
        %v1322 = vadd.f32 %v455, %v1321
        %v1323 = vpop.f32.mrb[0].mxu0
        %1324 = vmatprep.mubr.f32.mxu0 0.0
        %1325 = vmatmul.mubr.f32.gmra.mrb[0].mxu0 %v477
        %v1326 = vpop.f32.mrb[0].mxu0
        %v1327 = vadd.f32 %v455, %v1326
        %v1328 = vpop.f32.mrb[0].mxu0
        %1329 = vmatprep.mubr.f32.mxu0 0.0
        %1330 = vmatmul.mubr.f32.gmra.mrb[0].mxu0 %v480
        %v1331 = vpop.f32.mrb[0].mxu0
        %v1332 = vadd.f32 %v455, %v1331
        %v1333 = vpop.f32.mrb[0].mxu0
        %1334 = vmatprep.mubr.f32.mxu0 0.0
        %1335 = vmatmul.mubr.f32.gmra.mrb[0].mxu0 %v483
        %v1336 = vpop.f32.mrb[0].mxu0
        %v1337 = vadd.f32 %v455, %v1336
        %v1338 = vpop.f32.mrb[0].mxu0
        %1339 = vmatprep.mubr.f32.mxu0 0.0
        %1340 = vmatmul.mubr.f32.gmra.mrb[0].mxu0 %v486
        %v1341 = vpop.f32.mrb[0].mxu0
        %v1342 = vadd.f32 %v455, %v1341
        %v1343 = vpop.f32.mrb[0].mxu0
        %1344 = vmatprep.mubr.f32.mxu0 0.0
        %1345 = vmatmul.mubr.f32.gmra.mrb[0].mxu0 %v489
        %v1346 = vpop.f32.mrb[0].mxu0
        %v1347 = vadd.f32 %v455, %v1346
        %v1348 = vpop.f32.mrb[0].mxu0
        %1349 = vmatprep.mubr.f32.mxu0 0.0
        %1350 = vmatmul.mubr.f32.gmra.mrb[0].mxu0 %v492
        %v1351 = vpop.f32.mrb[0].mxu0
        %v1352 = vadd.f32 %v455, %v1351
        %v1353 = vpop.f32.mrb[0].mxu0
        %1354 = vmatprep.mubr.f32.mxu0 0.0
        %1355 = vmatmul.mubr.f32.gmra.mrb[0].mxu0 %v495
        %v1356 = vpop.f32.mrb[0].mxu0
        %v1357 = vadd.f32 %v455, %v1356
        %v1358 = vpop.f32.mrb[0].mxu0
        %1359 = vmatprep.mubr.f32.mxu0 0.0
        %1360 = vmatmul.mubr.f32.gmra.mrb[0].mxu0 %v498
        %v1361 = vpop.f32.mrb[0].mxu0
        %v1362 = vadd.f32 %v455, %v1361
        %v1363 = vpop.f32.mrb[0].mxu0
        %1364 = vmatprep.mubr.f32.mxu0 0.0
        %1365 = vmatmul.mubr.f32.gmra.mrb[0].mxu0 %v501
        %v1366 = vpop.f32.mrb[0].mxu0
        %v1367 = vadd.f32 %v455, %v1366
        %v1368 = vpop.f32.mrb[0].mxu0
        %1369 = vmatprep.mubr.f32.mxu0 0.0
        %1370 = vmatmul.mubr.f32.gmra.mrb[0].mxu0 %v504
        %v1371 = vpop.f32.mrb[0].mxu0
        %v1372 = vadd.f32 %v455, %v1371
        %v1373 = vpop.f32.mrb[0].mxu0
        %1374 = vmatprep.mubr.f32.mxu0 0.0
        %1375 = vmatmul.mubr.f32.gmra.mrb[0].mxu0 %v507
        %v1376 = vpop.f32.mrb[0].mxu0
        %v1377 = vadd.f32 %v455, %v1376
        %v1378 = vpop.f32.mrb[0].mxu0
        %1379 = vmatprep.mubr.f32.mxu0 0.0
        %1380 = vmatmul.mubr.f32.gmra.mrb[0].mxu0 %v510
        %v1381 = vpop.f32.mrb[0].mxu0
        %v1382 = vadd.f32 %v455, %v1381
        %v1383 = vpop.f32.mrb[0].mxu0
        %1384 = vmatprep.mubr.f32.mxu0 0.0
        %1385 = vmatmul.mubr.f32.gmra.mrb[0].mxu0 %v513
        %v1386 = vpop.f32.mrb[0].mxu0
        %v1387 = vadd.f32 %v455, %v1386
        %v1388 = vpop.f32.mrb[0].mxu0
        %1389 = vmatprep.mubr.f32.mxu0 0.0
        %1390 = vmatmul.mubr.f32.gmra.mrb[0].mxu0 %v516
        %v1391 = vpop.f32.mrb[0].mxu0
        %v1392 = vadd.f32 %v455, %v1391
        %v1393 = vpop.f32.mrb[0].mxu0
        %1394 = vmatprep.mubr.f32.mxu0 0.0
        %1395 = vmatmul.mubr.f32.gmra.mrb[0].mxu0 %v519
        %v1396 = vpop.f32.mrb[0].mxu0
        %v1397 = vadd.f32 %v455, %v1396
        %v1398 = vpop.f32.mrb[0].mxu0
        %1399 = vmatprep.mubr.f32.mxu0 0.0
        %1400 = vmatmul.mubr.f32.gmra.mrb[0].mxu0 %v522
        %v1401 = vpop.f32.mrb[0].mxu0
        %v1402 = vadd.f32 %v455, %v1401
        %v1403 = vpop.f32.mrb[0].mxu0
        %1404 = vmatprep.mubr.f32.mxu0 0.0
        %1405 = vmatmul.mubr.f32.gmra.mrb[0].mxu0 %v525
        %v1406 = vpop.f32.mrb[0].mxu0
        %v1407 = vadd.f32 %v455, %v1406
        %v1408 = vpop.f32.mrb[0].mxu0
        %1409 = vmatprep.mubr.f32.mxu0 0.0
        %1410 = vmatmul.mubr.f32.gmra.mrb[0].mxu0 %v528
        %v1411 = vpop.f32.mrb[0].mxu0
        %v1412 = vadd.f32 %v455, %v1411
        %v1413 = vpop.f32.mrb[0].mxu0
        %1414 = vmatprep.mubr.f32.mxu0 0.0
        %1415 = vmatmul.mubr.f32.gmra.mrb[0].mxu0 %v531
        %v1416 = vpop.f32.mrb[0].mxu0
        %v1417 = vadd.f32 %v455, %v1416
        %v1418 = vpop.f32.mrb[0].mxu0
        %1419 = vmatprep.mubr.f32.mxu0 0.0
        %1420 = vmatmul.mubr.f32.gmra.mrb[0].mxu0 %v534
        %v1421 = vpop.f32.mrb[0].mxu0
        %v1422 = vadd.f32 %v455, %v1421
        %v1423 = vpop.f32.mrb[0].mxu0
        %1424 = vmatprep.mubr.f32.mxu0 0.0
        %1425 = vmatmul.mubr.f32.gmra.mrb[0].mxu0 %v537
        %v1426 = vpop.f32.mrb[0].mxu0
        %v1427 = vadd.f32 %v455, %v1426
        %v1428 = vpop.f32.mrb[0].mxu0
        %1429 = vmatprep.mubr.f32.mxu0 0.0
        %1430 = vmatmul.mubr.f32.gmra.mrb[0].mxu0 %v540
        %v1431 = vpop.f32.mrb[0].mxu0
        %v1432 = vadd.f32 %v455, %v1431
        %v1433 = vpop.f32.mrb[0].mxu0
        %1434 = vmatprep.mubr.f32.mxu0 0.0
        %1435 = vmatmul.mubr.f32.gmra.mrb[0].mxu0 %v543
        %v1436 = vpop.f32.mrb[0].mxu0
        %v1437 = vadd.f32 %v455, %v1436
        %v1438 = vpop.f32.mrb[0].mxu0
        %1439 = vmatprep.mubr.f32.mxu0 0.0
        %1440 = vmatmul.mubr.f32.gmra.mrb[0].mxu0 %v546
        %v1441 = vpop.f32.mrb[0].mxu0
        %v1442 = vadd.f32 %v455, %v1441
        %v1443 = vpop.f32.mrb[0].mxu0
        %1444 = vmatprep.mubr.f32.mxu0 0.0
        %1445 = vmatmul.mubr.f32.gmra.mrb[0].mxu0 %v549
        %v1446 = vpop.f32.mrb[0].mxu0
        %v1447 = vadd.f32 %v455, %v1446
        %v1448 = vpop.f32.mrb[0].mxu0
        %1449 = vmatprep.mubr.f32.mxu0 0.0
        %1450 = vmatmul.mubr.f32.gmra.mrb[0].mxu0 %v552
        %v1451 = vpop.f32.mrb[0].mxu0
        %v1452 = vadd.f32 %v455, %v1451
        %v1453 = vpop.f32.mrb[0].mxu0
        %1454 = vmatprep.mubr.f32.mxu0 0.0
        %1455 = vmatmul.mubr.f32.gmra.mrb[0].mxu0 %v555
        %v1456 = vpop.f32.mrb[0].mxu0
        %v1457 = vadd.f32 %v455, %v1456
        %v1458 = vpop.f32.mrb[0].mxu0
        %1459 = vmatprep.mubr.f32.mxu0 0.0
        %1460 = vmatmul.mubr.f32.gmra.mrb[0].mxu0 %v558
        %v1461 = vpop.f32.mrb[0].mxu0
        %v1462 = vadd.f32 %v455, %v1461
        %v1463 = vpop.f32.mrb[0].mxu0
        %1464 = vmatprep.mubr.f32.mxu0 0.0
        %1465 = vmatmul.mubr.f32.gmra.mrb[0].mxu0 %v561
        %v1466 = vpop.f32.mrb[0].mxu0
        %v1467 = vadd.f32 %v455, %v1466
        %v1468 = vpop.f32.mrb[0].mxu0
        %1469 = vmatprep.mubr.f32.mxu0 0.0
        %1470 = vmatmul.mubr.f32.gmra.mrb[0].mxu0 %v564
        %v1471 = vpop.f32.mrb[0].mxu0
        %v1472 = vadd.f32 %v455, %v1471
        %v1473 = vpop.f32.mrb[0].mxu0
        %1474 = vmatprep.mubr.f32.mxu0 0.0
        %1475 = vmatmul.mubr.f32.gmra.mrb[0].mxu0 %v567
        %v1476 = vpop.f32.mrb[0].mxu0
        %v1477 = vadd.f32 %v455, %v1476
        %v1478 = vpop.f32.mrb[0].mxu0
        %1479 = vmatprep.mubr.f32.mxu0 0.0
        %1480 = vmatmul.mubr.f32.gmra.mrb[0].mxu0 %v570
        %v1481 = vpop.f32.mrb[0].mxu0
        %v1482 = vadd.f32 %v455, %v1481
        %v1483 = vpop.f32.mrb[0].mxu0
        %1484 = vmatprep.mubr.f32.mxu0 0.0
        %1485 = vmatmul.mubr.f32.gmra.mrb[0].mxu0 %v573
        %v1486 = vpop.f32.mrb[0].mxu0
        %v1487 = vadd.f32 %v455, %v1486
        %v1488 = vpop.f32.mrb[0].mxu0
        %1489 = vmatprep.mubr.f32.mxu0 0.0
        %1490 = vmatmul.mubr.f32.gmra.mrb[0].mxu0 %v576
        %v1491 = vpop.f32.mrb[0].mxu0
        %v1492 = vadd.f32 %v455, %v1491
        %v1493 = vpop.f32.mrb[0].mxu0
        %1494 = vmatprep.mubr.f32.mxu0 0.0
        %1495 = vmatmul.mubr.f32.gmra.mrb[0].mxu0 %v579
        %v1496 = vpop.f32.mrb[0].mxu0
        %v1497 = vadd.f32 %v455, %v1496
        %v1498 = vpop.f32.mrb[0].mxu0
        %1499 = vmatprep.mubr.f32.mxu0 0.0
        %1500 = vmatmul.mubr.f32.gmra.mrb[0].mxu0 %v582
        %v1501 = vpop.f32.mrb[0].mxu0
        %v1502 = vadd.f32 %v455, %v1501
        %v1503 = vpop.f32.mrb[0].mxu0
        %1504 = vmatprep.mubr.f32.mxu0 0.0
        %1505 = vmatmul.mubr.f32.gmra.mrb[0].mxu0 %v585
        %v1506 = vpop.f32.mrb[0].mxu0
        %v1507 = vadd.f32 %v455, %v1506
        %v1508 = vpop.f32.mrb[0].mxu0
        %1509 = vmatprep.mubr.f32.mxu0 0.0
        %1510 = vmatmul.mubr.f32.gmra.mrb[0].mxu0 %v588
        %v1511 = vpop.f32.mrb[0].mxu0
        %v1512 = vadd.f32 %v455, %v1511
        %v1513 = vpop.f32.mrb[0].mxu0
        %1514 = vmatprep.mubr.f32.mxu0 0.0
        %1515 = vmatmul.mubr.f32.gmra.mrb[0].mxu0 %v591
        %v1516 = vpop.f32.mrb[0].mxu0
        %v1517 = vadd.f32 %v455, %v1516
        %v1518 = vpop.f32.mrb[0].mxu0
        %1519 = vmatprep.mubr.f32.mxu0 0.0
        %1520 = vmatmul.mubr.f32.gmra.mrb[0].mxu0 %v594
        %v1521 = vpop.f32.mrb[0].mxu0
        %v1522 = vadd.f32 %v455, %v1521
        %v1523 = vpop.f32.mrb[0].mxu0
        %1524 = vmatprep.mubr.f32.mxu0 0.0
        %1525 = vmatmul.mubr.f32.gmra.mrb[0].mxu0 %v597
        %v1526 = vpop.f32.mrb[0].mxu0
        %v1527 = vadd.f32 %v455, %v1526
        %v1528 = vpop.f32.mrb[0].mxu0
        %1529 = vmatprep.mubr.f32.mxu0 0.0
        %1530 = vmatmul.mubr.f32.gmra.mrb[0].mxu0 %v600
        %v1531 = vpop.f32.mrb[0].mxu0
        %v1532 = vadd.f32 %v455, %v1531
        %v1533 = vpop.f32.mrb[0].mxu0
        %1534 = vmatprep.mubr.f32.mxu0 0.0
        %1535 = vmatmul.mubr.f32.gmra.mrb[0].mxu0 %v603
        %v1536 = vpop.f32.mrb[0].mxu0
        %v1537 = vadd.f32 %v455, %v1536
        %v1538 = vpop.f32.mrb[0].mxu0
        %1539 = vmatprep.mubr.f32.mxu0 0.0
        %1540 = vmatmul.mubr.f32.gmra.mrb[0].mxu0 %v606
        %v1541 = vpop.f32.mrb[0].mxu0
        %v1542 = vadd.f32 %v455, %v1541
        %v1543 = vpop.f32.mrb[0].mxu0
        %1544 = vmatprep.mubr.f32.mxu0 0.0
        %1545 = vmatmul.mubr.f32.gmra.mrb[0].mxu0 %v609
        %v1546 = vpop.f32.mrb[0].mxu0
        %v1547 = vadd.f32 %v455, %v1546
        %v1548 = vpop.f32.mrb[0].mxu0
        %1549 = vmatprep.mubr.f32.mxu0 0.0
        %1550 = vmatmul.mubr.f32.gmra.mrb[0].mxu0 %v612
        %v1551 = vpop.f32.mrb[0].mxu0
        %v1552 = vadd.f32 %v455, %v1551
        %v1553 = vpop.f32.mrb[0].mxu0
        %1554 = vmatprep.mubr.f32.mxu0 0.0
        %1555 = vmatmul.mubr.f32.gmra.mrb[0].mxu0 %v615
        %v1556 = vpop.f32.mrb[0].mxu0
        %v1557 = vadd.f32 %v455, %v1556
        %v1558 = vpop.f32.mrb[0].mxu0
        %1559 = vmatprep.mubr.f32.mxu0 0.0
        %1560 = vmatmul.mubr.f32.gmra.mrb[0].mxu0 %v618
        %v1561 = vpop.f32.mrb[0].mxu0
        %v1562 = vadd.f32 %v455, %v1561
        %v1563 = vpop.f32.mrb[0].mxu0
        %1564 = vmatprep.mubr.f32.mxu0 0.0
        %1565 = vmatmul.mubr.f32.gmra.mrb[0].mxu0 %v621
        %v1566 = vpop.f32.mrb[0].mxu0
        %v1567 = vadd.f32 %v455, %v1566
        %v1568 = vpop.f32.mrb[0].mxu0
        %1569 = vmatprep.mubr.f32.mxu0 0.0
        %1570 = vmatmul.mubr.f32.gmra.mrb[0].mxu0 %v624
        %v1571 = vpop.f32.mrb[0].mxu0
        %v1572 = vadd.f32 %v455, %v1571
        %v1573 = vpop.f32.mrb[0].mxu0
        %1574 = vmatprep.mubr.f32.mxu0 0.0
        %1575 = vmatmul.mubr.f32.gmra.mrb[0].mxu0 %v627
        %v1576 = vpop.f32.mrb[0].mxu0
        %v1577 = vadd.f32 %v455, %v1576
        %v1578 = vpop.f32.mrb[0].mxu0
        %1579 = vmatprep.mubr.f32.mxu0 0.0
        %1580 = vmatmul.mubr.f32.gmra.mrb[0].mxu0 %v630
        %v1581 = vpop.f32.mrb[0].mxu0
        %v1582 = vadd.f32 %v455, %v1581
        %v1583 = vpop.f32.mrb[0].mxu0
        %1584 = vmatprep.mubr.f32.mxu0 0.0
        %1585 = vmatmul.mubr.f32.gmra.mrb[0].mxu0 %v633
        %v1586 = vpop.f32.mrb[0].mxu0
        %v1587 = vadd.f32 %v455, %v1586
        %v1588 = vpop.f32.mrb[0].mxu0
        %1589 = vmatprep.mubr.f32.mxu0 0.0
        %1590 = vmatmul.mubr.f32.gmra.mrb[0].mxu0 %v636
        %v1591 = vpop.f32.mrb[0].mxu0
        %v1592 = vadd.f32 %v455, %v1591
        %v1593 = vpop.f32.mrb[0].mxu0
        %1594 = vmatprep.mubr.f32.mxu0 0.0
        %1595 = vmatmul.mubr.f32.gmra.mrb[0].mxu0 %v639
        %v1596 = vpop.f32.mrb[0].mxu0
        %v1597 = vadd.f32 %v455, %v1596
        %v1598 = vpop.f32.mrb[0].mxu0
        %1599 = vmatprep.mubr.f32.mxu0 0.0
        %1600 = vmatmul.mubr.f32.gmra.mrb[0].mxu0 %v642
        %v1601 = vpop.f32.mrb[0].mxu0
        %v1602 = vadd.f32 %v455, %v1601
        %v1603 = vpop.f32.mrb[0].mxu0
        %1604 = vmatprep.mubr.f32.mxu0 0.0
        %1605 = vmatmul.mubr.f32.gmra.mrb[0].mxu0 %v645
        %v1606 = vpop.f32.mrb[0].mxu0
        %v1607 = vadd.f32 %v455, %v1606
        %v1608 = vpop.f32.mrb[0].mxu0
        %1609 = vmatprep.mubr.f32.mxu0 0.0
        %1610 = vmatmul.mubr.f32.gmra.mrb[0].mxu0 %v648
        %v1611 = vpop.f32.mrb[0].mxu0
        %v1612 = vadd.f32 %v455, %v1611
        %v1613 = vpop.f32.mrb[0].mxu0
        %1614 = vmatprep.mubr.f32.mxu0 0.0
        %1615 = vmatmul.mubr.f32.gmra.mrb[0].mxu0 %v651
        %v1616 = vpop.f32.mrb[0].mxu0
        %v1617 = vadd.f32 %v455, %v1616
        %v1618 = vpop.f32.mrb[0].mxu0
        %1619 = vmatprep.mubr.f32.mxu0 0.0
        %1620 = vmatmul.mubr.f32.gmra.mrb[0].mxu0 %v654
        %v1621 = vpop.f32.mrb[0].mxu0
        %v1622 = vadd.f32 %v455, %v1621
        %v1623 = vpop.f32.mrb[0].mxu0
        %1624 = vmatprep.mubr.f32.mxu0 0.0
        %1625 = vmatmul.mubr.f32.gmra.mrb[0].mxu0 %v657
        %v1626 = vpop.f32.mrb[0].mxu0
        %v1627 = vadd.f32 %v455, %v1626
        %v1628 = vpop.f32.mrb[0].mxu0
        %1629 = vmatprep.mubr.f32.mxu0 0.0
        %1630 = vmatmul.mubr.f32.gmra.mrb[0].mxu0 %v660
        %v1631 = vpop.f32.mrb[0].mxu0
        %v1632 = vadd.f32 %v455, %v1631
        %v1633 = vpop.f32.mrb[0].mxu0
        %1634 = vmatprep.mubr.f32.mxu0 0.0
        %1635 = vmatmul.mubr.f32.gmra.mrb[0].mxu0 %v663
        %v1636 = vpop.f32.mrb[0].mxu0
        %v1637 = vadd.f32 %v455, %v1636
        %v1638 = vpop.f32.mrb[0].mxu0
        %1639 = vmatprep.mubr.f32.mxu0 0.0
        %1640 = vmatmul.mubr.f32.gmra.mrb[0].mxu0 %v666
        %v1641 = vpop.f32.mrb[0].mxu0
        %v1642 = vadd.f32 %v455, %v1641
        %v1643 = vpop.f32.mrb[0].mxu0
        %1644 = vmatprep.mubr.f32.mxu0 0.0
        %1645 = vmatmul.mubr.f32.gmra.mrb[0].mxu0 %v669
        %v1646 = vpop.f32.mrb[0].mxu0
        %v1647 = vadd.f32 %v455, %v1646
        %v1648 = vpop.f32.mrb[0].mxu0
        %1649 = vmatprep.mubr.f32.mxu0 0.0
        %1650 = vmatmul.mubr.f32.gmra.mrb[0].mxu0 %v672
        %v1651 = vpop.f32.mrb[0].mxu0
        %v1652 = vadd.f32 %v455, %v1651
        %v1653 = vpop.f32.mrb[0].mxu0
        %1654 = vmatprep.mubr.f32.mxu0 0.0
        %1655 = vmatmul.mubr.f32.gmra.mrb[0].mxu0 %v675
        %v1656 = vpop.f32.mrb[0].mxu0
        %v1657 = vadd.f32 %v455, %v1656
        %v1658 = vpop.f32.mrb[0].mxu0
        %1659 = vmatprep.mubr.f32.mxu0 0.0
        %1660 = vmatmul.mubr.f32.gmra.mrb[0].mxu0 %v678
        %v1661 = vpop.f32.mrb[0].mxu0
        %v1662 = vadd.f32 %v455, %v1661
        %v1663 = vpop.f32.mrb[0].mxu0
        %1664 = vmatprep.mubr.f32.mxu0 0.0
        %1665 = vmatmul.mubr.f32.gmra.mrb[0].mxu0 %v681
        %v1666 = vpop.f32.mrb[0].mxu0
        %v1667 = vadd.f32 %v455, %v1666
        %v1668 = vpop.f32.mrb[0].mxu0
        %1669 = vmatprep.mubr.f32.mxu0 0.0
        %1670 = vmatmul.mubr.f32.gmra.mrb[0].mxu0 %v684
        %v1671 = vpop.f32.mrb[0].mxu0
        %v1672 = vadd.f32 %v455, %v1671
        %v1673 = vpop.f32.mrb[0].mxu0
        %1674 = vmatprep.mubr.f32.mxu0 0.0
        %1675 = vmatmul.mubr.f32.gmra.mrb[0].mxu0 %v687
        %v1676 = vpop.f32.mrb[0].mxu0
        %v1677 = vadd.f32 %v455, %v1676
        %v1678 = vpop.f32.mrb[0].mxu0
        %1679 = vmatprep.mubr.f32.mxu0 0.0
        %1680 = vmatmul.mubr.f32.gmra.mrb[0].mxu0 %v690
        %v1681 = vpop.f32.mrb[0].mxu0
        %v1682 = vadd.f32 %v455, %v1681
        %v1683 = vpop.f32.mrb[0].mxu0
        %1684 = vmatprep.mubr.f32.mxu0 0.0
        %1685 = vmatmul.mubr.f32.gmra.mrb[0].mxu0 %v693
        %v1686 = vpop.f32.mrb[0].mxu0
        %v1687 = vadd.f32 %v455, %v1686
        %v1688 = vpop.f32.mrb[0].mxu0
        %1689 = vmatprep.mubr.f32.mxu0 0.0
        %1690 = vmatmul.mubr.f32.gmra.mrb[0].mxu0 %v696
        %v1691 = vpop.f32.mrb[0].mxu0
        %v1692 = vadd.f32 %v455, %v1691
        %v1693 = vpop.f32.mrb[0].mxu0
        %1694 = vmatprep.mubr.f32.mxu0 0.0
        %1695 = vmatmul.mubr.f32.gmra.mrb[0].mxu0 %v699
        %v1696 = vpop.f32.mrb[0].mxu0
        %v1697 = vadd.f32 %v455, %v1696
        %v1698 = vpop.f32.mrb[0].mxu0
        %1699 = vmatprep.mubr.f32.mxu0 0.0
        %1700 = vmatmul.mubr.f32.gmra.mrb[0].mxu0 %v702
        %v1701 = vpop.f32.mrb[0].mxu0
        %v1702 = vadd.f32 %v455, %v1701
        %v1703 = vpop.f32.mrb[0].mxu0
        %1704 = vmatprep.mubr.f32.mxu0 0.0
        %1705 = vmatmul.mubr.f32.gmra.mrb[0].mxu0 %v705
        %v1706 = vpop.f32.mrb[0].mxu0
        %v1707 = vadd.f32 %v455, %v1706
        %v1708 = vpop.f32.mrb[0].mxu0
        %1709 = vmatprep.mubr.f32.mxu0 0.0
        %1710 = vmatmul.mubr.f32.gmra.mrb[0].mxu0 %v708
        %v1711 = vpop.f32.mrb[0].mxu0
        %v1712 = vadd.f32 %v455, %v1711
        %v1713 = vpop.f32.mrb[0].mxu0
        %1714 = vmatprep.mubr.f32.mxu0 0.0
        %1715 = vmatmul.mubr.f32.gmra.mrb[0].mxu0 %v711
        %v1716 = vpop.f32.mrb[0].mxu0
        %v1717 = vadd.f32 %v455, %v1716
        %v1718 = vpop.f32.mrb[0].mxu0
        %1719 = vmatprep.mubr.f32.mxu0 0.0
        %1720 = vmatmul.mubr.f32.gmra.mrb[0].mxu0 %v714
        %v1721 = vpop.f32.mrb[0].mxu0
        %v1722 = vadd.f32 %v455, %v1721
        %v1723 = vpop.f32.mrb[0].mxu0
        %1724 = vmatprep.mubr.f32.mxu0 0.0
        %1725 = vmatmul.mubr.f32.gmra.mrb[0].mxu0 %v717
        %v1726 = vpop.f32.mrb[0].mxu0
        %v1727 = vadd.f32 %v455, %v1726
        %v1728 = vpop.f32.mrb[0].mxu0
        %1729 = vmatprep.mubr.f32.mxu0 0.0
        %1730 = vmatmul.mubr.f32.gmra.mrb[0].mxu0 %v720
        %v1731 = vpop.f32.mrb[0].mxu0
        %v1732 = vadd.f32 %v455, %v1731
        %v1733 = vpop.f32.mrb[0].mxu0
        %1734 = vmatprep.mubr.f32.mxu0 0.0
        %1735 = vmatmul.mubr.f32.gmra.mrb[0].mxu0 %v723
        %v1736 = vpop.f32.mrb[0].mxu0
        %v1737 = vadd.f32 %v455, %v1736
        %v1738 = vpop.f32.mrb[0].mxu0
        %1739 = vmatprep.mubr.f32.mxu0 0.0
        %1740 = vmatmul.mubr.f32.gmra.mrb[0].mxu0 %v726
        %v1741 = vpop.f32.mrb[0].mxu0
        %v1742 = vadd.f32 %v455, %v1741
        %v1743 = vpop.f32.mrb[0].mxu0
        %1744 = vmatprep.mubr.f32.mxu0 0.0
        %1745 = vmatmul.mubr.f32.gmra.mrb[0].mxu0 %v729
        %v1746 = vpop.f32.mrb[0].mxu0
        %v1747 = vadd.f32 %v455, %v1746
        %v1748 = vpop.f32.mrb[0].mxu0
        %1749 = vmatprep.mubr.f32.mxu0 0.0
        %1750 = vmatmul.mubr.f32.gmra.mrb[0].mxu0 %v732
        %v1751 = vpop.f32.mrb[0].mxu0
        %v1752 = vadd.f32 %v455, %v1751
        %v1753 = vpop.f32.mrb[0].mxu0
        %1754 = vmatprep.mubr.f32.mxu0 0.0
        %1755 = vmatmul.mubr.f32.gmra.mrb[0].mxu0 %v735
        %v1756 = vpop.f32.mrb[0].mxu0
        %v1757 = vadd.f32 %v455, %v1756
        %v1758 = vpop.f32.mrb[0].mxu0
        %1759 = vmatprep.mubr.f32.mxu0 0.0
        %1760 = vmatmul.mubr.f32.gmra.mrb[0].mxu0 %v738
        %v1761 = vpop.f32.mrb[0].mxu0
        %v1762 = vadd.f32 %v455, %v1761
        %v1763 = vpop.f32.mrb[0].mxu0
        %1764 = vmatprep.mubr.f32.mxu0 0.0
        %1765 = vmatmul.mubr.f32.gmra.mrb[0].mxu0 %v741
        %v1766 = vpop.f32.mrb[0].mxu0
        %v1767 = vadd.f32 %v455, %v1766
        %v1768 = vpop.f32.mrb[0].mxu0
        %1769 = vmatprep.mubr.f32.mxu0 0.0
        %1770 = vmatmul.mubr.f32.gmra.mrb[0].mxu0 %v744
        %v1771 = vpop.f32.mrb[0].mxu0
        %v1772 = vadd.f32 %v455, %v1771
        %v1773 = vpop.f32.mrb[0].mxu0
        %1774 = vmatprep.mubr.f32.mxu0 0.0
        %1775 = vmatmul.mubr.f32.gmra.mrb[0].mxu0 %v747
        %v1776 = vpop.f32.mrb[0].mxu0
        %v1777 = vadd.f32 %v455, %v1776
        %v1778 = vpop.f32.mrb[0].mxu0
        %1779 = vmatprep.mubr.f32.mxu0 0.0
        %1780 = vmatmul.mubr.f32.gmra.mrb[0].mxu0 %v750
        %v1781 = vpop.f32.mrb[0].mxu0
        %v1782 = vadd.f32 %v455, %v1781
        %v1783 = vpop.f32.mrb[0].mxu0
        %1784 = vmatprep.mubr.f32.mxu0 0.0
        %1785 = vmatmul.mubr.f32.gmra.mrb[0].mxu0 %v753
        %v1786 = vpop.f32.mrb[0].mxu0
        %v1787 = vadd.f32 %v455, %v1786
        %v1788 = vpop.f32.mrb[0].mxu0
        %1789 = vmatprep.mubr.f32.mxu0 0.0
        %1790 = vmatmul.mubr.f32.gmra.mrb[0].mxu0 %v756
        %v1791 = vpop.f32.mrb[0].mxu0
        %v1792 = vadd.f32 %v455, %v1791
        %v1793 = vpop.f32.mrb[0].mxu0
        %1794 = vmatprep.mubr.f32.mxu0 0.0
        %1795 = vmatmul.mubr.f32.gmra.mrb[0].mxu0 %v759
        %v1796 = vpop.f32.mrb[0].mxu0
        %v1797 = vadd.f32 %v455, %v1796
        %v1798 = vpop.f32.mrb[0].mxu0
        %1799 = vmatprep.mubr.f32.mxu0 0.0
        %1800 = vmatmul.mubr.f32.gmra.mrb[0].mxu0 %v762
        %v1801 = vpop.f32.mrb[0].mxu0
        %v1802 = vadd.f32 %v455, %v1801
        %v1803 = vpop.f32.mrb[0].mxu0
        %1804 = vmatprep.mubr.f32.mxu0 0.0
        %1805 = vmatmul.mubr.f32.gmra.mrb[0].mxu0 %v765
        %v1806 = vpop.f32.mrb[0].mxu0
        %v1807 = vadd.f32 %v455, %v1806
        %v1808 = vpop.f32.mrb[0].mxu0
        %1809 = vmatprep.mubr.f32.mxu0 0.0
        %1810 = vmatmul.mubr.f32.gmra.mrb[0].mxu0 %v768
        %v1811 = vpop.f32.mrb[0].mxu0
        %v1812 = vadd.f32 %v455, %v1811
        %v1813 = vpop.f32.mrb[0].mxu0
        %1814 = vmatprep.mubr.f32.mxu0 0.0
        %1815 = vmatmul.mubr.f32.gmra.mrb[0].mxu0 %v771
        %v1816 = vpop.f32.mrb[0].mxu0
        %v1817 = vadd.f32 %v455, %v1816
        %v1818 = vpop.f32.mrb[0].mxu0
        %1819 = vmatprep.mubr.f32.mxu0 0.0
        %1820 = vmatmul.mubr.f32.gmra.mrb[0].mxu0 %v774
        %v1821 = vpop.f32.mrb[0].mxu0
        %v1822 = vadd.f32 %v455, %v1821
        %v1823 = vpop.f32.mrb[0].mxu0
        %1824 = vmatprep.mubr.f32.mxu0 0.0
        %1825 = vmatmul.mubr.f32.gmra.mrb[0].mxu0 %v777
        %v1826 = vpop.f32.mrb[0].mxu0
        %v1827 = vadd.f32 %v455, %v1826
        %v1828 = vpop.f32.mrb[0].mxu0
        %1829 = vmatprep.mubr.f32.mxu0 0.0
        %1830 = vmatmul.mubr.f32.gmra.mrb[0].mxu0 %v780
        %v1831 = vpop.f32.mrb[0].mxu0
        %v1832 = vadd.f32 %v455, %v1831
        %v1833 = vpop.f32.mrb[0].mxu0
        %1834 = vmatprep.mubr.f32.mxu0 0.0
        %1835 = vmatmul.mubr.f32.gmra.mrb[0].mxu0 %v783
        %v1836 = vpop.f32.mrb[0].mxu0
        %v1837 = vadd.f32 %v455, %v1836
        %v1838 = vpop.f32.mrb[0].mxu0
        %1839 = vmatprep.mubr.f32.mxu0 0.0
        %1840 = vmatmul.mubr.f32.gmra.mrb[0].mxu0 %v786
        %v1841 = vpop.f32.mrb[0].mxu0
        %v1842 = vadd.f32 %v455, %v1841
        %v1843 = vpop.f32.mrb[0].mxu0
        %1844 = vmatprep.mubr.f32.mxu0 0.0
        %1845 = vmatmul.mubr.f32.gmra.mrb[0].mxu0 %v789
        %v1846 = vpop.f32.mrb[0].mxu0
        %v1847 = vadd.f32 %v455, %v1846
        %v1848 = vpop.f32.mrb[0].mxu0
        %1849 = vmatprep.mubr.f32.mxu0 0.0
        %1850 = vmatmul.mubr.f32.gmra.mrb[0].mxu0 %v792
        %v1851 = vpop.f32.mrb[0].mxu0
        %v1852 = vadd.f32 %v455, %v1851
        %v1853 = vpop.f32.mrb[0].mxu0
        %1854 = vmatprep.mubr.f32.mxu0 0.0
        %1855 = vmatmul.mubr.f32.gmra.mrb[0].mxu0 %v795
        %v1856 = vpop.f32.mrb[0].mxu0
        %v1857 = vadd.f32 %v455, %v1856
        %v1858 = vpop.f32.mrb[0].mxu0
        %1859 = vmatprep.mubr.f32.mxu0 0.0
        %1860 = vmatmul.mubr.f32.gmra.mrb[0].mxu0 %v798
        %v1861 = vpop.f32.mrb[0].mxu0
        %v1862 = vadd.f32 %v455, %v1861
        %v1863 = vpop.f32.mrb[0].mxu0
        %1864 = vmatprep.mubr.f32.mxu0 0.0
        %1865 = vmatmul.mubr.f32.gmra.mrb[0].mxu0 %v801
        %v1866 = vpop.f32.mrb[0].mxu0
        %v1867 = vadd.f32 %v455, %v1866
        %v1868 = vpop.f32.mrb[0].mxu0
        %1869 = vmatprep.mubr.f32.mxu0 0.0
        %1870 = vmatmul.mubr.f32.gmra.mrb[0].mxu0 %v804
        %v1871 = vpop.f32.mrb[0].mxu0
        %v1872 = vadd.f32 %v455, %v1871
        %v1873 = vpop.f32.mrb[0].mxu0
        %1874 = vmatprep.mubr.f32.mxu0 0.0
        %1875 = vmatmul.mubr.f32.gmra.mrb[0].mxu0 %v807
        %v1876 = vpop.f32.mrb[0].mxu0
        %v1877 = vadd.f32 %v455, %v1876
        %v1878 = vpop.f32.mrb[0].mxu0
        %1879 = vmatprep.mubr.f32.mxu0 0.0
        %1880 = vmatmul.mubr.f32.gmra.mrb[0].mxu0 %v810
        %v1881 = vpop.f32.mrb[0].mxu0
        %v1882 = vadd.f32 %v455, %v1881
        %v1883 = vpop.f32.mrb[0].mxu0
        %1884 = vmatprep.mubr.f32.mxu0 0.0
        %1885 = vmatmul.mubr.f32.gmra.mrb[0].mxu0 %v813
        %v1886 = vpop.f32.mrb[0].mxu0
        %v1887 = vadd.f32 %v455, %v1886
        %v1888 = vpop.f32.mrb[0].mxu0
        %1889 = vmatprep.mubr.f32.mxu0 0.0
        %1890 = vmatmul.mubr.f32.gmra.mrb[0].mxu0 %v816
        %v1891 = vpop.f32.mrb[0].mxu0
        %v1892 = vadd.f32 %v455, %v1891
        %v1893 = vpop.f32.mrb[0].mxu0
        %1894 = vmatprep.mubr.f32.mxu0 0.0
        %1895 = vmatmul.mubr.f32.gmra.mrb[0].mxu0 %v819
        %v1896 = vpop.f32.mrb[0].mxu0
        %v1897 = vadd.f32 %v455, %v1896
        %v1898 = vpop.f32.mrb[0].mxu0
        %1899 = vmatprep.mubr.f32.mxu0 0.0
        %1900 = vmatmul.mubr.f32.gmra.mrb[0].mxu0 %v822
        %v1901 = vpop.f32.mrb[0].mxu0
        %v1902 = vadd.f32 %v455, %v1901
        %v1903 = vpop.f32.mrb[0].mxu0
        %1904 = vmatprep.mubr.f32.mxu0 0.0
        %1905 = vmatmul.mubr.f32.gmra.mrb[0].mxu0 %v825
        %v1906 = vpop.f32.mrb[0].mxu0
        %v1907 = vadd.f32 %v455, %v1906
        %v1908 = vpop.f32.mrb[0].mxu0
        %1909 = vmatprep.mubr.f32.mxu0 0.0
        %1910 = vmatmul.mubr.f32.gmra.mrb[0].mxu0 %v828
        %v1911 = vpop.f32.mrb[0].mxu0
        %v1912 = vadd.f32 %v455, %v1911
        %v1913 = vpop.f32.mrb[0].mxu0
        %1914 = vmatprep.mubr.f32.mxu0 0.0
        %1915 = vmatmul.mubr.f32.gmra.mrb[0].mxu0 %v831
        %v1916 = vpop.f32.mrb[0].mxu0
        %v1917 = vadd.f32 %v455, %v1916
        %v1918 = vpop.f32.mrb[0].mxu0
        %1919 = vmatprep.mubr.f32.mxu0 0.0
        %1920 = vmatmul.mubr.f32.gmra.mrb[0].mxu0 %v834
        %v1921 = vpop.f32.mrb[0].mxu0
        %v1922 = vadd.f32 %v455, %v1921
        %v1923 = vpop.f32.mrb[0].mxu0
        %1924 = vmatprep.mubr.f32.mxu0 0.0
        %1925 = vmatmul.mubr.f32.gmra.mrb[0].mxu0 %v837
        %v1926 = vpop.f32.mrb[0].mxu0
        %v1927 = vadd.f32 %v455, %v1926
        %v1928 = vpop.f32.mrb[0].mxu0
        %1929 = vmatprep.mubr.f32.mxu0 0.0
        %1930 = vmatmul.mubr.f32.gmra.mrb[0].mxu0 %v840
        %v1931 = vpop.f32.mrb[0].mxu0
        %v1932 = vadd.f32 %v455, %v1931
        %v1933 = vpop.f32.mrb[0].mxu0
        %1934 = vmatprep.mubr.f32.mxu0 0.0
        %1935 = vmatmul.mubr.f32.gmra.mrb[0].mxu0 %v843
        %v1936 = vpop.f32.mrb[0].mxu0
        %v1937 = vadd.f32 %v455, %v1936
        %v1938 = vpop.f32.mrb[0].mxu0
        %1939 = vmatprep.mubr.f32.mxu0 0.0
        %1940 = vmatmul.mubr.f32.gmra.mrb[0].mxu0 %v846
        %v1941 = vpop.f32.mrb[0].mxu0
        %v1942 = vadd.f32 %v455, %v1941
        %v1943 = vpop.f32.mrb[0].mxu0
        %1944 = vmatprep.mubr.f32.mxu0 0.0
        %1945 = vmatmul.mubr.f32.gmra.mrb[0].mxu0 %v849
        %v1946 = vpop.f32.mrb[0].mxu0
        %v1947 = vadd.f32 %v455, %v1946
        %v1948 = vpop.f32.mrb[0].mxu0
        %1949 = vmatprep.mubr.f32.mxu0 0.0
        %1950 = vmatmul.mubr.f32.gmra.mrb[0].mxu0 %v852
        %v1951 = vpop.f32.mrb[0].mxu0
        %v1952 = vadd.f32 %v455, %v1951
        %v1953 = vpop.f32.mrb[0].mxu0
        %1954 = vmatprep.mubr.f32.mxu0 0.0
        %1955 = vmatmul.mubr.f32.gmra.mrb[0].mxu0 %v855
        %v1956 = vpop.f32.mrb[0].mxu0
        %v1957 = vadd.f32 %v455, %v1956
        %v1958 = vpop.f32.mrb[0].mxu0
        %1959 = vmatprep.mubr.f32.mxu0 0.0
        %1960 = vmatmul.mubr.f32.gmra.mrb[0].mxu0 %v858
        %v1961 = vpop.f32.mrb[0].mxu0
        %v1962 = vadd.f32 %v455, %v1961
        %v1963 = vpop.f32.mrb[0].mxu0
        %1964 = vmatprep.mubr.f32.mxu0 0.0
        %1965 = vmatmul.mubr.f32.gmra.mrb[0].mxu0 %v861
        %v1966 = vpop.f32.mrb[0].mxu0
        %v1967 = vadd.f32 %v455, %v1966
        %v1968 = vpop.f32.mrb[0].mxu0
        %1969 = vmatprep.mubr.f32.mxu0 0.0
        %1970 = vmatmul.mubr.f32.gmra.mrb[0].mxu0 %v864
        %v1971 = vpop.f32.mrb[0].mxu0
        %v1972 = vadd.f32 %v455, %v1971
        %v1973 = vpop.f32.mrb[0].mxu0
        %1974 = vmatprep.mubr.f32.mxu0 0.0
        %1975 = vmatmul.mubr.f32.gmra.mrb[0].mxu0 %v867
        %v1976 = vpop.f32.mrb[0].mxu0
        %v1977 = vadd.f32 %v455, %v1976
        %v1978 = vpop.f32.mrb[0].mxu0
        %1979 = vmatprep.mubr.f32.mxu0 0.0
        %1980 = vmatmul.mubr.f32.gmra.mrb[0].mxu0 %v870
        %v1981 = vpop.f32.mrb[0].mxu0
        %v1982 = vadd.f32 %v455, %v1981
        %v1983 = vpop.f32.mrb[0].mxu0
        %1984 = vmatprep.mubr.f32.mxu0 0.0
        %1985 = vmatmul.mubr.f32.gmra.mrb[0].mxu0 %v873
        %v1986 = vpop.f32.mrb[0].mxu0
        %v1987 = vadd.f32 %v455, %v1986
        %v1988 = vpop.f32.mrb[0].mxu0
        %1989 = vmatprep.mubr.f32.mxu0 0.0
        %1990 = vmatmul.mubr.f32.gmra.mrb[0].mxu0 %v876
        %v1991 = vpop.f32.mrb[0].mxu0
        %v1992 = vadd.f32 %v455, %v1991
        %v1993 = vpop.f32.mrb[0].mxu0
        %1994 = vmatprep.mubr.f32.mxu0 0.0
        %1995 = vmatmul.mubr.f32.gmra.mrb[0].mxu0 %v879
        %v1996 = vpop.f32.mrb[0].mxu0
        %v1997 = vadd.f32 %v455, %v1996
        %v1998 = vpop.f32.mrb[0].mxu0
        %1999 = vmatprep.mubr.f32.mxu0 0.0
        %2000 = vmatmul.mubr.f32.gmra.mrb[0].mxu0 %v882
        %v2001 = vpop.f32.mrb[0].mxu0
        %v2002 = vadd.f32 %v455, %v2001
        %v2003 = vpop.f32.mrb[0].mxu0
        %2004 = vmatprep.mubr.f32.mxu0 0.0
        %2005 = vmatmul.mubr.f32.gmra.mrb[0].mxu0 %v885
        %v2006 = vpop.f32.mrb[0].mxu0
        %v2007 = vadd.f32 %v455, %v2006
        %v2008 = vpop.f32.mrb[0].mxu0
        %2009 = vmatprep.mubr.f32.mxu0 0.0
        %2010 = vmatmul.mubr.f32.gmra.mrb[0].mxu0 %v888
        %v2011 = vpop.f32.mrb[0].mxu0
        %v2012 = vadd.f32 %v455, %v2011
        %v2013 = vpop.f32.mrb[0].mxu0
        %2014 = vmatprep.mubr.f32.mxu0 0.0
        %2015 = vmatmul.mubr.f32.gmra.mrb[0].mxu0 %v891
        %v2016 = vpop.f32.mrb[0].mxu0
        %v2017 = vadd.f32 %v455, %v2016
        %v2018 = vpop.f32.mrb[0].mxu0
        %2019 = vmatprep.mubr.f32.mxu0 0.0
        %2020 = vmatmul.mubr.f32.gmra.mrb[0].mxu0 %v894
        %v2021 = vpop.f32.mrb[0].mxu0
        %v2022 = vadd.f32 %v455, %v2021
        %v2023 = vpop.f32.mrb[0].mxu0
        %2024 = vmatprep.mubr.f32.mxu0 0.0
        %2025 = vmatmul.mubr.f32.gmra.mrb[0].mxu0 %v897
        %v2026 = vpop.f32.mrb[0].mxu0
        %v2027 = vadd.f32 %v455, %v2026
        %v2028 = vpop.f32.mrb[0].mxu0
        %2029 = vmatprep.mubr.f32.mxu0 0.0
        %2030 = vmatmul.mubr.f32.gmra.mrb[0].mxu0 %v900
        %v2031 = vpop.f32.mrb[0].mxu0
        %v2032 = vadd.f32 %v455, %v2031
        %v2033 = vpop.f32.mrb[0].mxu0
        %2034 = vmatprep.mubr.f32.mxu0 0.0
        %2035 = vmatmul.mubr.f32.gmra.mrb[0].mxu0 %v903
        %v2036 = vpop.f32.mrb[0].mxu0
        %v2037 = vadd.f32 %v455, %v2036
        %v2038 = vpop.f32.mrb[0].mxu0
        %2039 = vmatprep.mubr.f32.mxu0 0.0
        %2040 = vmatmul.mubr.f32.gmra.mrb[0].mxu0 %v906
        %v2041 = vpop.f32.mrb[0].mxu0
        %v2042 = vadd.f32 %v455, %v2041
        %v2043 = vpop.f32.mrb[0].mxu0
        %2044 = vmatprep.mubr.f32.mxu0 0.0
        %2045 = vmatmul.mubr.f32.gmra.mrb[0].mxu0 %v909
        %v2046 = vpop.f32.mrb[0].mxu0
        %v2047 = vadd.f32 %v455, %v2046
        %v2048 = vpop.f32.mrb[0].mxu0
        %2049 = vmatprep.mubr.f32.mxu0 0.0
        %2050 = vmatmul.mubr.f32.gmra.mrb[0].mxu0 %v912
        %v2051 = vpop.f32.mrb[0].mxu0
        %v2052 = vadd.f32 %v455, %v2051
        %v2053 = vpop.f32.mrb[0].mxu0
        %2054 = vmatprep.mubr.f32.mxu0 0.0
        %2055 = vmatmul.mubr.f32.gmra.mrb[0].mxu0 %v915
        %v2056 = vpop.f32.mrb[0].mxu0
        %v2057 = vadd.f32 %v455, %v2056
        %v2058 = vpop.f32.mrb[0].mxu0
        %2059 = vmatprep.mubr.f32.mxu0 0.0
        %2060 = vmatmul.mubr.f32.gmra.mrb[0].mxu0 %v918
        %v2061 = vpop.f32.mrb[0].mxu0
        %v2062 = vadd.f32 %v455, %v2061
        %v2063 = vpop.f32.mrb[0].mxu0
        %2064 = vmatprep.mubr.f32.mxu0 0.0
        %2065 = vmatmul.mubr.f32.gmra.mrb[0].mxu0 %v921
        %v2066 = vpop.f32.mrb[0].mxu0
        %v2067 = vadd.f32 %v455, %v2066
        %v2068 = vpop.f32.mrb[0].mxu0
        %2069 = vmatprep.mubr.f32.mxu0 0.0
        %2070 = vmatmul.mubr.f32.gmra.mrb[0].mxu0 %v924
        %v2071 = vpop.f32.mrb[0].mxu0
        %v2072 = vadd.f32 %v455, %v2071
        %v2073 = vpop.f32.mrb[0].mxu0
        %2074 = vmatprep.mubr.f32.mxu0 0.0
        %2075 = vmatmul.mubr.f32.gmra.mrb[0].mxu0 %v927
        %v2076 = vpop.f32.mrb[0].mxu0
        %v2077 = vadd.f32 %v455, %v2076
        %v2078 = vpop.f32.mrb[0].mxu0
        %2079 = vmatprep.mubr.f32.mxu0 0.0
        %2080 = vmatmul.mubr.f32.gmra.mrb[0].mxu0 %v930
        %v2081 = vpop.f32.mrb[0].mxu0
        %v2082 = vadd.f32 %v455, %v2081
        %v2083 = vpop.f32.mrb[0].mxu0
        %2084 = vmatprep.mubr.f32.mxu0 0.0
        %2085 = vmatmul.mubr.f32.gmra.mrb[0].mxu0 %v933
        %v2086 = vpop.f32.mrb[0].mxu0
        %v2087 = vadd.f32 %v455, %v2086
        %v2088 = vpop.f32.mrb[0].mxu0
        %2089 = vmatprep.mubr.f32.mxu0 0.0
        %2090 = vmatmul.mubr.f32.gmra.mrb[0].mxu0 %v936
        %v2091 = vpop.f32.mrb[0].mxu0
        %v2092 = vadd.f32 %v455, %v2091
        %v2093 = vpop.f32.mrb[0].mxu0
        %2094 = vmatprep.mubr.f32.mxu0 0.0
        %2095 = vmatmul.mubr.f32.gmra.mrb[0].mxu0 %v939
        %v2096 = vpop.f32.mrb[0].mxu0
        %v2097 = vadd.f32 %v455, %v2096
        %v2098 = vpop.f32.mrb[0].mxu0
        %2099 = vmatprep.mubr.f32.mxu0 0.0
        %2100 = vmatmul.mubr.f32.gmra.mrb[0].mxu0 %v942
        %v2101 = vpop.f32.mrb[0].mxu0
        %v2102 = vadd.f32 %v455, %v2101
        %v2103 = vpop.f32.mrb[0].mxu0
        %2104 = vmatprep.mubr.f32.mxu0 0.0
        %2105 = vmatmul.mubr.f32.gmra.mrb[0].mxu0 %v945
        %v2106 = vpop.f32.mrb[0].mxu0
        %v2107 = vadd.f32 %v455, %v2106
        %v2108 = vpop.f32.mrb[0].mxu0
        %2109 = vmatprep.mubr.f32.mxu0 0.0
        %2110 = vmatmul.mubr.f32.gmra.mrb[0].mxu0 %v948
        %v2111 = vpop.f32.mrb[0].mxu0
        %v2112 = vadd.f32 %v455, %v2111
        %v2113 = vpop.f32.mrb[0].mxu0
        %2114 = vmatprep.mubr.f32.mxu0 0.0
        %2115 = vmatmul.mubr.f32.gmra.mrb[0].mxu0 %v951
        %v2116 = vpop.f32.mrb[0].mxu0
        %v2117 = vadd.f32 %v455, %v2116
        %v2118 = vpop.f32.mrb[0].mxu0
        %2119 = vmatprep.mubr.f32.mxu0 0.0
        %2120 = vmatmul.mubr.f32.gmra.mrb[0].mxu0 %v954
        %v2121 = vpop.f32.mrb[0].mxu0
        %v2122 = vadd.f32 %v455, %v2121
        %v2123 = vpop.f32.mrb[0].mxu0
        %2124 = vmatprep.mubr.f32.mxu0 0.0
        %2125 = vmatmul.mubr.f32.gmra.mrb[0].mxu0 %v957
        %v2126 = vpop.f32.mrb[0].mxu0
        %v2127 = vadd.f32 %v455, %v2126
        %v2128 = vpop.f32.mrb[0].mxu0
        %2129 = vmatprep.mubr.f32.mxu0 0.0
        %2130 = vmatmul.mubr.f32.gmra.mrb[0].mxu0 %v960
        %v2131 = vpop.f32.mrb[0].mxu0
        %v2132 = vadd.f32 %v455, %v2131
        %v2133 = vpop.f32.mrb[0].mxu0
        %2134 = vmatprep.mubr.f32.mxu0 0.0
        %2135 = vmatmul.mubr.f32.gmra.mrb[0].mxu0 %v963
        %v2136 = vpop.f32.mrb[0].mxu0
        %v2137 = vadd.f32 %v455, %v2136
        %v2138 = vpop.f32.mrb[0].mxu0
        %2139 = vmatprep.mubr.f32.mxu0 0.0
        %2140 = vmatmul.mubr.f32.gmra.mrb[0].mxu0 %v966
        %v2141 = vpop.f32.mrb[0].mxu0
        %v2142 = vadd.f32 %v455, %v2141
        %v2143 = vpop.f32.mrb[0].mxu0
        %2144 = vmatprep.mubr.f32.mxu0 0.0
        %2145 = vmatmul.mubr.f32.gmra.mrb[0].mxu0 %v969
        %v2146 = vpop.f32.mrb[0].mxu0
        %v2147 = vadd.f32 %v455, %v2146
        %v2148 = vpop.f32.mrb[0].mxu0
        %2149 = vmatprep.mubr.f32.mxu0 0.0
        %2150 = vmatmul.mubr.f32.gmra.mrb[0].mxu0 %v972
        %v2151 = vpop.f32.mrb[0].mxu0
        %v2152 = vadd.f32 %v455, %v2151
        %v2153 = vpop.f32.mrb[0].mxu0
        %2154 = vmatprep.mubr.f32.mxu0 0.0
        %2155 = vmatmul.mubr.f32.gmra.mrb[0].mxu0 %v975
        %v2156 = vpop.f32.mrb[0].mxu0
        %v2157 = vadd.f32 %v455, %v2156
        %v2158 = vpop.f32.mrb[0].mxu0
        %2159 = vmatprep.mubr.f32.mxu0 0.0
        %2160 = vmatmul.mubr.f32.gmra.mrb[0].mxu0 %v978
        %v2161 = vpop.f32.mrb[0].mxu0
        %v2162 = vadd.f32 %v455, %v2161
        %v2163 = vpop.f32.mrb[0].mxu0
        %2164 = vmatprep.mubr.f32.mxu0 0.0
        %2165 = vmatmul.mubr.f32.gmra.mrb[0].mxu0 %v981
        %v2166 = vpop.f32.mrb[0].mxu0
        %v2167 = vadd.f32 %v455, %v2166
        %v2168 = vpop.f32.mrb[0].mxu0
        %2169 = vmatprep.mubr.f32.mxu0 0.0
        %2170 = vmatmul.mubr.f32.gmra.mrb[0].mxu0 %v984
        %v2171 = vpop.f32.mrb[0].mxu0
        %v2172 = vadd.f32 %v455, %v2171
        %v2173 = vpop.f32.mrb[0].mxu0
        %2174 = vmatprep.mubr.f32.mxu0 0.0
        %2175 = vmatmul.mubr.f32.gmra.mrb[0].mxu0 %v987
        %v2176 = vpop.f32.mrb[0].mxu0
        %v2177 = vadd.f32 %v455, %v2176
        %v2178 = vpop.f32.mrb[0].mxu0
        %2179 = vmatprep.mubr.f32.mxu0 0.0
        %2180 = vmatmul.mubr.f32.gmra.mrb[0].mxu0 %v990
        %v2181 = vpop.f32.mrb[0].mxu0
        %v2182 = vadd.f32 %v455, %v2181
        %v2183 = vpop.f32.mrb[0].mxu0
        %2184 = vmatprep.mubr.f32.mxu0 0.0
        %2185 = vmatmul.mubr.f32.gmra.mrb[0].mxu0 %v993
        %v2186 = vpop.f32.mrb[0].mxu0
        %v2187 = vadd.f32 %v455, %v2186
        %v2188 = vpop.f32.mrb[0].mxu0
        %2189 = vmatprep.mubr.f32.mxu0 0.0
        %2190 = vmatmul.mubr.f32.gmra.mrb[0].mxu0 %v996
        %v2191 = vpop.f32.mrb[0].mxu0
        %v2192 = vadd.f32 %v455, %v2191
        %v2193 = vpop.f32.mrb[0].mxu0
        %2194 = vmatprep.mubr.f32.mxu0 0.0
        %2195 = vmatmul.mubr.f32.gmra.mrb[0].mxu0 %v999
        %v2196 = vpop.f32.mrb[0].mxu0
        %v2197 = vadd.f32 %v455, %v2196
        %v2198 = vpop.f32.mrb[0].mxu0
        %2199 = vmatprep.mubr.f32.mxu0 0.0
        %2200 = vmatmul.mubr.f32.gmra.mrb[0].mxu0 %v1002
        %v2201 = vpop.f32.mrb[0].mxu0
        %v2202 = vadd.f32 %v455, %v2201
        %v2203 = vpop.f32.mrb[0].mxu0
        %2204 = vmatprep.mubr.f32.mxu0 0.0
        %2205 = vmatmul.mubr.f32.gmra.mrb[0].mxu0 %v1005
        %v2206 = vpop.f32.mrb[0].mxu0
        %v2207 = vadd.f32 %v455, %v2206
        %v2208 = vpop.f32.mrb[0].mxu0
        %2209 = vmatprep.mubr.f32.mxu0 0.0
        %2210 = vmatmul.mubr.f32.gmra.mrb[0].mxu0 %v1008
        %v2211 = vpop.f32.mrb[0].mxu0
        %v2212 = vadd.f32 %v455, %v2211
        %v2213 = vpop.f32.mrb[0].mxu0
        %2214 = vmatprep.mubr.f32.mxu0 0.0
        %2215 = vmatmul.mubr.f32.gmra.mrb[0].mxu0 %v1011
        %v2216 = vpop.f32.mrb[0].mxu0
        %v2217 = vadd.f32 %v455, %v2216
        %v2218 = vpop.f32.mrb[0].mxu0
        %2219 = vmatprep.mubr.f32.mxu0 0.0
        %2220 = vmatmul.mubr.f32.gmra.mrb[0].mxu0 %v1014
        %v2221 = vpop.f32.mrb[0].mxu0
        %v2222 = vadd.f32 %v455, %v2221
        %v2223 = vpop.f32.mrb[0].mxu0
        %2224 = vmatprep.mubr.f32.mxu0 0.0
        %2225 = vmatmul.mubr.f32.gmra.mrb[0].mxu0 %v1017
        %v2226 = vpop.f32.mrb[0].mxu0
        %v2227 = vadd.f32 %v455, %v2226
        %v2228 = vpop.f32.mrb[0].mxu0
        %2229 = vmatprep.mubr.f32.mxu0 0.0
        %2230 = vmatmul.mubr.f32.gmra.mrb[0].mxu0 %v1020
        %v2231 = vpop.f32.mrb[0].mxu0
        %v2232 = vadd.f32 %v455, %v2231
        %v2233 = vpop.f32.mrb[0].mxu0
        %2234 = vmatprep.mubr.f32.mxu0 0.0
        %2235 = vmatmul.mubr.f32.gmra.mrb[0].mxu0 %v1023
        %v2236 = vpop.f32.mrb[0].mxu0
        %v2237 = vadd.f32 %v455, %v2236
        %v2238 = vpop.f32.mrb[0].mxu0
        %2239 = vmatprep.mubr.f32.mxu0 0.0
        %2240 = vmatmul.mubr.f32.gmra.mrb[0].mxu0 %v1026
        %v2241 = vpop.f32.mrb[0].mxu0
        %v2242 = vadd.f32 %v455, %v2241
        %v2243 = vpop.f32.mrb[0].mxu0
        %2244 = vmatprep.mubr.f32.mxu0 0.0
        %2245 = vmatmul.mubr.f32.gmra.mrb[0].mxu0 %v1029
        %v2246 = vpop.f32.mrb[0].mxu0
        %v2247 = vadd.f32 %v455, %v2246
        %v2248 = vpop.f32.mrb[0].mxu0
        %2249 = vmatprep.mubr.f32.mxu0 0.0
        %2250 = vmatmul.mubr.f32.gmra.mrb[0].mxu0 %v1032
        %v2251 = vpop.f32.mrb[0].mxu0
        %v2252 = vadd.f32 %v455, %v2251
        %v2253 = vpop.f32.mrb[0].mxu0
        %2254 = vmatprep.mubr.f32.mxu0 0.0
        %2255 = vmatmul.mubr.f32.gmra.mrb[0].mxu0 %v1035
        %v2256 = vpop.f32.mrb[0].mxu0
        %v2257 = vadd.f32 %v455, %v2256
        %v2258 = vpop.f32.mrb[0].mxu0
        %2259 = vmatprep.mubr.f32.mxu0 0.0
        %2260 = vmatmul.mubr.f32.gmra.mrb[0].mxu0 %v1038
        %v2261 = vpop.f32.mrb[0].mxu0
        %v2262 = vadd.f32 %v455, %v2261
        %v2263 = vpop.f32.mrb[0].mxu0
        %2264 = vmatprep.mubr.f32.mxu0 0.0
        %2265 = vmatmul.mubr.f32.gmra.mrb[0].mxu0 %v1041
        %v2266 = vpop.f32.mrb[0].mxu0
        %v2267 = vadd.f32 %v455, %v2266
        %v2268 = vpop.f32.mrb[0].mxu0
        %2269 = vmatprep.mubr.f32.mxu0 0.0
        %2270 = vmatmul.mubr.f32.gmra.mrb[0].mxu0 %v1044
        %v2271 = vpop.f32.mrb[0].mxu0
        %v2272 = vadd.f32 %v455, %v2271
        %v2273 = vpop.f32.mrb[0].mxu0
        %2274 = vmatprep.mubr.f32.mxu0 0.0
        %2275 = vmatmul.mubr.f32.gmra.mrb[0].mxu0 %v1047
        %v2276 = vpop.f32.mrb[0].mxu0
        %v2277 = vadd.f32 %v455, %v2276
        %v2278 = vpop.f32.mrb[0].mxu0
        %2279 = vmatprep.mubr.f32.mxu0 0.0
        %2280 = vmatmul.mubr.f32.gmra.mrb[0].mxu0 %v1050
        %v2281 = vpop.f32.mrb[0].mxu0
        %v2282 = vadd.f32 %v455, %v2281
        %v2283 = vpop.f32.mrb[0].mxu0
        %2284 = vmatprep.mubr.f32.mxu0 0.0
        %2285 = vmatmul.mubr.f32.gmra.mrb[0].mxu0 %v1053
        %v2286 = vpop.f32.mrb[0].mxu0
        %v2287 = vadd.f32 %v455, %v2286
        %v2288 = vpop.f32.mrb[0].mxu0
        %2289 = vmatprep.mubr.f32.mxu0 0.0
        %2290 = vmatmul.mubr.f32.gmra.mrb[0].mxu0 %v1056
        %v2291 = vpop.f32.mrb[0].mxu0
        %v2292 = vadd.f32 %v455, %v2291
        %v2293 = vpop.f32.mrb[0].mxu0
        %2294 = vmatprep.mubr.f32.mxu0 0.0
        %2295 = vmatmul.mubr.f32.gmra.mrb[0].mxu0 %v1059
        %v2296 = vpop.f32.mrb[0].mxu0
        %v2297 = vadd.f32 %v455, %v2296
        %v2298 = vpop.f32.mrb[0].mxu0
        %2299 = vmatprep.mubr.f32.mxu0 0.0
        %2300 = vmatmul.mubr.f32.gmra.mrb[0].mxu0 %v1062
        %v2301 = vpop.f32.mrb[0].mxu0
        %v2302 = vadd.f32 %v455, %v2301
        %v2303 = vpop.f32.mrb[0].mxu0
        %2304 = vmatprep.mubr.f32.mxu0 0.0
        %2305 = vmatmul.mubr.f32.gmra.mrb[0].mxu0 %v1065
        %v2306 = vpop.f32.mrb[0].mxu0
        %v2307 = vadd.f32 %v455, %v2306
        %v2308 = vpop.f32.mrb[0].mxu0
        %2309 = vmatprep.mubr.f32.mxu0 0.0
        %2310 = vmatmul.mubr.f32.gmra.mrb[0].mxu0 %v1068
        %v2311 = vpop.f32.mrb[0].mxu0
        %v2312 = vadd.f32 %v455, %v2311
        %v2313 = vpop.f32.mrb[0].mxu0
        %2314 = vmatprep.mubr.f32.mxu0 0.0
        %2315 = vmatmul.mubr.f32.gmra.mrb[0].mxu0 %v1071
        %v2316 = vpop.f32.mrb[0].mxu0
        %v2317 = vadd.f32 %v455, %v2316
        %v2318 = vpop.f32.mrb[0].mxu0
        %2319 = vmatprep.mubr.f32.mxu0 0.0
        %2320 = vmatmul.mubr.f32.gmra.mrb[0].mxu0 %v1074
        %v2321 = vpop.f32.mrb[0].mxu0
        %v2322 = vadd.f32 %v455, %v2321
        %v2323 = vpop.f32.mrb[0].mxu0
        %2324 = vmatprep.mubr.f32.mxu0 0.0
        %2325 = vmatmul.mubr.f32.gmra.mrb[0].mxu0 %v1077
        %v2326 = vpop.f32.mrb[0].mxu0
        %v2327 = vadd.f32 %v455, %v2326
        %v2328 = vpop.f32.mrb[0].mxu0
        %2329 = vmatprep.mubr.f32.mxu0 0.0
        %2330 = vmatmul.mubr.f32.gmra.mrb[0].mxu0 %v1080
        %v2331 = vpop.f32.mrb[0].mxu0
        %v2332 = vadd.f32 %v455, %v2331
        %v2333 = vpop.f32.mrb[0].mxu0
        %2334 = vmatprep.mubr.f32.mxu0 0.0
        %2335 = vmatmul.mubr.f32.gmra.mrb[0].mxu0 %v1083
        %v2336 = vpop.f32.mrb[0].mxu0
        %v2337 = vadd.f32 %v455, %v2336
        %v2338 = vpop.f32.mrb[0].mxu0
        %2339 = vmatprep.mubr.f32.mxu0 0.0
        %2340 = vmatmul.mubr.f32.gmra.mrb[0].mxu0 %v1086
        %v2341 = vpop.f32.mrb[0].mxu0
        %v2342 = vadd.f32 %v455, %v2341
        %v2343 = vpop.f32.mrb[0].mxu0
        %2344 = vmatprep.mubr.f32.mxu0 0.0
        %2345 = vmatmul.mubr.f32.gmra.mrb[0].mxu0 %v1089
        %v2346 = vpop.f32.mrb[0].mxu0
        %v2347 = vadd.f32 %v455, %v2346
        %v2348 = vpop.f32.mrb[0].mxu0
        %2349 = vmatprep.mubr.f32.mxu0 0.0
        %2350 = vmatmul.mubr.f32.gmra.mrb[0].mxu0 %v1092
        %v2351 = vpop.f32.mrb[0].mxu0
        %v2352 = vadd.f32 %v455, %v2351
        %v2353 = vpop.f32.mrb[0].mxu0
        %2354 = vmatprep.mubr.f32.mxu0 0.0
        %2355 = vmatmul.mubr.f32.gmra.mrb[0].mxu0 %v1095
        %v2356 = vpop.f32.mrb[0].mxu0
        %v2357 = vadd.f32 %v455, %v2356
        %v2358 = vpop.f32.mrb[0].mxu0
        %2359 = vmatprep.mubr.f32.mxu0 0.0
        %2360 = vmatmul.mubr.f32.gmra.mrb[0].mxu0 %v1098
        %v2361 = vpop.f32.mrb[0].mxu0
        %v2362 = vadd.f32 %v455, %v2361
        %v2363 = vpop.f32.mrb[0].mxu0
        %2364 = vmatprep.mubr.f32.mxu0 0.0
        %2365 = vmatmul.mubr.f32.gmra.mrb[0].mxu0 %v1101
        %v2366 = vpop.f32.mrb[0].mxu0
        %v2367 = vadd.f32 %v455, %v2366
        %v2368 = vpop.f32.mrb[0].mxu0
        %2369 = vmatprep.mubr.f32.mxu0 0.0
        %2370 = vmatmul.mubr.f32.gmra.mrb[0].mxu0 %v1104
        %v2371 = vpop.f32.mrb[0].mxu0
        %v2372 = vadd.f32 %v455, %v2371
        %v2373 = vpop.f32.mrb[0].mxu0
        %2374 = vmatprep.mubr.f32.mxu0 0.0
        %2375 = vmatmul.mubr.f32.gmra.mrb[0].mxu0 %v1107
        %v2376 = vpop.f32.mrb[0].mxu0
        %v2377 = vadd.f32 %v455, %v2376
        %v2378 = vpop.f32.mrb[0].mxu0
        %2379 = vmatprep.mubr.f32.mxu0 0.0
        %2380 = vmatmul.mubr.f32.gmra.mrb[0].mxu0 %v1110
        %v2381 = vpop.f32.mrb[0].mxu0
        %v2382 = vadd.f32 %v455, %v2381
        %v2383 = vpop.f32.mrb[0].mxu0
        %2384 = vmatprep.mubr.f32.mxu0 0.0
        %2385 = vmatmul.mubr.f32.gmra.mrb[0].mxu0 %v1113
        %v2386 = vpop.f32.mrb[0].mxu0
        %v2387 = vadd.f32 %v455, %v2386
        %v2388 = vpop.f32.mrb[0].mxu0
        %2389 = vmatprep.mubr.f32.mxu0 0.0
        %2390 = vmatmul.mubr.f32.gmra.mrb[0].mxu0 %v1116
        %v2391 = vpop.f32.mrb[0].mxu0
        %v2392 = vadd.f32 %v455, %v2391
        %v2393 = vpop.f32.mrb[0].mxu0
        %2394 = vmatprep.mubr.f32.mxu0 0.0
        %2395 = vmatmul.mubr.f32.gmra.mrb[0].mxu0 %v1119
        %v2396 = vpop.f32.mrb[0].mxu0
        %v2397 = vadd.f32 %v455, %v2396
        %v2398 = vpop.f32.mrb[0].mxu0
        %2399 = vmatprep.mubr.f32.mxu0 0.0
        %2400 = vmatmul.mubr.f32.gmra.mrb[0].mxu0 %v1122
        %v2401 = vpop.f32.mrb[0].mxu0
        %v2402 = vadd.f32 %v455, %v2401
        %v2403 = vpop.f32.mrb[0].mxu0
        %2404 = vmatprep.mubr.f32.mxu0 0.0
        %2405 = vmatmul.mubr.f32.gmra.mrb[0].mxu0 %v1125
        %v2406 = vpop.f32.mrb[0].mxu0
        %v2407 = vadd.f32 %v455, %v2406
        %v2408 = vpop.f32.mrb[0].mxu0
        %2409 = vmatprep.mubr.f32.mxu0 0.0
        %2410 = vmatmul.mubr.f32.gmra.mrb[0].mxu0 %v1128
        %v2411 = vpop.f32.mrb[0].mxu0
        %v2412 = vadd.f32 %v455, %v2411
        %v2413 = vpop.f32.mrb[0].mxu0
        %2414 = vmatprep.mubr.f32.mxu0 0.0
        %2415 = vmatmul.mubr.f32.gmra.mrb[0].mxu0 %v1131
        %v2416 = vpop.f32.mrb[0].mxu0
        %v2417 = vadd.f32 %v455, %v2416
        %v2418 = vpop.f32.mrb[0].mxu0
        %2419 = vmatprep.mubr.f32.mxu0 0.0
        %2420 = vmatmul.mubr.f32.gmra.mrb[0].mxu0 %v1134
        %v2421 = vpop.f32.mrb[0].mxu0
        %v2422 = vadd.f32 %v455, %v2421
        %v2423 = vpop.f32.mrb[0].mxu0
        %2424 = vmatprep.mubr.f32.mxu0 0.0
        %2425 = vmatmul.mubr.f32.gmra.mrb[0].mxu0 %v1137
        %v2426 = vpop.f32.mrb[0].mxu0
        %v2427 = vadd.f32 %v455, %v2426
        %v2428 = vpop.f32.mrb[0].mxu0
        %2429 = vmatprep.mubr.f32.mxu0 0.0
        %2430 = vmatmul.mubr.f32.gmra.mrb[0].mxu0 %v1140
        %v2431 = vpop.f32.mrb[0].mxu0
        %v2432 = vadd.f32 %v455, %v2431
        %v2433 = vpop.f32.mrb[0].mxu0
        %2434 = vmatprep.mubr.f32.mxu0 0.0
        %2435 = vmatmul.mubr.f32.gmra.mrb[0].mxu0 %v1143
        %v2436 = vpop.f32.mrb[0].mxu0
        %v2437 = vadd.f32 %v455, %v2436
        %v2438 = vpop.f32.mrb[0].mxu0
        %2439 = vmatprep.mubr.f32.mxu0 0.0
        %2440 = vmatmul.mubr.f32.gmra.mrb[0].mxu0 %v1146
        %v2441 = vpop.f32.mrb[0].mxu0
        %v2442 = vadd.f32 %v455, %v2441
        %v2443 = vpop.f32.mrb[0].mxu0
        %2444 = vmatprep.mubr.f32.mxu0 0.0
        %2445 = vmatmul.mubr.f32.gmra.mrb[0].mxu0 %v1149
        %v2446 = vpop.f32.mrb[0].mxu0
        %v2447 = vadd.f32 %v455, %v2446
        %v2448 = vpop.f32.mrb[0].mxu0
        %2449 = vmatprep.mubr.f32.mxu0 0.0
        %2450 = vmatmul.mubr.f32.gmra.mrb[0].mxu0 %v1152
        %v2451 = vpop.f32.mrb[0].mxu0
        %v2452 = vadd.f32 %v455, %v2451
        %v2453 = vpop.f32.mrb[0].mxu0
        %2454 = vmatprep.mubr.f32.mxu0 0.0
        %2455 = vmatmul.mubr.f32.gmra.mrb[0].mxu0 %v1155
        %v2456 = vpop.f32.mrb[0].mxu0
        %v2457 = vadd.f32 %v455, %v2456
        %v2458 = vpop.f32.mrb[0].mxu0
        %2459 = vmatprep.mubr.f32.mxu0 0.0
        %2460 = vmatmul.mubr.f32.gmra.mrb[0].mxu0 %v1158
        %v2461 = vpop.f32.mrb[0].mxu0
        %v2462 = vadd.f32 %v455, %v2461
        %v2463 = vpop.f32.mrb[0].mxu0
        %2464 = vmatprep.mubr.f32.mxu0 0.0
        %2465 = vmatmul.mubr.f32.gmra.mrb[0].mxu0 %v1161
        %v2466 = vpop.f32.mrb[0].mxu0
        %v2467 = vadd.f32 %v455, %v2466
        %v2468 = vpop.f32.mrb[0].mxu0
        %2469 = vmatprep.mubr.f32.mxu0 0.0
        %2470 = vmatmul.mubr.f32.gmra.mrb[0].mxu0 %v1164
        %v2471 = vpop.f32.mrb[0].mxu0
        %v2472 = vadd.f32 %v455, %v2471
        %v2473 = vpop.f32.mrb[0].mxu0
        %2474 = vmatprep.mubr.f32.mxu0 0.0
        %2475 = vmatmul.mubr.f32.gmra.mrb[0].mxu0 %v1167
        %v2476 = vpop.f32.mrb[0].mxu0
        %v2477 = vadd.f32 %v455, %v2476
        %v2478 = vpop.f32.mrb[0].mxu0
        %2479 = vmatprep.mubr.f32.mxu0 0.0
        %2480 = vmatmul.mubr.f32.gmra.mrb[0].mxu0 %v1170
        %v2481 = vpop.f32.mrb[0].mxu0
        %v2482 = vadd.f32 %v455, %v2481
        %v2483 = vpop.f32.mrb[0].mxu0
        %2484 = vmatprep.mubr.f32.mxu0 0.0
        %2485 = vmatmul.mubr.f32.gmra.mrb[0].mxu0 %v1173
        %v2486 = vpop.f32.mrb[0].mxu0
        %v2487 = vadd.f32 %v455, %v2486
        %v2488 = vpop.f32.mrb[0].mxu0
        %2489 = vmatprep.mubr.f32.mxu0 0.0
        %2490 = vmatmul.mubr.f32.gmra.mrb[0].mxu0 %v1176
        %v2491 = vpop.f32.mrb[0].mxu0
        %v2492 = vadd.f32 %v455, %v2491
        %v2493 = vpop.f32.mrb[0].mxu0
        %2494 = vmatprep.mubr.f32.mxu0 0.0
        %2495 = vmatmul.mubr.f32.gmra.mrb[0].mxu0 %v1179
        %v2496 = vpop.f32.mrb[0].mxu0
        %v2497 = vadd.f32 %v455, %v2496
        %v2498 = vpop.f32.mrb[0].mxu0
        %2499 = vmatprep.mubr.f32.mxu0 0.0
        %2500 = vmatmul.mubr.f32.gmra.mrb[0].mxu0 %v1182
        %v2501 = vpop.f32.mrb[0].mxu0
        %v2502 = vadd.f32 %v455, %v2501
        %v2503 = vpop.f32.mrb[0].mxu0
        %2504 = vmatprep.mubr.f32.mxu0 0.0
        %2505 = vmatmul.mubr.f32.gmra.mrb[0].mxu0 %v1185
        %v2506 = vpop.f32.mrb[0].mxu0
        %v2507 = vadd.f32 %v455, %v2506
        %v2508 = vpop.f32.mrb[0].mxu0
        %2509 = vmatprep.mubr.f32.mxu0 0.0
        %2510 = vmatmul.mubr.f32.gmra.mrb[0].mxu0 %v1188
        %v2511 = vpop.f32.mrb[0].mxu0
        %v2512 = vadd.f32 %v455, %v2511
        %v2513 = vpop.f32.mrb[0].mxu0
        %2514 = vmatprep.mubr.f32.mxu0 0.0
        %2515 = vmatmul.mubr.f32.gmra.mrb[0].mxu0 %v1191
        %v2516 = vpop.f32.mrb[0].mxu0
        %v2517 = vadd.f32 %v455, %v2516
        %v2518 = vpop.f32.mrb[0].mxu0
        %2519 = vmatprep.mubr.f32.mxu0 0.0
        %2520 = vmatmul.mubr.f32.gmra.mrb[0].mxu0 %v1194
        %v2521 = vpop.f32.mrb[0].mxu0
        %v2522 = vadd.f32 %v455, %v2521
        %v2523 = vpop.f32.mrb[0].mxu0
        %2524 = vmatprep.mubr.f32.mxu0 0.0
        %2525 = vmatmul.mubr.f32.gmra.mrb[0].mxu0 %v1197
        %v2526 = vpop.f32.mrb[0].mxu0
        %v2527 = vadd.f32 %v455, %v2526
        %v2528 = vpop.f32.mrb[0].mxu0
        %2529 = vmatprep.mubr.f32.mxu0 0.0
        %2530 = vmatmul.mubr.f32.gmra.mrb[0].mxu0 %v1200
        %v2531 = vpop.f32.mrb[0].mxu0
        %v2532 = vadd.f32 %v455, %v2531
        %v2533 = vpop.f32.mrb[0].mxu0
        %2534 = vmatprep.mubr.f32.mxu0 0.0
        %2535 = vmatmul.mubr.f32.gmra.mrb[0].mxu0 %v1203
        %v2536 = vpop.f32.mrb[0].mxu0
        %v2537 = vadd.f32 %v455, %v2536
        %v2538 = vpop.f32.mrb[0].mxu0
        %2539 = vmatprep.mubr.f32.mxu0 0.0
        %2540 = vmatmul.mubr.f32.gmra.mrb[0].mxu0 %v1206
        %v2541 = vpop.f32.mrb[0].mxu0
        %v2542 = vadd.f32 %v455, %v2541
        %v2543 = vpop.f32.mrb[0].mxu0
        %2544 = vmatprep.mubr.f32.mxu0 0.0
        %2545 = vmatmul.mubr.f32.gmra.mrb[0].mxu0 %v1209
        %v2546 = vpop.f32.mrb[0].mxu0
        %v2547 = vadd.f32 %v455, %v2546
        %v2548 = vpop.f32.mrb[0].mxu0
        %2549 = vmatprep.mubr.f32.mxu0 0.0
        %2550 = vmatmul.mubr.f32.gmra.mrb[0].mxu0 %v1212
        %v2551 = vpop.f32.mrb[0].mxu0
        %v2552 = vadd.f32 %v455, %v2551
        %v2553 = vpop.f32.mrb[0].mxu0
        %2554 = vmatprep.mubr.f32.mxu0 0.0
        %2555 = vmatmul.mubr.f32.gmra.mrb[0].mxu0 %v1215
        %v2556 = vpop.f32.mrb[0].mxu0
        %v2557 = vadd.f32 %v455, %v2556
        %v2558 = vpop.f32.mrb[0].mxu0
        %2559 = vmatprep.mubr.f32.mxu0 0.0
        %2560 = vmatmul.mubr.f32.gmra.mrb[0].mxu0 %v1218
        %v2561 = vpop.f32.mrb[0].mxu0
        %v2562 = vadd.f32 %v455, %v2561
        %v2563 = vpop.f32.mrb[0].mxu0
        %2564 = vmatprep.mubr.f32.mxu0 0.0
        %2565 = vmatmul.mubr.f32.gmra.mrb[0].mxu0 %v1221
        %v2566 = vpop.f32.mrb[0].mxu0
        %v2567 = vadd.f32 %v455, %v2566
        %v2568 = vpop.f32.mrb[0].mxu0
        %2569 = vmatprep.mubr.f32.mxu0 0.0
        %2570 = vmatmul.mubr.f32.gmra.mrb[0].mxu0 %v1224
        %v2571 = vpop.f32.mrb[0].mxu0
        %v2572 = vadd.f32 %v455, %v2571
        %v2573 = vpop.f32.mrb[0].mxu0
        %2574 = vdwg.mxu0
        %v2575 = vmax.f32 %v1297, 0.0
        %v2576 = vmax.f32 %v1302, 0.0
        %v2577 = vmax.f32 %v1307, 0.0
        %v2578 = vmax.f32 %v1312, 0.0
        %v2579 = vmax.f32 %v1317, 0.0
        %v2580 = vmax.f32 %v1322, 0.0
        %v2581 = vmax.f32 %v1327, 0.0
        %v2582 = vmax.f32 %v1332, 0.0
        %v2583 = vmax.f32 %v1337, 0.0
        %v2584 = vmax.f32 %v1342, 0.0
        %v2585 = vmax.f32 %v1347, 0.0
        %v2586 = vmax.f32 %v1352, 0.0
        %v2587 = vmax.f32 %v1357, 0.0
        %v2588 = vmax.f32 %v1362, 0.0
        %v2589 = vmax.f32 %v1367, 0.0
        %v2590 = vmax.f32 %v1372, 0.0
        %v2591 = vmax.f32 %v1377, 0.0
        %v2592 = vmax.f32 %v1382, 0.0
        %v2593 = vmax.f32 %v1387, 0.0
        %v2594 = vmax.f32 %v1392, 0.0
        %v2595 = vmax.f32 %v1397, 0.0
        %v2596 = vmax.f32 %v1402, 0.0
        %v2597 = vmax.f32 %v1407, 0.0
        %v2598 = vmax.f32 %v1412, 0.0
        %v2599 = vmax.f32 %v1417, 0.0
        %v2600 = vmax.f32 %v1422, 0.0
        %v2601 = vmax.f32 %v1427, 0.0
        %v2602 = vmax.f32 %v1432, 0.0
        %v2603 = vmax.f32 %v1437, 0.0
        %v2604 = vmax.f32 %v1442, 0.0
        %v2605 = vmax.f32 %v1447, 0.0
        %v2606 = vmax.f32 %v1452, 0.0
        %v2607 = vmax.f32 %v1457, 0.0
        %v2608 = vmax.f32 %v1462, 0.0
        %v2609 = vmax.f32 %v1467, 0.0
        %v2610 = vmax.f32 %v1472, 0.0
        %v2611 = vmax.f32 %v1477, 0.0
        %v2612 = vmax.f32 %v1482, 0.0
        %v2613 = vmax.f32 %v1487, 0.0
        %v2614 = vmax.f32 %v1492, 0.0
        %v2615 = vmax.f32 %v1497, 0.0
        %v2616 = vmax.f32 %v1502, 0.0
        %v2617 = vmax.f32 %v1507, 0.0
        %v2618 = vmax.f32 %v1512, 0.0
        %v2619 = vmax.f32 %v1517, 0.0
        %v2620 = vmax.f32 %v1522, 0.0
        %v2621 = vmax.f32 %v1527, 0.0
        %v2622 = vmax.f32 %v1532, 0.0
        %v2623 = vmax.f32 %v1537, 0.0
        %v2624 = vmax.f32 %v1542, 0.0
        %v2625 = vmax.f32 %v1547, 0.0
        %v2626 = vmax.f32 %v1552, 0.0
        %v2627 = vmax.f32 %v1557, 0.0
        %v2628 = vmax.f32 %v1562, 0.0
        %v2629 = vmax.f32 %v1567, 0.0
        %v2630 = vmax.f32 %v1572, 0.0
        %v2631 = vmax.f32 %v1577, 0.0
        %v2632 = vmax.f32 %v1582, 0.0
        %v2633 = vmax.f32 %v1587, 0.0
        %v2634 = vmax.f32 %v1592, 0.0
        %v2635 = vmax.f32 %v1597, 0.0
        %v2636 = vmax.f32 %v1602, 0.0
        %v2637 = vmax.f32 %v1607, 0.0
        %v2638 = vmax.f32 %v1612, 0.0
        %v2639 = vmax.f32 %v1617, 0.0
        %v2640 = vmax.f32 %v1622, 0.0
        %v2641 = vmax.f32 %v1627, 0.0
        %v2642 = vmax.f32 %v1632, 0.0
        %v2643 = vmax.f32 %v1637, 0.0
        %v2644 = vmax.f32 %v1642, 0.0
        %v2645 = vmax.f32 %v1647, 0.0
        %v2646 = vmax.f32 %v1652, 0.0
        %v2647 = vmax.f32 %v1657, 0.0
        %v2648 = vmax.f32 %v1662, 0.0
        %v2649 = vmax.f32 %v1667, 0.0
        %v2650 = vmax.f32 %v1672, 0.0
        %v2651 = vmax.f32 %v1677, 0.0
        %v2652 = vmax.f32 %v1682, 0.0
        %v2653 = vmax.f32 %v1687, 0.0
        %v2654 = vmax.f32 %v1692, 0.0
        %v2655 = vmax.f32 %v1697, 0.0
        %v2656 = vmax.f32 %v1702, 0.0
        %v2657 = vmax.f32 %v1707, 0.0
        %v2658 = vmax.f32 %v1712, 0.0
        %v2659 = vmax.f32 %v1717, 0.0
        %v2660 = vmax.f32 %v1722, 0.0
        %v2661 = vmax.f32 %v1727, 0.0
        %v2662 = vmax.f32 %v1732, 0.0
        %v2663 = vmax.f32 %v1737, 0.0
        %v2664 = vmax.f32 %v1742, 0.0
        %v2665 = vmax.f32 %v1747, 0.0
        %v2666 = vmax.f32 %v1752, 0.0
        %v2667 = vmax.f32 %v1757, 0.0
        %v2668 = vmax.f32 %v1762, 0.0
        %v2669 = vmax.f32 %v1767, 0.0
        %v2670 = vmax.f32 %v1772, 0.0
        %v2671 = vmax.f32 %v1777, 0.0
        %v2672 = vmax.f32 %v1782, 0.0
        %v2673 = vmax.f32 %v1787, 0.0
        %v2674 = vmax.f32 %v1792, 0.0
        %v2675 = vmax.f32 %v1797, 0.0
        %v2676 = vmax.f32 %v1802, 0.0
        %v2677 = vmax.f32 %v1807, 0.0
        %v2678 = vmax.f32 %v1812, 0.0
        %v2679 = vmax.f32 %v1817, 0.0
        %v2680 = vmax.f32 %v1822, 0.0
        %v2681 = vmax.f32 %v1827, 0.0
        %v2682 = vmax.f32 %v1832, 0.0
        %v2683 = vmax.f32 %v1837, 0.0
        %v2684 = vmax.f32 %v1842, 0.0
        %v2685 = vmax.f32 %v1847, 0.0
        %v2686 = vmax.f32 %v1852, 0.0
        %v2687 = vmax.f32 %v1857, 0.0
        %v2688 = vmax.f32 %v1862, 0.0
        %v2689 = vmax.f32 %v1867, 0.0
        %v2690 = vmax.f32 %v1872, 0.0
        %v2691 = vmax.f32 %v1877, 0.0
        %v2692 = vmax.f32 %v1882, 0.0
        %v2693 = vmax.f32 %v1887, 0.0
        %v2694 = vmax.f32 %v1892, 0.0
        %v2695 = vmax.f32 %v1897, 0.0
        %v2696 = vmax.f32 %v1902, 0.0
        %v2697 = vmax.f32 %v1907, 0.0
        %v2698 = vmax.f32 %v1912, 0.0
        %v2699 = vmax.f32 %v1917, 0.0
        %v2700 = vmax.f32 %v1922, 0.0
        %v2701 = vmax.f32 %v1927, 0.0
        %v2702 = vmax.f32 %v1932, 0.0
        %v2703 = vmax.f32 %v1937, 0.0
        %v2704 = vmax.f32 %v1942, 0.0
        %v2705 = vmax.f32 %v1947, 0.0
        %v2706 = vmax.f32 %v1952, 0.0
        %v2707 = vmax.f32 %v1957, 0.0
        %v2708 = vmax.f32 %v1962, 0.0
        %v2709 = vmax.f32 %v1967, 0.0
        %v2710 = vmax.f32 %v1972, 0.0
        %v2711 = vmax.f32 %v1977, 0.0
        %v2712 = vmax.f32 %v1982, 0.0
        %v2713 = vmax.f32 %v1987, 0.0
        %v2714 = vmax.f32 %v1992, 0.0
        %v2715 = vmax.f32 %v1997, 0.0
        %v2716 = vmax.f32 %v2002, 0.0
        %v2717 = vmax.f32 %v2007, 0.0
        %v2718 = vmax.f32 %v2012, 0.0
        %v2719 = vmax.f32 %v2017, 0.0
        %v2720 = vmax.f32 %v2022, 0.0
        %v2721 = vmax.f32 %v2027, 0.0
        %v2722 = vmax.f32 %v2032, 0.0
        %v2723 = vmax.f32 %v2037, 0.0
        %v2724 = vmax.f32 %v2042, 0.0
        %v2725 = vmax.f32 %v2047, 0.0
        %v2726 = vmax.f32 %v2052, 0.0
        %v2727 = vmax.f32 %v2057, 0.0
        %v2728 = vmax.f32 %v2062, 0.0
        %v2729 = vmax.f32 %v2067, 0.0
        %v2730 = vmax.f32 %v2072, 0.0
        %v2731 = vmax.f32 %v2077, 0.0
        %v2732 = vmax.f32 %v2082, 0.0
        %v2733 = vmax.f32 %v2087, 0.0
        %v2734 = vmax.f32 %v2092, 0.0
        %v2735 = vmax.f32 %v2097, 0.0
        %v2736 = vmax.f32 %v2102, 0.0
        %v2737 = vmax.f32 %v2107, 0.0
        %v2738 = vmax.f32 %v2112, 0.0
        %v2739 = vmax.f32 %v2117, 0.0
        %v2740 = vmax.f32 %v2122, 0.0
        %v2741 = vmax.f32 %v2127, 0.0
        %v2742 = vmax.f32 %v2132, 0.0
        %v2743 = vmax.f32 %v2137, 0.0
        %v2744 = vmax.f32 %v2142, 0.0
        %v2745 = vmax.f32 %v2147, 0.0
        %v2746 = vmax.f32 %v2152, 0.0
        %v2747 = vmax.f32 %v2157, 0.0
        %v2748 = vmax.f32 %v2162, 0.0
        %v2749 = vmax.f32 %v2167, 0.0
        %v2750 = vmax.f32 %v2172, 0.0
        %v2751 = vmax.f32 %v2177, 0.0
        %v2752 = vmax.f32 %v2182, 0.0
        %v2753 = vmax.f32 %v2187, 0.0
        %v2754 = vmax.f32 %v2192, 0.0
        %v2755 = vmax.f32 %v2197, 0.0
        %v2756 = vmax.f32 %v2202, 0.0
        %v2757 = vmax.f32 %v2207, 0.0
        %v2758 = vmax.f32 %v2212, 0.0
        %v2759 = vmax.f32 %v2217, 0.0
        %v2760 = vmax.f32 %v2222, 0.0
        %v2761 = vmax.f32 %v2227, 0.0
        %v2762 = vmax.f32 %v2232, 0.0
        %v2763 = vmax.f32 %v2237, 0.0
        %v2764 = vmax.f32 %v2242, 0.0
        %v2765 = vmax.f32 %v2247, 0.0
        %v2766 = vmax.f32 %v2252, 0.0
        %v2767 = vmax.f32 %v2257, 0.0
        %v2768 = vmax.f32 %v2262, 0.0
        %v2769 = vmax.f32 %v2267, 0.0
        %v2770 = vmax.f32 %v2272, 0.0
        %v2771 = vmax.f32 %v2277, 0.0
        %v2772 = vmax.f32 %v2282, 0.0
        %v2773 = vmax.f32 %v2287, 0.0
        %v2774 = vmax.f32 %v2292, 0.0
        %v2775 = vmax.f32 %v2297, 0.0
        %v2776 = vmax.f32 %v2302, 0.0
        %v2777 = vmax.f32 %v2307, 0.0
        %v2778 = vmax.f32 %v2312, 0.0
        %v2779 = vmax.f32 %v2317, 0.0
        %v2780 = vmax.f32 %v2322, 0.0
        %v2781 = vmax.f32 %v2327, 0.0
        %v2782 = vmax.f32 %v2332, 0.0
        %v2783 = vmax.f32 %v2337, 0.0
        %v2784 = vmax.f32 %v2342, 0.0
        %v2785 = vmax.f32 %v2347, 0.0
        %v2786 = vmax.f32 %v2352, 0.0
        %v2787 = vmax.f32 %v2357, 0.0
        %v2788 = vmax.f32 %v2362, 0.0
        %v2789 = vmax.f32 %v2367, 0.0
        %v2790 = vmax.f32 %v2372, 0.0
        %v2791 = vmax.f32 %v2377, 0.0
        %v2792 = vmax.f32 %v2382, 0.0
        %v2793 = vmax.f32 %v2387, 0.0
        %v2794 = vmax.f32 %v2392, 0.0
        %v2795 = vmax.f32 %v2397, 0.0
        %v2796 = vmax.f32 %v2402, 0.0
        %v2797 = vmax.f32 %v2407, 0.0
        %v2798 = vmax.f32 %v2412, 0.0
        %v2799 = vmax.f32 %v2417, 0.0
        %v2800 = vmax.f32 %v2422, 0.0
        %v2801 = vmax.f32 %v2427, 0.0
        %v2802 = vmax.f32 %v2432, 0.0
        %v2803 = vmax.f32 %v2437, 0.0
        %v2804 = vmax.f32 %v2442, 0.0
        %v2805 = vmax.f32 %v2447, 0.0
        %v2806 = vmax.f32 %v2452, 0.0
        %v2807 = vmax.f32 %v2457, 0.0
        %v2808 = vmax.f32 %v2462, 0.0
        %v2809 = vmax.f32 %v2467, 0.0
        %v2810 = vmax.f32 %v2472, 0.0
        %v2811 = vmax.f32 %v2477, 0.0
        %v2812 = vmax.f32 %v2482, 0.0
        %v2813 = vmax.f32 %v2487, 0.0
        %v2814 = vmax.f32 %v2492, 0.0
        %v2815 = vmax.f32 %v2497, 0.0
        %v2816 = vmax.f32 %v2502, 0.0
        %v2817 = vmax.f32 %v2507, 0.0
        %v2818 = vmax.f32 %v2512, 0.0
        %v2819 = vmax.f32 %v2517, 0.0
        %v2820 = vmax.f32 %v2522, 0.0
        %v2821 = vmax.f32 %v2527, 0.0
        %v2822 = vmax.f32 %v2532, 0.0
        %v2823 = vmax.f32 %v2537, 0.0
        %v2824 = vmax.f32 %v2542, 0.0
        %v2825 = vmax.f32 %v2547, 0.0
        %v2826 = vmax.f32 %v2552, 0.0
        %v2827 = vmax.f32 %v2557, 0.0
        %v2828 = vmax.f32 %v2562, 0.0
        %v2829 = vmax.f32 %v2567, 0.0
        %v2830 = vmax.f32 %v2572, 0.0
        %vm2831 = vcmask 261120
        %v2832 = vsel %vm2831, %v2575, -inf
        %v2833 = vsel %vm2831, %v2576, -inf
        %v2834 = vmax.f32 %v2832, %v2833
        %v2835 = vsel %vm2831, %v2577, -inf
        %v2836 = vmax.f32 %v2834, %v2835
        %v2837 = vsel %vm2831, %v2578, -inf
        %v2838 = vmax.f32 %v2836, %v2837
        %v2839 = vrot.slane %v2838, 4
        %v2840 = vmax.f32 %v2838, %v2839
        %v2841 = vrot.slane %v2840, 2
        %v2842 = vmax.f32 %v2840, %v2841
        %v2843 = vrot.slane %v2842, 1
        %v2844 = vmax.f32 %v2842, %v2843
        %v2845 = vsel %vm2831, %v2579, -inf
        %v2846 = vsel %vm2831, %v2580, -inf
        %v2847 = vmax.f32 %v2845, %v2846
        %v2848 = vsel %vm2831, %v2581, -inf
        %v2849 = vmax.f32 %v2847, %v2848
        %v2850 = vsel %vm2831, %v2582, -inf
        %v2851 = vmax.f32 %v2849, %v2850
        %v2852 = vrot.slane %v2851, 4
        %v2853 = vmax.f32 %v2851, %v2852
        %v2854 = vrot.slane %v2853, 2
        %v2855 = vmax.f32 %v2853, %v2854
        %v2856 = vrot.slane %v2855, 1
        %v2857 = vmax.f32 %v2855, %v2856
        %v2858 = vsel %vm2831, %v2583, -inf
        %v2859 = vsel %vm2831, %v2584, -inf
        %v2860 = vmax.f32 %v2858, %v2859
        %v2861 = vsel %vm2831, %v2585, -inf
        %v2862 = vmax.f32 %v2860, %v2861
        %v2863 = vsel %vm2831, %v2586, -inf
        %v2864 = vmax.f32 %v2862, %v2863
        %v2865 = vrot.slane %v2864, 4
        %v2866 = vmax.f32 %v2864, %v2865
        %v2867 = vrot.slane %v2866, 2
        %v2868 = vmax.f32 %v2866, %v2867
        %v2869 = vrot.slane %v2868, 1
        %v2870 = vmax.f32 %v2868, %v2869
        %v2871 = vsel %vm2831, %v2587, -inf
        %v2872 = vsel %vm2831, %v2588, -inf
        %v2873 = vmax.f32 %v2871, %v2872
        %v2874 = vsel %vm2831, %v2589, -inf
        %v2875 = vmax.f32 %v2873, %v2874
        %v2876 = vsel %vm2831, %v2590, -inf
        %v2877 = vmax.f32 %v2875, %v2876
        %v2878 = vrot.slane %v2877, 4
        %v2879 = vmax.f32 %v2877, %v2878
        %v2880 = vrot.slane %v2879, 2
        %v2881 = vmax.f32 %v2879, %v2880
        %v2882 = vrot.slane %v2881, 1
        %v2883 = vmax.f32 %v2881, %v2882
        %v2884 = vsel %vm2831, %v2591, -inf
        %v2885 = vsel %vm2831, %v2592, -inf
        %v2886 = vmax.f32 %v2884, %v2885
        %v2887 = vsel %vm2831, %v2593, -inf
        %v2888 = vmax.f32 %v2886, %v2887
        %v2889 = vsel %vm2831, %v2594, -inf
        %v2890 = vmax.f32 %v2888, %v2889
        %v2891 = vrot.slane %v2890, 4
        %v2892 = vmax.f32 %v2890, %v2891
        %v2893 = vrot.slane %v2892, 2
        %v2894 = vmax.f32 %v2892, %v2893
        %v2895 = vrot.slane %v2894, 1
        %v2896 = vmax.f32 %v2894, %v2895
        %v2897 = vsel %vm2831, %v2595, -inf
        %v2898 = vsel %vm2831, %v2596, -inf
        %v2899 = vmax.f32 %v2897, %v2898
        %v2900 = vsel %vm2831, %v2597, -inf
        %v2901 = vmax.f32 %v2899, %v2900
        %v2902 = vsel %vm2831, %v2598, -inf
        %v2903 = vmax.f32 %v2901, %v2902
        %v2904 = vrot.slane %v2903, 4
        %v2905 = vmax.f32 %v2903, %v2904
        %v2906 = vrot.slane %v2905, 2
        %v2907 = vmax.f32 %v2905, %v2906
        %v2908 = vrot.slane %v2907, 1
        %v2909 = vmax.f32 %v2907, %v2908
        %v2910 = vsel %vm2831, %v2599, -inf
        %v2911 = vsel %vm2831, %v2600, -inf
        %v2912 = vmax.f32 %v2910, %v2911
        %v2913 = vsel %vm2831, %v2601, -inf
        %v2914 = vmax.f32 %v2912, %v2913
        %v2915 = vsel %vm2831, %v2602, -inf
        %v2916 = vmax.f32 %v2914, %v2915
        %v2917 = vrot.slane %v2916, 4
        %v2918 = vmax.f32 %v2916, %v2917
        %v2919 = vrot.slane %v2918, 2
        %v2920 = vmax.f32 %v2918, %v2919
        %v2921 = vrot.slane %v2920, 1
        %v2922 = vmax.f32 %v2920, %v2921
        %v2923 = vsel %vm2831, %v2603, -inf
        %v2924 = vsel %vm2831, %v2604, -inf
        %v2925 = vmax.f32 %v2923, %v2924
        %v2926 = vsel %vm2831, %v2605, -inf
        %v2927 = vmax.f32 %v2925, %v2926
        %v2928 = vsel %vm2831, %v2606, -inf
        %v2929 = vmax.f32 %v2927, %v2928
        %v2930 = vrot.slane %v2929, 4
        %v2931 = vmax.f32 %v2929, %v2930
        %v2932 = vrot.slane %v2931, 2
        %v2933 = vmax.f32 %v2931, %v2932
        %v2934 = vrot.slane %v2933, 1
        %v2935 = vmax.f32 %v2933, %v2934
        %v2936 = vsel %vm2831, %v2607, -inf
        %v2937 = vsel %vm2831, %v2608, -inf
        %v2938 = vmax.f32 %v2936, %v2937
        %v2939 = vsel %vm2831, %v2609, -inf
        %v2940 = vmax.f32 %v2938, %v2939
        %v2941 = vsel %vm2831, %v2610, -inf
        %v2942 = vmax.f32 %v2940, %v2941
        %v2943 = vrot.slane %v2942, 4
        %v2944 = vmax.f32 %v2942, %v2943
        %v2945 = vrot.slane %v2944, 2
        %v2946 = vmax.f32 %v2944, %v2945
        %v2947 = vrot.slane %v2946, 1
        %v2948 = vmax.f32 %v2946, %v2947
        %v2949 = vsel %vm2831, %v2611, -inf
        %v2950 = vsel %vm2831, %v2612, -inf
        %v2951 = vmax.f32 %v2949, %v2950
        %v2952 = vsel %vm2831, %v2613, -inf
        %v2953 = vmax.f32 %v2951, %v2952
        %v2954 = vsel %vm2831, %v2614, -inf
        %v2955 = vmax.f32 %v2953, %v2954
        %v2956 = vrot.slane %v2955, 4
        %v2957 = vmax.f32 %v2955, %v2956
        %v2958 = vrot.slane %v2957, 2
        %v2959 = vmax.f32 %v2957, %v2958
        %v2960 = vrot.slane %v2959, 1
        %v2961 = vmax.f32 %v2959, %v2960
        %v2962 = vsel %vm2831, %v2615, -inf
        %v2963 = vsel %vm2831, %v2616, -inf
        %v2964 = vmax.f32 %v2962, %v2963
        %v2965 = vsel %vm2831, %v2617, -inf
        %v2966 = vmax.f32 %v2964, %v2965
        %v2967 = vsel %vm2831, %v2618, -inf
        %v2968 = vmax.f32 %v2966, %v2967
        %v2969 = vrot.slane %v2968, 4
        %v2970 = vmax.f32 %v2968, %v2969
        %v2971 = vrot.slane %v2970, 2
        %v2972 = vmax.f32 %v2970, %v2971
        %v2973 = vrot.slane %v2972, 1
        %v2974 = vmax.f32 %v2972, %v2973
        %v2975 = vsel %vm2831, %v2619, -inf
        %v2976 = vsel %vm2831, %v2620, -inf
        %v2977 = vmax.f32 %v2975, %v2976
        %v2978 = vsel %vm2831, %v2621, -inf
        %v2979 = vmax.f32 %v2977, %v2978
        %v2980 = vsel %vm2831, %v2622, -inf
        %v2981 = vmax.f32 %v2979, %v2980
        %v2982 = vrot.slane %v2981, 4
        %v2983 = vmax.f32 %v2981, %v2982
        %v2984 = vrot.slane %v2983, 2
        %v2985 = vmax.f32 %v2983, %v2984
        %v2986 = vrot.slane %v2985, 1
        %v2987 = vmax.f32 %v2985, %v2986
        %v2988 = vsel %vm2831, %v2623, -inf
        %v2989 = vsel %vm2831, %v2624, -inf
        %v2990 = vmax.f32 %v2988, %v2989
        %v2991 = vsel %vm2831, %v2625, -inf
        %v2992 = vmax.f32 %v2990, %v2991
        %v2993 = vsel %vm2831, %v2626, -inf
        %v2994 = vmax.f32 %v2992, %v2993
        %v2995 = vrot.slane %v2994, 4
        %v2996 = vmax.f32 %v2994, %v2995
        %v2997 = vrot.slane %v2996, 2
        %v2998 = vmax.f32 %v2996, %v2997
        %v2999 = vrot.slane %v2998, 1
        %v3000 = vmax.f32 %v2998, %v2999
        %v3001 = vsel %vm2831, %v2627, -inf
        %v3002 = vsel %vm2831, %v2628, -inf
        %v3003 = vmax.f32 %v3001, %v3002
        %v3004 = vsel %vm2831, %v2629, -inf
        %v3005 = vmax.f32 %v3003, %v3004
        %v3006 = vsel %vm2831, %v2630, -inf
        %v3007 = vmax.f32 %v3005, %v3006
        %v3008 = vrot.slane %v3007, 4
        %v3009 = vmax.f32 %v3007, %v3008
        %v3010 = vrot.slane %v3009, 2
        %v3011 = vmax.f32 %v3009, %v3010
        %v3012 = vrot.slane %v3011, 1
        %v3013 = vmax.f32 %v3011, %v3012
        %v3014 = vsel %vm2831, %v2631, -inf
        %v3015 = vsel %vm2831, %v2632, -inf
        %v3016 = vmax.f32 %v3014, %v3015
        %v3017 = vsel %vm2831, %v2633, -inf
        %v3018 = vmax.f32 %v3016, %v3017
        %v3019 = vsel %vm2831, %v2634, -inf
        %v3020 = vmax.f32 %v3018, %v3019
        %v3021 = vrot.slane %v3020, 4
        %v3022 = vmax.f32 %v3020, %v3021
        %v3023 = vrot.slane %v3022, 2
        %v3024 = vmax.f32 %v3022, %v3023
        %v3025 = vrot.slane %v3024, 1
        %v3026 = vmax.f32 %v3024, %v3025
        %v3027 = vsel %vm2831, %v2635, -inf
        %v3028 = vsel %vm2831, %v2636, -inf
        %v3029 = vmax.f32 %v3027, %v3028
        %v3030 = vsel %vm2831, %v2637, -inf
        %v3031 = vmax.f32 %v3029, %v3030
        %v3032 = vsel %vm2831, %v2638, -inf
        %v3033 = vmax.f32 %v3031, %v3032
        %v3034 = vrot.slane %v3033, 4
        %v3035 = vmax.f32 %v3033, %v3034
        %v3036 = vrot.slane %v3035, 2
        %v3037 = vmax.f32 %v3035, %v3036
        %v3038 = vrot.slane %v3037, 1
        %v3039 = vmax.f32 %v3037, %v3038
        %v3040 = vsel %vm2831, %v2639, -inf
        %v3041 = vsel %vm2831, %v2640, -inf
        %v3042 = vmax.f32 %v3040, %v3041
        %v3043 = vsel %vm2831, %v2641, -inf
        %v3044 = vmax.f32 %v3042, %v3043
        %v3045 = vsel %vm2831, %v2642, -inf
        %v3046 = vmax.f32 %v3044, %v3045
        %v3047 = vrot.slane %v3046, 4
        %v3048 = vmax.f32 %v3046, %v3047
        %v3049 = vrot.slane %v3048, 2
        %v3050 = vmax.f32 %v3048, %v3049
        %v3051 = vrot.slane %v3050, 1
        %v3052 = vmax.f32 %v3050, %v3051
        %v3053 = vsel %vm2831, %v2643, -inf
        %v3054 = vsel %vm2831, %v2644, -inf
        %v3055 = vmax.f32 %v3053, %v3054
        %v3056 = vsel %vm2831, %v2645, -inf
        %v3057 = vmax.f32 %v3055, %v3056
        %v3058 = vsel %vm2831, %v2646, -inf
        %v3059 = vmax.f32 %v3057, %v3058
        %v3060 = vrot.slane %v3059, 4
        %v3061 = vmax.f32 %v3059, %v3060
        %v3062 = vrot.slane %v3061, 2
        %v3063 = vmax.f32 %v3061, %v3062
        %v3064 = vrot.slane %v3063, 1
        %v3065 = vmax.f32 %v3063, %v3064
        %v3066 = vsel %vm2831, %v2647, -inf
        %v3067 = vsel %vm2831, %v2648, -inf
        %v3068 = vmax.f32 %v3066, %v3067
        %v3069 = vsel %vm2831, %v2649, -inf
        %v3070 = vmax.f32 %v3068, %v3069
        %v3071 = vsel %vm2831, %v2650, -inf
        %v3072 = vmax.f32 %v3070, %v3071
        %v3073 = vrot.slane %v3072, 4
        %v3074 = vmax.f32 %v3072, %v3073
        %v3075 = vrot.slane %v3074, 2
        %v3076 = vmax.f32 %v3074, %v3075
        %v3077 = vrot.slane %v3076, 1
        %v3078 = vmax.f32 %v3076, %v3077
        %v3079 = vsel %vm2831, %v2651, -inf
        %v3080 = vsel %vm2831, %v2652, -inf
        %v3081 = vmax.f32 %v3079, %v3080
        %v3082 = vsel %vm2831, %v2653, -inf
        %v3083 = vmax.f32 %v3081, %v3082
        %v3084 = vsel %vm2831, %v2654, -inf
        %v3085 = vmax.f32 %v3083, %v3084
        %v3086 = vrot.slane %v3085, 4
        %v3087 = vmax.f32 %v3085, %v3086
        %v3088 = vrot.slane %v3087, 2
        %v3089 = vmax.f32 %v3087, %v3088
        %v3090 = vrot.slane %v3089, 1
        %v3091 = vmax.f32 %v3089, %v3090
        %v3092 = vsel %vm2831, %v2655, -inf
        %v3093 = vsel %vm2831, %v2656, -inf
        %v3094 = vmax.f32 %v3092, %v3093
        %v3095 = vsel %vm2831, %v2657, -inf
        %v3096 = vmax.f32 %v3094, %v3095
        %v3097 = vsel %vm2831, %v2658, -inf
        %v3098 = vmax.f32 %v3096, %v3097
        %v3099 = vrot.slane %v3098, 4
        %v3100 = vmax.f32 %v3098, %v3099
        %v3101 = vrot.slane %v3100, 2
        %v3102 = vmax.f32 %v3100, %v3101
        %v3103 = vrot.slane %v3102, 1
        %v3104 = vmax.f32 %v3102, %v3103
        %v3105 = vsel %vm2831, %v2659, -inf
        %v3106 = vsel %vm2831, %v2660, -inf
        %v3107 = vmax.f32 %v3105, %v3106
        %v3108 = vsel %vm2831, %v2661, -inf
        %v3109 = vmax.f32 %v3107, %v3108
        %v3110 = vsel %vm2831, %v2662, -inf
        %v3111 = vmax.f32 %v3109, %v3110
        %v3112 = vrot.slane %v3111, 4
        %v3113 = vmax.f32 %v3111, %v3112
        %v3114 = vrot.slane %v3113, 2
        %v3115 = vmax.f32 %v3113, %v3114
        %v3116 = vrot.slane %v3115, 1
        %v3117 = vmax.f32 %v3115, %v3116
        %v3118 = vsel %vm2831, %v2663, -inf
        %v3119 = vsel %vm2831, %v2664, -inf
        %v3120 = vmax.f32 %v3118, %v3119
        %v3121 = vsel %vm2831, %v2665, -inf
        %v3122 = vmax.f32 %v3120, %v3121
        %v3123 = vsel %vm2831, %v2666, -inf
        %v3124 = vmax.f32 %v3122, %v3123
        %v3125 = vrot.slane %v3124, 4
        %v3126 = vmax.f32 %v3124, %v3125
        %v3127 = vrot.slane %v3126, 2
        %v3128 = vmax.f32 %v3126, %v3127
        %v3129 = vrot.slane %v3128, 1
        %v3130 = vmax.f32 %v3128, %v3129
        %v3131 = vsel %vm2831, %v2667, -inf
        %v3132 = vsel %vm2831, %v2668, -inf
        %v3133 = vmax.f32 %v3131, %v3132
        %v3134 = vsel %vm2831, %v2669, -inf
        %v3135 = vmax.f32 %v3133, %v3134
        %v3136 = vsel %vm2831, %v2670, -inf
        %v3137 = vmax.f32 %v3135, %v3136
        %v3138 = vrot.slane %v3137, 4
        %v3139 = vmax.f32 %v3137, %v3138
        %v3140 = vrot.slane %v3139, 2
        %v3141 = vmax.f32 %v3139, %v3140
        %v3142 = vrot.slane %v3141, 1
        %v3143 = vmax.f32 %v3141, %v3142
        %v3144 = vsel %vm2831, %v2671, -inf
        %v3145 = vsel %vm2831, %v2672, -inf
        %v3146 = vmax.f32 %v3144, %v3145
        %v3147 = vsel %vm2831, %v2673, -inf
        %v3148 = vmax.f32 %v3146, %v3147
        %v3149 = vsel %vm2831, %v2674, -inf
        %v3150 = vmax.f32 %v3148, %v3149
        %v3151 = vrot.slane %v3150, 4
        %v3152 = vmax.f32 %v3150, %v3151
        %v3153 = vrot.slane %v3152, 2
        %v3154 = vmax.f32 %v3152, %v3153
        %v3155 = vrot.slane %v3154, 1
        %v3156 = vmax.f32 %v3154, %v3155
        %v3157 = vsel %vm2831, %v2675, -inf
        %v3158 = vsel %vm2831, %v2676, -inf
        %v3159 = vmax.f32 %v3157, %v3158
        %v3160 = vsel %vm2831, %v2677, -inf
        %v3161 = vmax.f32 %v3159, %v3160
        %v3162 = vsel %vm2831, %v2678, -inf
        %v3163 = vmax.f32 %v3161, %v3162
        %v3164 = vrot.slane %v3163, 4
        %v3165 = vmax.f32 %v3163, %v3164
        %v3166 = vrot.slane %v3165, 2
        %v3167 = vmax.f32 %v3165, %v3166
        %v3168 = vrot.slane %v3167, 1
        %v3169 = vmax.f32 %v3167, %v3168
        %v3170 = vsel %vm2831, %v2679, -inf
        %v3171 = vsel %vm2831, %v2680, -inf
        %v3172 = vmax.f32 %v3170, %v3171
        %v3173 = vsel %vm2831, %v2681, -inf
        %v3174 = vmax.f32 %v3172, %v3173
        %v3175 = vsel %vm2831, %v2682, -inf
        %v3176 = vmax.f32 %v3174, %v3175
        %v3177 = vrot.slane %v3176, 4
        %v3178 = vmax.f32 %v3176, %v3177
        %v3179 = vrot.slane %v3178, 2
        %v3180 = vmax.f32 %v3178, %v3179
        %v3181 = vrot.slane %v3180, 1
        %v3182 = vmax.f32 %v3180, %v3181
        %v3183 = vsel %vm2831, %v2683, -inf
        %v3184 = vsel %vm2831, %v2684, -inf
        %v3185 = vmax.f32 %v3183, %v3184
        %v3186 = vsel %vm2831, %v2685, -inf
        %v3187 = vmax.f32 %v3185, %v3186
        %v3188 = vsel %vm2831, %v2686, -inf
        %v3189 = vmax.f32 %v3187, %v3188
        %v3190 = vrot.slane %v3189, 4
        %v3191 = vmax.f32 %v3189, %v3190
        %v3192 = vrot.slane %v3191, 2
        %v3193 = vmax.f32 %v3191, %v3192
        %v3194 = vrot.slane %v3193, 1
        %v3195 = vmax.f32 %v3193, %v3194
        %v3196 = vsel %vm2831, %v2687, -inf
        %v3197 = vsel %vm2831, %v2688, -inf
        %v3198 = vmax.f32 %v3196, %v3197
        %v3199 = vsel %vm2831, %v2689, -inf
        %v3200 = vmax.f32 %v3198, %v3199
        %v3201 = vsel %vm2831, %v2690, -inf
        %v3202 = vmax.f32 %v3200, %v3201
        %v3203 = vrot.slane %v3202, 4
        %v3204 = vmax.f32 %v3202, %v3203
        %v3205 = vrot.slane %v3204, 2
        %v3206 = vmax.f32 %v3204, %v3205
        %v3207 = vrot.slane %v3206, 1
        %v3208 = vmax.f32 %v3206, %v3207
        %v3209 = vsel %vm2831, %v2691, -inf
        %v3210 = vsel %vm2831, %v2692, -inf
        %v3211 = vmax.f32 %v3209, %v3210
        %v3212 = vsel %vm2831, %v2693, -inf
        %v3213 = vmax.f32 %v3211, %v3212
        %v3214 = vsel %vm2831, %v2694, -inf
        %v3215 = vmax.f32 %v3213, %v3214
        %v3216 = vrot.slane %v3215, 4
        %v3217 = vmax.f32 %v3215, %v3216
        %v3218 = vrot.slane %v3217, 2
        %v3219 = vmax.f32 %v3217, %v3218
        %v3220 = vrot.slane %v3219, 1
        %v3221 = vmax.f32 %v3219, %v3220
        %v3222 = vsel %vm2831, %v2695, -inf
        %v3223 = vsel %vm2831, %v2696, -inf
        %v3224 = vmax.f32 %v3222, %v3223
        %v3225 = vsel %vm2831, %v2697, -inf
        %v3226 = vmax.f32 %v3224, %v3225
        %v3227 = vsel %vm2831, %v2698, -inf
        %v3228 = vmax.f32 %v3226, %v3227
        %v3229 = vrot.slane %v3228, 4
        %v3230 = vmax.f32 %v3228, %v3229
        %v3231 = vrot.slane %v3230, 2
        %v3232 = vmax.f32 %v3230, %v3231
        %v3233 = vrot.slane %v3232, 1
        %v3234 = vmax.f32 %v3232, %v3233
        %v3235 = vsel %vm2831, %v2699, -inf
        %v3236 = vsel %vm2831, %v2700, -inf
        %v3237 = vmax.f32 %v3235, %v3236
        %v3238 = vsel %vm2831, %v2701, -inf
        %v3239 = vmax.f32 %v3237, %v3238
        %v3240 = vsel %vm2831, %v2702, -inf
        %v3241 = vmax.f32 %v3239, %v3240
        %v3242 = vrot.slane %v3241, 4
        %v3243 = vmax.f32 %v3241, %v3242
        %v3244 = vrot.slane %v3243, 2
        %v3245 = vmax.f32 %v3243, %v3244
        %v3246 = vrot.slane %v3245, 1
        %v3247 = vmax.f32 %v3245, %v3246
        %v3248 = vsel %vm2831, %v2703, -inf
        %v3249 = vsel %vm2831, %v2704, -inf
        %v3250 = vmax.f32 %v3248, %v3249
        %v3251 = vsel %vm2831, %v2705, -inf
        %v3252 = vmax.f32 %v3250, %v3251
        %v3253 = vsel %vm2831, %v2706, -inf
        %v3254 = vmax.f32 %v3252, %v3253
        %v3255 = vrot.slane %v3254, 4
        %v3256 = vmax.f32 %v3254, %v3255
        %v3257 = vrot.slane %v3256, 2
        %v3258 = vmax.f32 %v3256, %v3257
        %v3259 = vrot.slane %v3258, 1
        %v3260 = vmax.f32 %v3258, %v3259
        %v3261 = vsel %vm2831, %v2707, -inf
        %v3262 = vsel %vm2831, %v2708, -inf
        %v3263 = vmax.f32 %v3261, %v3262
        %v3264 = vsel %vm2831, %v2709, -inf
        %v3265 = vmax.f32 %v3263, %v3264
        %v3266 = vsel %vm2831, %v2710, -inf
        %v3267 = vmax.f32 %v3265, %v3266
        %v3268 = vrot.slane %v3267, 4
        %v3269 = vmax.f32 %v3267, %v3268
        %v3270 = vrot.slane %v3269, 2
        %v3271 = vmax.f32 %v3269, %v3270
        %v3272 = vrot.slane %v3271, 1
        %v3273 = vmax.f32 %v3271, %v3272
        %v3274 = vsel %vm2831, %v2711, -inf
        %v3275 = vsel %vm2831, %v2712, -inf
        %v3276 = vmax.f32 %v3274, %v3275
        %v3277 = vsel %vm2831, %v2713, -inf
        %v3278 = vmax.f32 %v3276, %v3277
        %v3279 = vsel %vm2831, %v2714, -inf
        %v3280 = vmax.f32 %v3278, %v3279
        %v3281 = vrot.slane %v3280, 4
        %v3282 = vmax.f32 %v3280, %v3281
        %v3283 = vrot.slane %v3282, 2
        %v3284 = vmax.f32 %v3282, %v3283
        %v3285 = vrot.slane %v3284, 1
        %v3286 = vmax.f32 %v3284, %v3285
        %v3287 = vsel %vm2831, %v2715, -inf
        %v3288 = vsel %vm2831, %v2716, -inf
        %v3289 = vmax.f32 %v3287, %v3288
        %v3290 = vsel %vm2831, %v2717, -inf
        %v3291 = vmax.f32 %v3289, %v3290
        %v3292 = vsel %vm2831, %v2718, -inf
        %v3293 = vmax.f32 %v3291, %v3292
        %v3294 = vrot.slane %v3293, 4
        %v3295 = vmax.f32 %v3293, %v3294
        %v3296 = vrot.slane %v3295, 2
        %v3297 = vmax.f32 %v3295, %v3296
        %v3298 = vrot.slane %v3297, 1
        %v3299 = vmax.f32 %v3297, %v3298
        %v3300 = vsel %vm2831, %v2719, -inf
        %v3301 = vsel %vm2831, %v2720, -inf
        %v3302 = vmax.f32 %v3300, %v3301
        %v3303 = vsel %vm2831, %v2721, -inf
        %v3304 = vmax.f32 %v3302, %v3303
        %v3305 = vsel %vm2831, %v2722, -inf
        %v3306 = vmax.f32 %v3304, %v3305
        %v3307 = vrot.slane %v3306, 4
        %v3308 = vmax.f32 %v3306, %v3307
        %v3309 = vrot.slane %v3308, 2
        %v3310 = vmax.f32 %v3308, %v3309
        %v3311 = vrot.slane %v3310, 1
        %v3312 = vmax.f32 %v3310, %v3311
        %v3313 = vsel %vm2831, %v2723, -inf
        %v3314 = vsel %vm2831, %v2724, -inf
        %v3315 = vmax.f32 %v3313, %v3314
        %v3316 = vsel %vm2831, %v2725, -inf
        %v3317 = vmax.f32 %v3315, %v3316
        %v3318 = vsel %vm2831, %v2726, -inf
        %v3319 = vmax.f32 %v3317, %v3318
        %v3320 = vrot.slane %v3319, 4
        %v3321 = vmax.f32 %v3319, %v3320
        %v3322 = vrot.slane %v3321, 2
        %v3323 = vmax.f32 %v3321, %v3322
        %v3324 = vrot.slane %v3323, 1
        %v3325 = vmax.f32 %v3323, %v3324
        %v3326 = vsel %vm2831, %v2727, -inf
        %v3327 = vsel %vm2831, %v2728, -inf
        %v3328 = vmax.f32 %v3326, %v3327
        %v3329 = vsel %vm2831, %v2729, -inf
        %v3330 = vmax.f32 %v3328, %v3329
        %v3331 = vsel %vm2831, %v2730, -inf
        %v3332 = vmax.f32 %v3330, %v3331
        %v3333 = vrot.slane %v3332, 4
        %v3334 = vmax.f32 %v3332, %v3333
        %v3335 = vrot.slane %v3334, 2
        %v3336 = vmax.f32 %v3334, %v3335
        %v3337 = vrot.slane %v3336, 1
        %v3338 = vmax.f32 %v3336, %v3337
        %v3339 = vsel %vm2831, %v2731, -inf
        %v3340 = vsel %vm2831, %v2732, -inf
        %v3341 = vmax.f32 %v3339, %v3340
        %v3342 = vsel %vm2831, %v2733, -inf
        %v3343 = vmax.f32 %v3341, %v3342
        %v3344 = vsel %vm2831, %v2734, -inf
        %v3345 = vmax.f32 %v3343, %v3344
        %v3346 = vrot.slane %v3345, 4
        %v3347 = vmax.f32 %v3345, %v3346
        %v3348 = vrot.slane %v3347, 2
        %v3349 = vmax.f32 %v3347, %v3348
        %v3350 = vrot.slane %v3349, 1
        %v3351 = vmax.f32 %v3349, %v3350
        %v3352 = vsel %vm2831, %v2735, -inf
        %v3353 = vsel %vm2831, %v2736, -inf
        %v3354 = vmax.f32 %v3352, %v3353
        %v3355 = vsel %vm2831, %v2737, -inf
        %v3356 = vmax.f32 %v3354, %v3355
        %v3357 = vsel %vm2831, %v2738, -inf
        %v3358 = vmax.f32 %v3356, %v3357
        %v3359 = vrot.slane %v3358, 4
        %v3360 = vmax.f32 %v3358, %v3359
        %v3361 = vrot.slane %v3360, 2
        %v3362 = vmax.f32 %v3360, %v3361
        %v3363 = vrot.slane %v3362, 1
        %v3364 = vmax.f32 %v3362, %v3363
        %v3365 = vsel %vm2831, %v2739, -inf
        %v3366 = vsel %vm2831, %v2740, -inf
        %v3367 = vmax.f32 %v3365, %v3366
        %v3368 = vsel %vm2831, %v2741, -inf
        %v3369 = vmax.f32 %v3367, %v3368
        %v3370 = vsel %vm2831, %v2742, -inf
        %v3371 = vmax.f32 %v3369, %v3370
        %v3372 = vrot.slane %v3371, 4
        %v3373 = vmax.f32 %v3371, %v3372
        %v3374 = vrot.slane %v3373, 2
        %v3375 = vmax.f32 %v3373, %v3374
        %v3376 = vrot.slane %v3375, 1
        %v3377 = vmax.f32 %v3375, %v3376
        %v3378 = vsel %vm2831, %v2743, -inf
        %v3379 = vsel %vm2831, %v2744, -inf
        %v3380 = vmax.f32 %v3378, %v3379
        %v3381 = vsel %vm2831, %v2745, -inf
        %v3382 = vmax.f32 %v3380, %v3381
        %v3383 = vsel %vm2831, %v2746, -inf
        %v3384 = vmax.f32 %v3382, %v3383
        %v3385 = vrot.slane %v3384, 4
        %v3386 = vmax.f32 %v3384, %v3385
        %v3387 = vrot.slane %v3386, 2
        %v3388 = vmax.f32 %v3386, %v3387
        %v3389 = vrot.slane %v3388, 1
        %v3390 = vmax.f32 %v3388, %v3389
        %v3391 = vsel %vm2831, %v2747, -inf
        %v3392 = vsel %vm2831, %v2748, -inf
        %v3393 = vmax.f32 %v3391, %v3392
        %v3394 = vsel %vm2831, %v2749, -inf
        %v3395 = vmax.f32 %v3393, %v3394
        %v3396 = vsel %vm2831, %v2750, -inf
        %v3397 = vmax.f32 %v3395, %v3396
        %v3398 = vrot.slane %v3397, 4
        %v3399 = vmax.f32 %v3397, %v3398
        %v3400 = vrot.slane %v3399, 2
        %v3401 = vmax.f32 %v3399, %v3400
        %v3402 = vrot.slane %v3401, 1
        %v3403 = vmax.f32 %v3401, %v3402
        %v3404 = vsel %vm2831, %v2751, -inf
        %v3405 = vsel %vm2831, %v2752, -inf
        %v3406 = vmax.f32 %v3404, %v3405
        %v3407 = vsel %vm2831, %v2753, -inf
        %v3408 = vmax.f32 %v3406, %v3407
        %v3409 = vsel %vm2831, %v2754, -inf
        %v3410 = vmax.f32 %v3408, %v3409
        %v3411 = vrot.slane %v3410, 4
        %v3412 = vmax.f32 %v3410, %v3411
        %v3413 = vrot.slane %v3412, 2
        %v3414 = vmax.f32 %v3412, %v3413
        %v3415 = vrot.slane %v3414, 1
        %v3416 = vmax.f32 %v3414, %v3415
        %v3417 = vsel %vm2831, %v2755, -inf
        %v3418 = vsel %vm2831, %v2756, -inf
        %v3419 = vmax.f32 %v3417, %v3418
        %v3420 = vsel %vm2831, %v2757, -inf
        %v3421 = vmax.f32 %v3419, %v3420
        %v3422 = vsel %vm2831, %v2758, -inf
        %v3423 = vmax.f32 %v3421, %v3422
        %v3424 = vrot.slane %v3423, 4
        %v3425 = vmax.f32 %v3423, %v3424
        %v3426 = vrot.slane %v3425, 2
        %v3427 = vmax.f32 %v3425, %v3426
        %v3428 = vrot.slane %v3427, 1
        %v3429 = vmax.f32 %v3427, %v3428
        %v3430 = vsel %vm2831, %v2759, -inf
        %v3431 = vsel %vm2831, %v2760, -inf
        %v3432 = vmax.f32 %v3430, %v3431
        %v3433 = vsel %vm2831, %v2761, -inf
        %v3434 = vmax.f32 %v3432, %v3433
        %v3435 = vsel %vm2831, %v2762, -inf
        %v3436 = vmax.f32 %v3434, %v3435
        %v3437 = vrot.slane %v3436, 4
        %v3438 = vmax.f32 %v3436, %v3437
        %v3439 = vrot.slane %v3438, 2
        %v3440 = vmax.f32 %v3438, %v3439
        %v3441 = vrot.slane %v3440, 1
        %v3442 = vmax.f32 %v3440, %v3441
        %v3443 = vsel %vm2831, %v2763, -inf
        %v3444 = vsel %vm2831, %v2764, -inf
        %v3445 = vmax.f32 %v3443, %v3444
        %v3446 = vsel %vm2831, %v2765, -inf
        %v3447 = vmax.f32 %v3445, %v3446
        %v3448 = vsel %vm2831, %v2766, -inf
        %v3449 = vmax.f32 %v3447, %v3448
        %v3450 = vrot.slane %v3449, 4
        %v3451 = vmax.f32 %v3449, %v3450
        %v3452 = vrot.slane %v3451, 2
        %v3453 = vmax.f32 %v3451, %v3452
        %v3454 = vrot.slane %v3453, 1
        %v3455 = vmax.f32 %v3453, %v3454
        %v3456 = vsel %vm2831, %v2767, -inf
        %v3457 = vsel %vm2831, %v2768, -inf
        %v3458 = vmax.f32 %v3456, %v3457
        %v3459 = vsel %vm2831, %v2769, -inf
        %v3460 = vmax.f32 %v3458, %v3459
        %v3461 = vsel %vm2831, %v2770, -inf
        %v3462 = vmax.f32 %v3460, %v3461
        %v3463 = vrot.slane %v3462, 4
        %v3464 = vmax.f32 %v3462, %v3463
        %v3465 = vrot.slane %v3464, 2
        %v3466 = vmax.f32 %v3464, %v3465
        %v3467 = vrot.slane %v3466, 1
        %v3468 = vmax.f32 %v3466, %v3467
        %v3469 = vsel %vm2831, %v2771, -inf
        %v3470 = vsel %vm2831, %v2772, -inf
        %v3471 = vmax.f32 %v3469, %v3470
        %v3472 = vsel %vm2831, %v2773, -inf
        %v3473 = vmax.f32 %v3471, %v3472
        %v3474 = vsel %vm2831, %v2774, -inf
        %v3475 = vmax.f32 %v3473, %v3474
        %v3476 = vrot.slane %v3475, 4
        %v3477 = vmax.f32 %v3475, %v3476
        %v3478 = vrot.slane %v3477, 2
        %v3479 = vmax.f32 %v3477, %v3478
        %v3480 = vrot.slane %v3479, 1
        %v3481 = vmax.f32 %v3479, %v3480
        %v3482 = vsel %vm2831, %v2775, -inf
        %v3483 = vsel %vm2831, %v2776, -inf
        %v3484 = vmax.f32 %v3482, %v3483
        %v3485 = vsel %vm2831, %v2777, -inf
        %v3486 = vmax.f32 %v3484, %v3485
        %v3487 = vsel %vm2831, %v2778, -inf
        %v3488 = vmax.f32 %v3486, %v3487
        %v3489 = vrot.slane %v3488, 4
        %v3490 = vmax.f32 %v3488, %v3489
        %v3491 = vrot.slane %v3490, 2
        %v3492 = vmax.f32 %v3490, %v3491
        %v3493 = vrot.slane %v3492, 1
        %v3494 = vmax.f32 %v3492, %v3493
        %v3495 = vsel %vm2831, %v2779, -inf
        %v3496 = vsel %vm2831, %v2780, -inf
        %v3497 = vmax.f32 %v3495, %v3496
        %v3498 = vsel %vm2831, %v2781, -inf
        %v3499 = vmax.f32 %v3497, %v3498
        %v3500 = vsel %vm2831, %v2782, -inf
        %v3501 = vmax.f32 %v3499, %v3500
        %v3502 = vrot.slane %v3501, 4
        %v3503 = vmax.f32 %v3501, %v3502
        %v3504 = vrot.slane %v3503, 2
        %v3505 = vmax.f32 %v3503, %v3504
        %v3506 = vrot.slane %v3505, 1
        %v3507 = vmax.f32 %v3505, %v3506
        %v3508 = vsel %vm2831, %v2783, -inf
        %v3509 = vsel %vm2831, %v2784, -inf
        %v3510 = vmax.f32 %v3508, %v3509
        %v3511 = vsel %vm2831, %v2785, -inf
        %v3512 = vmax.f32 %v3510, %v3511
        %v3513 = vsel %vm2831, %v2786, -inf
        %v3514 = vmax.f32 %v3512, %v3513
        %v3515 = vrot.slane %v3514, 4
        %v3516 = vmax.f32 %v3514, %v3515
        %v3517 = vrot.slane %v3516, 2
        %v3518 = vmax.f32 %v3516, %v3517
        %v3519 = vrot.slane %v3518, 1
        %v3520 = vmax.f32 %v3518, %v3519
        %v3521 = vsel %vm2831, %v2787, -inf
        %v3522 = vsel %vm2831, %v2788, -inf
        %v3523 = vmax.f32 %v3521, %v3522
        %v3524 = vsel %vm2831, %v2789, -inf
        %v3525 = vmax.f32 %v3523, %v3524
        %v3526 = vsel %vm2831, %v2790, -inf
        %v3527 = vmax.f32 %v3525, %v3526
        %v3528 = vrot.slane %v3527, 4
        %v3529 = vmax.f32 %v3527, %v3528
        %v3530 = vrot.slane %v3529, 2
        %v3531 = vmax.f32 %v3529, %v3530
        %v3532 = vrot.slane %v3531, 1
        %v3533 = vmax.f32 %v3531, %v3532
        %v3534 = vsel %vm2831, %v2791, -inf
        %v3535 = vsel %vm2831, %v2792, -inf
        %v3536 = vmax.f32 %v3534, %v3535
        %v3537 = vsel %vm2831, %v2793, -inf
        %v3538 = vmax.f32 %v3536, %v3537
        %v3539 = vsel %vm2831, %v2794, -inf
        %v3540 = vmax.f32 %v3538, %v3539
        %v3541 = vrot.slane %v3540, 4
        %v3542 = vmax.f32 %v3540, %v3541
        %v3543 = vrot.slane %v3542, 2
        %v3544 = vmax.f32 %v3542, %v3543
        %v3545 = vrot.slane %v3544, 1
        %v3546 = vmax.f32 %v3544, %v3545
        %v3547 = vsel %vm2831, %v2795, -inf
        %v3548 = vsel %vm2831, %v2796, -inf
        %v3549 = vmax.f32 %v3547, %v3548
        %v3550 = vsel %vm2831, %v2797, -inf
        %v3551 = vmax.f32 %v3549, %v3550
        %v3552 = vsel %vm2831, %v2798, -inf
        %v3553 = vmax.f32 %v3551, %v3552
        %v3554 = vrot.slane %v3553, 4
        %v3555 = vmax.f32 %v3553, %v3554
        %v3556 = vrot.slane %v3555, 2
        %v3557 = vmax.f32 %v3555, %v3556
        %v3558 = vrot.slane %v3557, 1
        %v3559 = vmax.f32 %v3557, %v3558
        %v3560 = vsel %vm2831, %v2799, -inf
        %v3561 = vsel %vm2831, %v2800, -inf
        %v3562 = vmax.f32 %v3560, %v3561
        %v3563 = vsel %vm2831, %v2801, -inf
        %v3564 = vmax.f32 %v3562, %v3563
        %v3565 = vsel %vm2831, %v2802, -inf
        %v3566 = vmax.f32 %v3564, %v3565
        %v3567 = vrot.slane %v3566, 4
        %v3568 = vmax.f32 %v3566, %v3567
        %v3569 = vrot.slane %v3568, 2
        %v3570 = vmax.f32 %v3568, %v3569
        %v3571 = vrot.slane %v3570, 1
        %v3572 = vmax.f32 %v3570, %v3571
        %v3573 = vsel %vm2831, %v2803, -inf
        %v3574 = vsel %vm2831, %v2804, -inf
        %v3575 = vmax.f32 %v3573, %v3574
        %v3576 = vsel %vm2831, %v2805, -inf
        %v3577 = vmax.f32 %v3575, %v3576
        %v3578 = vsel %vm2831, %v2806, -inf
        %v3579 = vmax.f32 %v3577, %v3578
        %v3580 = vrot.slane %v3579, 4
        %v3581 = vmax.f32 %v3579, %v3580
        %v3582 = vrot.slane %v3581, 2
        %v3583 = vmax.f32 %v3581, %v3582
        %v3584 = vrot.slane %v3583, 1
        %v3585 = vmax.f32 %v3583, %v3584
        %v3586 = vsel %vm2831, %v2807, -inf
        %v3587 = vsel %vm2831, %v2808, -inf
        %v3588 = vmax.f32 %v3586, %v3587
        %v3589 = vsel %vm2831, %v2809, -inf
        %v3590 = vmax.f32 %v3588, %v3589
        %v3591 = vsel %vm2831, %v2810, -inf
        %v3592 = vmax.f32 %v3590, %v3591
        %v3593 = vrot.slane %v3592, 4
        %v3594 = vmax.f32 %v3592, %v3593
        %v3595 = vrot.slane %v3594, 2
        %v3596 = vmax.f32 %v3594, %v3595
        %v3597 = vrot.slane %v3596, 1
        %v3598 = vmax.f32 %v3596, %v3597
        %v3599 = vsel %vm2831, %v2811, -inf
        %v3600 = vsel %vm2831, %v2812, -inf
        %v3601 = vmax.f32 %v3599, %v3600
        %v3602 = vsel %vm2831, %v2813, -inf
        %v3603 = vmax.f32 %v3601, %v3602
        %v3604 = vsel %vm2831, %v2814, -inf
        %v3605 = vmax.f32 %v3603, %v3604
        %v3606 = vrot.slane %v3605, 4
        %v3607 = vmax.f32 %v3605, %v3606
        %v3608 = vrot.slane %v3607, 2
        %v3609 = vmax.f32 %v3607, %v3608
        %v3610 = vrot.slane %v3609, 1
        %v3611 = vmax.f32 %v3609, %v3610
        %v3612 = vsel %vm2831, %v2815, -inf
        %v3613 = vsel %vm2831, %v2816, -inf
        %v3614 = vmax.f32 %v3612, %v3613
        %v3615 = vsel %vm2831, %v2817, -inf
        %v3616 = vmax.f32 %v3614, %v3615
        %v3617 = vsel %vm2831, %v2818, -inf
        %v3618 = vmax.f32 %v3616, %v3617
        %v3619 = vrot.slane %v3618, 4
        %v3620 = vmax.f32 %v3618, %v3619
        %v3621 = vrot.slane %v3620, 2
        %v3622 = vmax.f32 %v3620, %v3621
        %v3623 = vrot.slane %v3622, 1
        %v3624 = vmax.f32 %v3622, %v3623
        %v3625 = vsel %vm2831, %v2819, -inf
        %v3626 = vsel %vm2831, %v2820, -inf
        %v3627 = vmax.f32 %v3625, %v3626
        %v3628 = vsel %vm2831, %v2821, -inf
        %v3629 = vmax.f32 %v3627, %v3628
        %v3630 = vsel %vm2831, %v2822, -inf
        %v3631 = vmax.f32 %v3629, %v3630
        %v3632 = vrot.slane %v3631, 4
        %v3633 = vmax.f32 %v3631, %v3632
        %v3634 = vrot.slane %v3633, 2
        %v3635 = vmax.f32 %v3633, %v3634
        %v3636 = vrot.slane %v3635, 1
        %v3637 = vmax.f32 %v3635, %v3636
        %v3638 = vsel %vm2831, %v2823, -inf
        %v3639 = vsel %vm2831, %v2824, -inf
        %v3640 = vmax.f32 %v3638, %v3639
        %v3641 = vsel %vm2831, %v2825, -inf
        %v3642 = vmax.f32 %v3640, %v3641
        %v3643 = vsel %vm2831, %v2826, -inf
        %v3644 = vmax.f32 %v3642, %v3643
        %v3645 = vrot.slane %v3644, 4
        %v3646 = vmax.f32 %v3644, %v3645
        %v3647 = vrot.slane %v3646, 2
        %v3648 = vmax.f32 %v3646, %v3647
        %v3649 = vrot.slane %v3648, 1
        %v3650 = vmax.f32 %v3648, %v3649
        %v3651 = vsel %vm2831, %v2827, -inf
        %v3652 = vsel %vm2831, %v2828, -inf
        %v3653 = vmax.f32 %v3651, %v3652
        %v3654 = vsel %vm2831, %v2829, -inf
        %v3655 = vmax.f32 %v3653, %v3654
        %v3656 = vsel %vm2831, %v2830, -inf
        %v3657 = vmax.f32 %v3655, %v3656
        %v3658 = vrot.slane %v3657, 4
        %v3659 = vmax.f32 %v3657, %v3658
        %v3660 = vrot.slane %v3659, 2
        %v3661 = vmax.f32 %v3659, %v3660
        %v3662 = vrot.slane %v3661, 1
        %v3663 = vmax.f32 %v3661, %v3662
        %3728 = vrot.lane.b32.xlu0 %v2844, 32
        %v3729 = vpop.permute.xlu0 %3728
        %3730 = vrot.lane.b32.xlu0 %v2857, 32
        %v3731 = vpop.permute.xlu0 %3730
        %3732 = vrot.lane.b32.xlu0 %v2870, 32
        %v3733 = vpop.permute.xlu0 %3732
        %3734 = vrot.lane.b32.xlu0 %v2883, 32
        %v3735 = vpop.permute.xlu0 %3734
        %3736 = vrot.lane.b32.xlu0 %v2896, 32
        %v3737 = vpop.permute.xlu0 %3736
        %3738 = vrot.lane.b32.xlu0 %v2909, 32
        %v3739 = vpop.permute.xlu0 %3738
        %3740 = vrot.lane.b32.xlu0 %v2922, 32
        %v3741 = vpop.permute.xlu0 %3740
        %3742 = vrot.lane.b32.xlu0 %v2935, 32
        %v3743 = vpop.permute.xlu0 %3742
        %3744 = vrot.lane.b32.xlu0 %v2948, 32
        %v3745 = vpop.permute.xlu0 %3744
        %3746 = vrot.lane.b32.xlu0 %v2961, 32
        %v3747 = vpop.permute.xlu0 %3746
        %3748 = vrot.lane.b32.xlu0 %v2974, 32
        %v3749 = vpop.permute.xlu0 %3748
        %3750 = vrot.lane.b32.xlu0 %v2987, 32
        %v3751 = vpop.permute.xlu0 %3750
        %3752 = vrot.lane.b32.xlu0 %v3000, 32
        %v3753 = vpop.permute.xlu0 %3752
        %3754 = vrot.lane.b32.xlu0 %v3013, 32
        %v3755 = vpop.permute.xlu0 %3754
        %3756 = vrot.lane.b32.xlu0 %v3026, 32
        %v3757 = vpop.permute.xlu0 %3756
        %3758 = vrot.lane.b32.xlu0 %v3039, 32
        %v3759 = vpop.permute.xlu0 %3758
        %3760 = vrot.lane.b32.xlu0 %v3052, 32
        %v3761 = vpop.permute.xlu0 %3760
        %3762 = vrot.lane.b32.xlu0 %v3065, 32
        %v3763 = vpop.permute.xlu0 %3762
        %3764 = vrot.lane.b32.xlu0 %v3078, 32
        %v3765 = vpop.permute.xlu0 %3764
        %3766 = vrot.lane.b32.xlu0 %v3091, 32
        %v3767 = vpop.permute.xlu0 %3766
        %3768 = vrot.lane.b32.xlu0 %v3104, 32
        %v3769 = vpop.permute.xlu0 %3768
        %3770 = vrot.lane.b32.xlu0 %v3117, 32
        %v3771 = vpop.permute.xlu0 %3770
        %3772 = vrot.lane.b32.xlu0 %v3130, 32
        %v3773 = vpop.permute.xlu0 %3772
        %3774 = vrot.lane.b32.xlu0 %v3143, 32
        %v3775 = vpop.permute.xlu0 %3774
        %3776 = vrot.lane.b32.xlu0 %v3156, 32
        %v3777 = vpop.permute.xlu0 %3776
        %3778 = vrot.lane.b32.xlu0 %v3169, 32
        %v3779 = vpop.permute.xlu0 %3778
        %3780 = vrot.lane.b32.xlu0 %v3182, 32
        %v3781 = vpop.permute.xlu0 %3780
        %3782 = vrot.lane.b32.xlu0 %v3195, 32
        %v3783 = vpop.permute.xlu0 %3782
        %3784 = vrot.lane.b32.xlu0 %v3208, 32
        %v3785 = vpop.permute.xlu0 %3784
        %3786 = vrot.lane.b32.xlu0 %v3221, 32
        %v3787 = vpop.permute.xlu0 %3786
        %3788 = vrot.lane.b32.xlu0 %v3234, 32
        %v3789 = vpop.permute.xlu0 %3788
        %3790 = vrot.lane.b32.xlu0 %v3247, 32
        %v3791 = vpop.permute.xlu0 %3790
        %3792 = vrot.lane.b32.xlu0 %v3260, 32
        %v3793 = vpop.permute.xlu0 %3792
        %3794 = vrot.lane.b32.xlu0 %v3273, 32
        %v3795 = vpop.permute.xlu0 %3794
        %3796 = vrot.lane.b32.xlu0 %v3286, 32
        %v3797 = vpop.permute.xlu0 %3796
        %3798 = vrot.lane.b32.xlu0 %v3299, 32
        %v3799 = vpop.permute.xlu0 %3798
        %3800 = vrot.lane.b32.xlu0 %v3312, 32
        %v3801 = vpop.permute.xlu0 %3800
        %3802 = vrot.lane.b32.xlu0 %v3325, 32
        %v3803 = vpop.permute.xlu0 %3802
        %3804 = vrot.lane.b32.xlu0 %v3338, 32
        %v3805 = vpop.permute.xlu0 %3804
        %3806 = vrot.lane.b32.xlu0 %v3351, 32
        %v3807 = vpop.permute.xlu0 %3806
        %3808 = vrot.lane.b32.xlu0 %v3364, 32
        %v3809 = vpop.permute.xlu0 %3808
        %3810 = vrot.lane.b32.xlu0 %v3377, 32
        %v3811 = vpop.permute.xlu0 %3810
        %3812 = vrot.lane.b32.xlu0 %v3390, 32
        %v3813 = vpop.permute.xlu0 %3812
        %3814 = vrot.lane.b32.xlu0 %v3403, 32
        %v3815 = vpop.permute.xlu0 %3814
        %3816 = vrot.lane.b32.xlu0 %v3416, 32
        %v3817 = vpop.permute.xlu0 %3816
        %3818 = vrot.lane.b32.xlu0 %v3429, 32
        %v3819 = vpop.permute.xlu0 %3818
        %3820 = vrot.lane.b32.xlu0 %v3442, 32
        %v3821 = vpop.permute.xlu0 %3820
        %3822 = vrot.lane.b32.xlu0 %v3455, 32
        %v3823 = vpop.permute.xlu0 %3822
        %3824 = vrot.lane.b32.xlu0 %v3468, 32
        %v3825 = vpop.permute.xlu0 %3824
        %3826 = vrot.lane.b32.xlu0 %v3481, 32
        %v3827 = vpop.permute.xlu0 %3826
        %3828 = vrot.lane.b32.xlu0 %v3494, 32
        %v3829 = vpop.permute.xlu0 %3828
        %3830 = vrot.lane.b32.xlu0 %v3507, 32
        %v3831 = vpop.permute.xlu0 %3830
        %3832 = vrot.lane.b32.xlu0 %v3520, 32
        %v3833 = vpop.permute.xlu0 %3832
        %3834 = vrot.lane.b32.xlu0 %v3533, 32
        %v3835 = vpop.permute.xlu0 %3834
        %3836 = vrot.lane.b32.xlu0 %v3546, 32
        %v3837 = vpop.permute.xlu0 %3836
        %3838 = vrot.lane.b32.xlu0 %v3559, 32
        %v3839 = vpop.permute.xlu0 %3838
        %3840 = vrot.lane.b32.xlu0 %v3572, 32
        %v3841 = vpop.permute.xlu0 %3840
        %3842 = vrot.lane.b32.xlu0 %v3585, 32
        %v3843 = vpop.permute.xlu0 %3842
        %3844 = vrot.lane.b32.xlu0 %v3598, 32
        %v3845 = vpop.permute.xlu0 %3844
        %3846 = vrot.lane.b32.xlu0 %v3611, 32
        %v3847 = vpop.permute.xlu0 %3846
        %3848 = vrot.lane.b32.xlu0 %v3624, 32
        %v3849 = vpop.permute.xlu0 %3848
        %3850 = vrot.lane.b32.xlu0 %v3637, 32
        %v3851 = vpop.permute.xlu0 %3850
        %3852 = vrot.lane.b32.xlu0 %v3650, 32
        %v3853 = vpop.permute.xlu0 %3852
        %3854 = vrot.lane.b32.xlu0 %v3663, 32
        %v3855 = vpop.permute.xlu0 %3854
        %v3920 = vsel %vm2831, %v2575, %v3729
        %v3921 = vsel %vm2831, %v2576, %v3729
        %v3922 = vsel %vm2831, %v2577, %v3729
        %v3923 = vsel %vm2831, %v2578, %v3729
        %v3924 = vsel %vm2831, %v2579, %v3731
        %v3925 = vsel %vm2831, %v2580, %v3731
        %v3926 = vsel %vm2831, %v2581, %v3731
        %v3927 = vsel %vm2831, %v2582, %v3731
        %v3928 = vsel %vm2831, %v2583, %v3733
        %v3929 = vsel %vm2831, %v2584, %v3733
        %v3930 = vsel %vm2831, %v2585, %v3733
        %v3931 = vsel %vm2831, %v2586, %v3733
        %v3932 = vsel %vm2831, %v2587, %v3735
        %v3933 = vsel %vm2831, %v2588, %v3735
        %v3934 = vsel %vm2831, %v2589, %v3735
        %v3935 = vsel %vm2831, %v2590, %v3735
        %v3936 = vsel %vm2831, %v2591, %v3737
        %v3937 = vsel %vm2831, %v2592, %v3737
        %v3938 = vsel %vm2831, %v2593, %v3737
        %v3939 = vsel %vm2831, %v2594, %v3737
        %v3940 = vsel %vm2831, %v2595, %v3739
        %v3941 = vsel %vm2831, %v2596, %v3739
        %v3942 = vsel %vm2831, %v2597, %v3739
        %v3943 = vsel %vm2831, %v2598, %v3739
        %v3944 = vsel %vm2831, %v2599, %v3741
        %v3945 = vsel %vm2831, %v2600, %v3741
        %v3946 = vsel %vm2831, %v2601, %v3741
        %v3947 = vsel %vm2831, %v2602, %v3741
        %v3948 = vsel %vm2831, %v2603, %v3743
        %v3949 = vsel %vm2831, %v2604, %v3743
        %v3950 = vsel %vm2831, %v2605, %v3743
        %v3951 = vsel %vm2831, %v2606, %v3743
        %v3952 = vsel %vm2831, %v2607, %v3745
        %v3953 = vsel %vm2831, %v2608, %v3745
        %v3954 = vsel %vm2831, %v2609, %v3745
        %v3955 = vsel %vm2831, %v2610, %v3745
        %v3956 = vsel %vm2831, %v2611, %v3747
        %v3957 = vsel %vm2831, %v2612, %v3747
        %v3958 = vsel %vm2831, %v2613, %v3747
        %v3959 = vsel %vm2831, %v2614, %v3747
        %v3960 = vsel %vm2831, %v2615, %v3749
        %v3961 = vsel %vm2831, %v2616, %v3749
        %v3962 = vsel %vm2831, %v2617, %v3749
        %v3963 = vsel %vm2831, %v2618, %v3749
        %v3964 = vsel %vm2831, %v2619, %v3751
        %v3965 = vsel %vm2831, %v2620, %v3751
        %v3966 = vsel %vm2831, %v2621, %v3751
        %v3967 = vsel %vm2831, %v2622, %v3751
        %v3968 = vsel %vm2831, %v2623, %v3753
        %v3969 = vsel %vm2831, %v2624, %v3753
        %v3970 = vsel %vm2831, %v2625, %v3753
        %v3971 = vsel %vm2831, %v2626, %v3753
        %v3972 = vsel %vm2831, %v2627, %v3755
        %v3973 = vsel %vm2831, %v2628, %v3755
        %v3974 = vsel %vm2831, %v2629, %v3755
        %v3975 = vsel %vm2831, %v2630, %v3755
        %v3976 = vsel %vm2831, %v2631, %v3757
        %v3977 = vsel %vm2831, %v2632, %v3757
        %v3978 = vsel %vm2831, %v2633, %v3757
        %v3979 = vsel %vm2831, %v2634, %v3757
        %v3980 = vsel %vm2831, %v2635, %v3759
        %v3981 = vsel %vm2831, %v2636, %v3759
        %v3982 = vsel %vm2831, %v2637, %v3759
        %v3983 = vsel %vm2831, %v2638, %v3759
        %v3984 = vsel %vm2831, %v2639, %v3761
        %v3985 = vsel %vm2831, %v2640, %v3761
        %v3986 = vsel %vm2831, %v2641, %v3761
        %v3987 = vsel %vm2831, %v2642, %v3761
        %v3988 = vsel %vm2831, %v2643, %v3763
        %v3989 = vsel %vm2831, %v2644, %v3763
        %v3990 = vsel %vm2831, %v2645, %v3763
        %v3991 = vsel %vm2831, %v2646, %v3763
        %v3992 = vsel %vm2831, %v2647, %v3765
        %v3993 = vsel %vm2831, %v2648, %v3765
        %v3994 = vsel %vm2831, %v2649, %v3765
        %v3995 = vsel %vm2831, %v2650, %v3765
        %v3996 = vsel %vm2831, %v2651, %v3767
        %v3997 = vsel %vm2831, %v2652, %v3767
        %v3998 = vsel %vm2831, %v2653, %v3767
        %v3999 = vsel %vm2831, %v2654, %v3767
        %v4000 = vsel %vm2831, %v2655, %v3769
        %v4001 = vsel %vm2831, %v2656, %v3769
        %v4002 = vsel %vm2831, %v2657, %v3769
        %v4003 = vsel %vm2831, %v2658, %v3769
        %v4004 = vsel %vm2831, %v2659, %v3771
        %v4005 = vsel %vm2831, %v2660, %v3771
        %v4006 = vsel %vm2831, %v2661, %v3771
        %v4007 = vsel %vm2831, %v2662, %v3771
        %v4008 = vsel %vm2831, %v2663, %v3773
        %v4009 = vsel %vm2831, %v2664, %v3773
        %v4010 = vsel %vm2831, %v2665, %v3773
        %v4011 = vsel %vm2831, %v2666, %v3773
        %v4012 = vsel %vm2831, %v2667, %v3775
        %v4013 = vsel %vm2831, %v2668, %v3775
        %v4014 = vsel %vm2831, %v2669, %v3775
        %v4015 = vsel %vm2831, %v2670, %v3775
        %v4016 = vsel %vm2831, %v2671, %v3777
        %v4017 = vsel %vm2831, %v2672, %v3777
        %v4018 = vsel %vm2831, %v2673, %v3777
        %v4019 = vsel %vm2831, %v2674, %v3777
        %v4020 = vsel %vm2831, %v2675, %v3779
        %v4021 = vsel %vm2831, %v2676, %v3779
        %v4022 = vsel %vm2831, %v2677, %v3779
        %v4023 = vsel %vm2831, %v2678, %v3779
        %v4024 = vsel %vm2831, %v2679, %v3781
        %v4025 = vsel %vm2831, %v2680, %v3781
        %v4026 = vsel %vm2831, %v2681, %v3781
        %v4027 = vsel %vm2831, %v2682, %v3781
        %v4028 = vsel %vm2831, %v2683, %v3783
        %v4029 = vsel %vm2831, %v2684, %v3783
        %v4030 = vsel %vm2831, %v2685, %v3783
        %v4031 = vsel %vm2831, %v2686, %v3783
        %v4032 = vsel %vm2831, %v2687, %v3785
        %v4033 = vsel %vm2831, %v2688, %v3785
        %v4034 = vsel %vm2831, %v2689, %v3785
        %v4035 = vsel %vm2831, %v2690, %v3785
        %v4036 = vsel %vm2831, %v2691, %v3787
        %v4037 = vsel %vm2831, %v2692, %v3787
        %v4038 = vsel %vm2831, %v2693, %v3787
        %v4039 = vsel %vm2831, %v2694, %v3787
        %v4040 = vsel %vm2831, %v2695, %v3789
        %v4041 = vsel %vm2831, %v2696, %v3789
        %v4042 = vsel %vm2831, %v2697, %v3789
        %v4043 = vsel %vm2831, %v2698, %v3789
        %v4044 = vsel %vm2831, %v2699, %v3791
        %v4045 = vsel %vm2831, %v2700, %v3791
        %v4046 = vsel %vm2831, %v2701, %v3791
        %v4047 = vsel %vm2831, %v2702, %v3791
        %v4048 = vsel %vm2831, %v2703, %v3793
        %v4049 = vsel %vm2831, %v2704, %v3793
        %v4050 = vsel %vm2831, %v2705, %v3793
        %v4051 = vsel %vm2831, %v2706, %v3793
        %v4052 = vsel %vm2831, %v2707, %v3795
        %v4053 = vsel %vm2831, %v2708, %v3795
        %v4054 = vsel %vm2831, %v2709, %v3795
        %v4055 = vsel %vm2831, %v2710, %v3795
        %v4056 = vsel %vm2831, %v2711, %v3797
        %v4057 = vsel %vm2831, %v2712, %v3797
        %v4058 = vsel %vm2831, %v2713, %v3797
        %v4059 = vsel %vm2831, %v2714, %v3797
        %v4060 = vsel %vm2831, %v2715, %v3799
        %v4061 = vsel %vm2831, %v2716, %v3799
        %v4062 = vsel %vm2831, %v2717, %v3799
        %v4063 = vsel %vm2831, %v2718, %v3799
        %v4064 = vsel %vm2831, %v2719, %v3801
        %v4065 = vsel %vm2831, %v2720, %v3801
        %v4066 = vsel %vm2831, %v2721, %v3801
        %v4067 = vsel %vm2831, %v2722, %v3801
        %v4068 = vsel %vm2831, %v2723, %v3803
        %v4069 = vsel %vm2831, %v2724, %v3803
        %v4070 = vsel %vm2831, %v2725, %v3803
        %v4071 = vsel %vm2831, %v2726, %v3803
        %v4072 = vsel %vm2831, %v2727, %v3805
        %v4073 = vsel %vm2831, %v2728, %v3805
        %v4074 = vsel %vm2831, %v2729, %v3805
        %v4075 = vsel %vm2831, %v2730, %v3805
        %v4076 = vsel %vm2831, %v2731, %v3807
        %v4077 = vsel %vm2831, %v2732, %v3807
        %v4078 = vsel %vm2831, %v2733, %v3807
        %v4079 = vsel %vm2831, %v2734, %v3807
        %v4080 = vsel %vm2831, %v2735, %v3809
        %v4081 = vsel %vm2831, %v2736, %v3809
        %v4082 = vsel %vm2831, %v2737, %v3809
        %v4083 = vsel %vm2831, %v2738, %v3809
        %v4084 = vsel %vm2831, %v2739, %v3811
        %v4085 = vsel %vm2831, %v2740, %v3811
        %v4086 = vsel %vm2831, %v2741, %v3811
        %v4087 = vsel %vm2831, %v2742, %v3811
        %v4088 = vsel %vm2831, %v2743, %v3813
        %v4089 = vsel %vm2831, %v2744, %v3813
        %v4090 = vsel %vm2831, %v2745, %v3813
        %v4091 = vsel %vm2831, %v2746, %v3813
        %v4092 = vsel %vm2831, %v2747, %v3815
        %v4093 = vsel %vm2831, %v2748, %v3815
        %v4094 = vsel %vm2831, %v2749, %v3815
        %v4095 = vsel %vm2831, %v2750, %v3815
        %v4096 = vsel %vm2831, %v2751, %v3817
        %v4097 = vsel %vm2831, %v2752, %v3817
        %v4098 = vsel %vm2831, %v2753, %v3817
        %v4099 = vsel %vm2831, %v2754, %v3817
        %v4100 = vsel %vm2831, %v2755, %v3819
        %v4101 = vsel %vm2831, %v2756, %v3819
        %v4102 = vsel %vm2831, %v2757, %v3819
        %v4103 = vsel %vm2831, %v2758, %v3819
        %v4104 = vsel %vm2831, %v2759, %v3821
        %v4105 = vsel %vm2831, %v2760, %v3821
        %v4106 = vsel %vm2831, %v2761, %v3821
        %v4107 = vsel %vm2831, %v2762, %v3821
        %v4108 = vsel %vm2831, %v2763, %v3823
        %v4109 = vsel %vm2831, %v2764, %v3823
        %v4110 = vsel %vm2831, %v2765, %v3823
        %v4111 = vsel %vm2831, %v2766, %v3823
        %v4112 = vsel %vm2831, %v2767, %v3825
        %v4113 = vsel %vm2831, %v2768, %v3825
        %v4114 = vsel %vm2831, %v2769, %v3825
        %v4115 = vsel %vm2831, %v2770, %v3825
        %v4116 = vsel %vm2831, %v2771, %v3827
        %v4117 = vsel %vm2831, %v2772, %v3827
        %v4118 = vsel %vm2831, %v2773, %v3827
        %v4119 = vsel %vm2831, %v2774, %v3827
        %v4120 = vsel %vm2831, %v2775, %v3829
        %v4121 = vsel %vm2831, %v2776, %v3829
        %v4122 = vsel %vm2831, %v2777, %v3829
        %v4123 = vsel %vm2831, %v2778, %v3829
        %v4124 = vsel %vm2831, %v2779, %v3831
        %v4125 = vsel %vm2831, %v2780, %v3831
        %v4126 = vsel %vm2831, %v2781, %v3831
        %v4127 = vsel %vm2831, %v2782, %v3831
        %v4128 = vsel %vm2831, %v2783, %v3833
        %v4129 = vsel %vm2831, %v2784, %v3833
        %v4130 = vsel %vm2831, %v2785, %v3833
        %v4131 = vsel %vm2831, %v2786, %v3833
        %v4132 = vsel %vm2831, %v2787, %v3835
        %v4133 = vsel %vm2831, %v2788, %v3835
        %v4134 = vsel %vm2831, %v2789, %v3835
        %v4135 = vsel %vm2831, %v2790, %v3835
        %v4136 = vsel %vm2831, %v2791, %v3837
        %v4137 = vsel %vm2831, %v2792, %v3837
        %v4138 = vsel %vm2831, %v2793, %v3837
        %v4139 = vsel %vm2831, %v2794, %v3837
        %v4140 = vsel %vm2831, %v2795, %v3839
        %v4141 = vsel %vm2831, %v2796, %v3839
        %v4142 = vsel %vm2831, %v2797, %v3839
        %v4143 = vsel %vm2831, %v2798, %v3839
        %v4144 = vsel %vm2831, %v2799, %v3841
        %v4145 = vsel %vm2831, %v2800, %v3841
        %v4146 = vsel %vm2831, %v2801, %v3841
        %v4147 = vsel %vm2831, %v2802, %v3841
        %v4148 = vsel %vm2831, %v2803, %v3843
        %v4149 = vsel %vm2831, %v2804, %v3843
        %v4150 = vsel %vm2831, %v2805, %v3843
        %v4151 = vsel %vm2831, %v2806, %v3843
        %v4152 = vsel %vm2831, %v2807, %v3845
        %v4153 = vsel %vm2831, %v2808, %v3845
        %v4154 = vsel %vm2831, %v2809, %v3845
        %v4155 = vsel %vm2831, %v2810, %v3845
        %v4156 = vsel %vm2831, %v2811, %v3847
        %v4157 = vsel %vm2831, %v2812, %v3847
        %v4158 = vsel %vm2831, %v2813, %v3847
        %v4159 = vsel %vm2831, %v2814, %v3847
        %v4160 = vsel %vm2831, %v2815, %v3849
        %v4161 = vsel %vm2831, %v2816, %v3849
        %v4162 = vsel %vm2831, %v2817, %v3849
        %v4163 = vsel %vm2831, %v2818, %v3849
        %v4164 = vsel %vm2831, %v2819, %v3851
        %v4165 = vsel %vm2831, %v2820, %v3851
        %v4166 = vsel %vm2831, %v2821, %v3851
        %v4167 = vsel %vm2831, %v2822, %v3851
        %v4168 = vsel %vm2831, %v2823, %v3853
        %v4169 = vsel %vm2831, %v2824, %v3853
        %v4170 = vsel %vm2831, %v2825, %v3853
        %v4171 = vsel %vm2831, %v2826, %v3853
        %v4172 = vsel %vm2831, %v2827, %v3855
        %v4173 = vsel %vm2831, %v2828, %v3855
        %v4174 = vsel %vm2831, %v2829, %v3855
        %v4175 = vsel %vm2831, %v2830, %v3855
        %vm4176 = vcmask 523264
        %4177 = vst.msk [vmem:[%s172] sm:$0xff] %vm4176, %v3920
        %4178 = vst.msk [vmem:[%s172 + $0x8] sm:$0xff] %vm4176, %v3921
        %4179 = vst.msk [vmem:[%s172 + $0x10] sm:$0xff] %vm4176, %v3922
        %4180 = vst.msk [vmem:[%s172 + $0x18] sm:$0xff] %vm4176, %v3923
        %4181 = vst.msk [vmem:[%s172 + $0x20] sm:$0xff] %vm4176, %v3924
        %4182 = vst.msk [vmem:[%s172 + $0x28] sm:$0xff] %vm4176, %v3925
        %4183 = vst.msk [vmem:[%s172 + $0x30] sm:$0xff] %vm4176, %v3926
        %4184 = vst.msk [vmem:[%s172 + $0x38] sm:$0xff] %vm4176, %v3927
        %4185 = vst.msk [vmem:[%s172 + $0x40] sm:$0xff] %vm4176, %v3928
        %4186 = vst.msk [vmem:[%s172 + $0x48] sm:$0xff] %vm4176, %v3929
        %4187 = vst.msk [vmem:[%s172 + $0x50] sm:$0xff] %vm4176, %v3930
        %4188 = vst.msk [vmem:[%s172 + $0x58] sm:$0xff] %vm4176, %v3931
        %4189 = vst.msk [vmem:[%s172 + $0x60] sm:$0xff] %vm4176, %v3932
        %4190 = vst.msk [vmem:[%s172 + $0x68] sm:$0xff] %vm4176, %v3933
        %4191 = vst.msk [vmem:[%s172 + $0x70] sm:$0xff] %vm4176, %v3934
        %4192 = vst.msk [vmem:[%s172 + $0x78] sm:$0xff] %vm4176, %v3935
        %4193 = vst.msk [vmem:[%s172 + $0x80] sm:$0xff] %vm4176, %v3936
        %4194 = vst.msk [vmem:[%s172 + $0x88] sm:$0xff] %vm4176, %v3937
        %4195 = vst.msk [vmem:[%s172 + $0x90] sm:$0xff] %vm4176, %v3938
        %4196 = vst.msk [vmem:[%s172 + $0x98] sm:$0xff] %vm4176, %v3939
        %4197 = vst.msk [vmem:[%s172 + $0xa0] sm:$0xff] %vm4176, %v3940
        %4198 = vst.msk [vmem:[%s172 + $0xa8] sm:$0xff] %vm4176, %v3941
        %4199 = vst.msk [vmem:[%s172 + $0xb0] sm:$0xff] %vm4176, %v3942
        %4200 = vst.msk [vmem:[%s172 + $0xb8] sm:$0xff] %vm4176, %v3943
        %4201 = vst.msk [vmem:[%s172 + $0xc0] sm:$0xff] %vm4176, %v3944
        %4202 = vst.msk [vmem:[%s172 + $0xc8] sm:$0xff] %vm4176, %v3945
        %4203 = vst.msk [vmem:[%s172 + $0xd0] sm:$0xff] %vm4176, %v3946
        %4204 = vst.msk [vmem:[%s172 + $0xd8] sm:$0xff] %vm4176, %v3947
        %4205 = vst.msk [vmem:[%s172 + $0xe0] sm:$0xff] %vm4176, %v3948
        %4206 = vst.msk [vmem:[%s172 + $0xe8] sm:$0xff] %vm4176, %v3949
        %4207 = vst.msk [vmem:[%s172 + $0xf0] sm:$0xff] %vm4176, %v3950
        %4208 = vst.msk [vmem:[%s172 + $0xf8] sm:$0xff] %vm4176, %v3951
        %4209 = vst.msk [vmem:[%s172 + $0x100] sm:$0xff] %vm4176, %v3952
        %4210 = vst.msk [vmem:[%s172 + $0x108] sm:$0xff] %vm4176, %v3953
        %4211 = vst.msk [vmem:[%s172 + $0x110] sm:$0xff] %vm4176, %v3954
        %4212 = vst.msk [vmem:[%s172 + $0x118] sm:$0xff] %vm4176, %v3955
        %4213 = vst.msk [vmem:[%s172 + $0x120] sm:$0xff] %vm4176, %v3956
        %4214 = vst.msk [vmem:[%s172 + $0x128] sm:$0xff] %vm4176, %v3957
        %4215 = vst.msk [vmem:[%s172 + $0x130] sm:$0xff] %vm4176, %v3958
        %4216 = vst.msk [vmem:[%s172 + $0x138] sm:$0xff] %vm4176, %v3959
        %4217 = vst.msk [vmem:[%s172 + $0x140] sm:$0xff] %vm4176, %v3960
        %4218 = vst.msk [vmem:[%s172 + $0x148] sm:$0xff] %vm4176, %v3961
        %4219 = vst.msk [vmem:[%s172 + $0x150] sm:$0xff] %vm4176, %v3962
        %4220 = vst.msk [vmem:[%s172 + $0x158] sm:$0xff] %vm4176, %v3963
        %4221 = vst.msk [vmem:[%s172 + $0x160] sm:$0xff] %vm4176, %v3964
        %4222 = vst.msk [vmem:[%s172 + $0x168] sm:$0xff] %vm4176, %v3965
        %4223 = vst.msk [vmem:[%s172 + $0x170] sm:$0xff] %vm4176, %v3966
        %4224 = vst.msk [vmem:[%s172 + $0x178] sm:$0xff] %vm4176, %v3967
        %4225 = vst.msk [vmem:[%s172 + $0x180] sm:$0xff] %vm4176, %v3968
        %4226 = vst.msk [vmem:[%s172 + $0x188] sm:$0xff] %vm4176, %v3969
        %4227 = vst.msk [vmem:[%s172 + $0x190] sm:$0xff] %vm4176, %v3970
        %4228 = vst.msk [vmem:[%s172 + $0x198] sm:$0xff] %vm4176, %v3971
        %4229 = vst.msk [vmem:[%s172 + $0x1a0] sm:$0xff] %vm4176, %v3972
        %4230 = vst.msk [vmem:[%s172 + $0x1a8] sm:$0xff] %vm4176, %v3973
        %4231 = vst.msk [vmem:[%s172 + $0x1b0] sm:$0xff] %vm4176, %v3974
        %4232 = vst.msk [vmem:[%s172 + $0x1b8] sm:$0xff] %vm4176, %v3975
        %4233 = vst.msk [vmem:[%s172 + $0x1c0] sm:$0xff] %vm4176, %v3976
        %4234 = vst.msk [vmem:[%s172 + $0x1c8] sm:$0xff] %vm4176, %v3977
        %4235 = vst.msk [vmem:[%s172 + $0x1d0] sm:$0xff] %vm4176, %v3978
        %4236 = vst.msk [vmem:[%s172 + $0x1d8] sm:$0xff] %vm4176, %v3979
        %4237 = vst.msk [vmem:[%s172 + $0x1e0] sm:$0xff] %vm4176, %v3980
        %4238 = vst.msk [vmem:[%s172 + $0x1e8] sm:$0xff] %vm4176, %v3981
        %4239 = vst.msk [vmem:[%s172 + $0x1f0] sm:$0xff] %vm4176, %v3982
        %4240 = vst.msk [vmem:[%s172 + $0x1f8] sm:$0xff] %vm4176, %v3983
        %4241 = vst.msk [vmem:[%s172 + $0x200] sm:$0xff] %vm4176, %v3984
        %4242 = vst.msk [vmem:[%s172 + $0x208] sm:$0xff] %vm4176, %v3985
        %4243 = vst.msk [vmem:[%s172 + $0x210] sm:$0xff] %vm4176, %v3986
        %4244 = vst.msk [vmem:[%s172 + $0x218] sm:$0xff] %vm4176, %v3987
        %4245 = vst.msk [vmem:[%s172 + $0x220] sm:$0xff] %vm4176, %v3988
        %4246 = vst.msk [vmem:[%s172 + $0x228] sm:$0xff] %vm4176, %v3989
        %4247 = vst.msk [vmem:[%s172 + $0x230] sm:$0xff] %vm4176, %v3990
        %4248 = vst.msk [vmem:[%s172 + $0x238] sm:$0xff] %vm4176, %v3991
        %4249 = vst.msk [vmem:[%s172 + $0x240] sm:$0xff] %vm4176, %v3992
        %4250 = vst.msk [vmem:[%s172 + $0x248] sm:$0xff] %vm4176, %v3993
        %4251 = vst.msk [vmem:[%s172 + $0x250] sm:$0xff] %vm4176, %v3994
        %4252 = vst.msk [vmem:[%s172 + $0x258] sm:$0xff] %vm4176, %v3995
        %4253 = vst.msk [vmem:[%s172 + $0x260] sm:$0xff] %vm4176, %v3996
        %4254 = vst.msk [vmem:[%s172 + $0x268] sm:$0xff] %vm4176, %v3997
        %4255 = vst.msk [vmem:[%s172 + $0x270] sm:$0xff] %vm4176, %v3998
        %4256 = vst.msk [vmem:[%s172 + $0x278] sm:$0xff] %vm4176, %v3999
        %4257 = vst.msk [vmem:[%s172 + $0x280] sm:$0xff] %vm4176, %v4000
        %4258 = vst.msk [vmem:[%s172 + $0x288] sm:$0xff] %vm4176, %v4001
        %4259 = vst.msk [vmem:[%s172 + $0x290] sm:$0xff] %vm4176, %v4002
        %4260 = vst.msk [vmem:[%s172 + $0x298] sm:$0xff] %vm4176, %v4003
        %4261 = vst.msk [vmem:[%s172 + $0x2a0] sm:$0xff] %vm4176, %v4004
        %4262 = vst.msk [vmem:[%s172 + $0x2a8] sm:$0xff] %vm4176, %v4005
        %4263 = vst.msk [vmem:[%s172 + $0x2b0] sm:$0xff] %vm4176, %v4006
        %4264 = vst.msk [vmem:[%s172 + $0x2b8] sm:$0xff] %vm4176, %v4007
        %4265 = vst.msk [vmem:[%s172 + $0x2c0] sm:$0xff] %vm4176, %v4008
        %4266 = vst.msk [vmem:[%s172 + $0x2c8] sm:$0xff] %vm4176, %v4009
        %4267 = vst.msk [vmem:[%s172 + $0x2d0] sm:$0xff] %vm4176, %v4010
        %4268 = vst.msk [vmem:[%s172 + $0x2d8] sm:$0xff] %vm4176, %v4011
        %4269 = vst.msk [vmem:[%s172 + $0x2e0] sm:$0xff] %vm4176, %v4012
        %4270 = vst.msk [vmem:[%s172 + $0x2e8] sm:$0xff] %vm4176, %v4013
        %4271 = vst.msk [vmem:[%s172 + $0x2f0] sm:$0xff] %vm4176, %v4014
        %4272 = vst.msk [vmem:[%s172 + $0x2f8] sm:$0xff] %vm4176, %v4015
        %4273 = vst.msk [vmem:[%s172 + $0x300] sm:$0xff] %vm4176, %v4016
        %4274 = vst.msk [vmem:[%s172 + $0x308] sm:$0xff] %vm4176, %v4017
        %4275 = vst.msk [vmem:[%s172 + $0x310] sm:$0xff] %vm4176, %v4018
        %4276 = vst.msk [vmem:[%s172 + $0x318] sm:$0xff] %vm4176, %v4019
        %4277 = vst.msk [vmem:[%s172 + $0x320] sm:$0xff] %vm4176, %v4020
        %4278 = vst.msk [vmem:[%s172 + $0x328] sm:$0xff] %vm4176, %v4021
        %4279 = vst.msk [vmem:[%s172 + $0x330] sm:$0xff] %vm4176, %v4022
        %4280 = vst.msk [vmem:[%s172 + $0x338] sm:$0xff] %vm4176, %v4023
        %4281 = vst.msk [vmem:[%s172 + $0x340] sm:$0xff] %vm4176, %v4024
        %4282 = vst.msk [vmem:[%s172 + $0x348] sm:$0xff] %vm4176, %v4025
        %4283 = vst.msk [vmem:[%s172 + $0x350] sm:$0xff] %vm4176, %v4026
        %4284 = vst.msk [vmem:[%s172 + $0x358] sm:$0xff] %vm4176, %v4027
        %4285 = vst.msk [vmem:[%s172 + $0x360] sm:$0xff] %vm4176, %v4028
        %4286 = vst.msk [vmem:[%s172 + $0x368] sm:$0xff] %vm4176, %v4029
        %4287 = vst.msk [vmem:[%s172 + $0x370] sm:$0xff] %vm4176, %v4030
        %4288 = vst.msk [vmem:[%s172 + $0x378] sm:$0xff] %vm4176, %v4031
        %4289 = vst.msk [vmem:[%s172 + $0x380] sm:$0xff] %vm4176, %v4032
        %4290 = vst.msk [vmem:[%s172 + $0x388] sm:$0xff] %vm4176, %v4033
        %4291 = vst.msk [vmem:[%s172 + $0x390] sm:$0xff] %vm4176, %v4034
        %4292 = vst.msk [vmem:[%s172 + $0x398] sm:$0xff] %vm4176, %v4035
        %4293 = vst.msk [vmem:[%s172 + $0x3a0] sm:$0xff] %vm4176, %v4036
        %4294 = vst.msk [vmem:[%s172 + $0x3a8] sm:$0xff] %vm4176, %v4037
        %4295 = vst.msk [vmem:[%s172 + $0x3b0] sm:$0xff] %vm4176, %v4038
        %4296 = vst.msk [vmem:[%s172 + $0x3b8] sm:$0xff] %vm4176, %v4039
        %4297 = vst.msk [vmem:[%s172 + $0x3c0] sm:$0xff] %vm4176, %v4040
        %4298 = vst.msk [vmem:[%s172 + $0x3c8] sm:$0xff] %vm4176, %v4041
        %4299 = vst.msk [vmem:[%s172 + $0x3d0] sm:$0xff] %vm4176, %v4042
        %4300 = vst.msk [vmem:[%s172 + $0x3d8] sm:$0xff] %vm4176, %v4043
        %4301 = vst.msk [vmem:[%s172 + $0x3e0] sm:$0xff] %vm4176, %v4044
        %4302 = vst.msk [vmem:[%s172 + $0x3e8] sm:$0xff] %vm4176, %v4045
        %4303 = vst.msk [vmem:[%s172 + $0x3f0] sm:$0xff] %vm4176, %v4046
        %4304 = vst.msk [vmem:[%s172 + $0x3f8] sm:$0xff] %vm4176, %v4047
        %4305 = vst.msk [vmem:[%s172 + $0x400] sm:$0xff] %vm4176, %v4048
        %4306 = vst.msk [vmem:[%s172 + $0x408] sm:$0xff] %vm4176, %v4049
        %4307 = vst.msk [vmem:[%s172 + $0x410] sm:$0xff] %vm4176, %v4050
        %4308 = vst.msk [vmem:[%s172 + $0x418] sm:$0xff] %vm4176, %v4051
        %4309 = vst.msk [vmem:[%s172 + $0x420] sm:$0xff] %vm4176, %v4052
        %4310 = vst.msk [vmem:[%s172 + $0x428] sm:$0xff] %vm4176, %v4053
        %4311 = vst.msk [vmem:[%s172 + $0x430] sm:$0xff] %vm4176, %v4054
        %4312 = vst.msk [vmem:[%s172 + $0x438] sm:$0xff] %vm4176, %v4055
        %4313 = vst.msk [vmem:[%s172 + $0x440] sm:$0xff] %vm4176, %v4056
        %4314 = vst.msk [vmem:[%s172 + $0x448] sm:$0xff] %vm4176, %v4057
        %4315 = vst.msk [vmem:[%s172 + $0x450] sm:$0xff] %vm4176, %v4058
        %4316 = vst.msk [vmem:[%s172 + $0x458] sm:$0xff] %vm4176, %v4059
        %4317 = vst.msk [vmem:[%s172 + $0x460] sm:$0xff] %vm4176, %v4060
        %4318 = vst.msk [vmem:[%s172 + $0x468] sm:$0xff] %vm4176, %v4061
        %4319 = vst.msk [vmem:[%s172 + $0x470] sm:$0xff] %vm4176, %v4062
        %4320 = vst.msk [vmem:[%s172 + $0x478] sm:$0xff] %vm4176, %v4063
        %4321 = vst.msk [vmem:[%s172 + $0x480] sm:$0xff] %vm4176, %v4064
        %4322 = vst.msk [vmem:[%s172 + $0x488] sm:$0xff] %vm4176, %v4065
        %4323 = vst.msk [vmem:[%s172 + $0x490] sm:$0xff] %vm4176, %v4066
        %4324 = vst.msk [vmem:[%s172 + $0x498] sm:$0xff] %vm4176, %v4067
        %4325 = vst.msk [vmem:[%s172 + $0x4a0] sm:$0xff] %vm4176, %v4068
        %4326 = vst.msk [vmem:[%s172 + $0x4a8] sm:$0xff] %vm4176, %v4069
        %4327 = vst.msk [vmem:[%s172 + $0x4b0] sm:$0xff] %vm4176, %v4070
        %4328 = vst.msk [vmem:[%s172 + $0x4b8] sm:$0xff] %vm4176, %v4071
        %4329 = vst.msk [vmem:[%s172 + $0x4c0] sm:$0xff] %vm4176, %v4072
        %4330 = vst.msk [vmem:[%s172 + $0x4c8] sm:$0xff] %vm4176, %v4073
        %4331 = vst.msk [vmem:[%s172 + $0x4d0] sm:$0xff] %vm4176, %v4074
        %4332 = vst.msk [vmem:[%s172 + $0x4d8] sm:$0xff] %vm4176, %v4075
        %4333 = vst.msk [vmem:[%s172 + $0x4e0] sm:$0xff] %vm4176, %v4076
        %4334 = vst.msk [vmem:[%s172 + $0x4e8] sm:$0xff] %vm4176, %v4077
        %4335 = vst.msk [vmem:[%s172 + $0x4f0] sm:$0xff] %vm4176, %v4078
        %4336 = vst.msk [vmem:[%s172 + $0x4f8] sm:$0xff] %vm4176, %v4079
        %4337 = vst.msk [vmem:[%s172 + $0x500] sm:$0xff] %vm4176, %v4080
        %4338 = vst.msk [vmem:[%s172 + $0x508] sm:$0xff] %vm4176, %v4081
        %4339 = vst.msk [vmem:[%s172 + $0x510] sm:$0xff] %vm4176, %v4082
        %4340 = vst.msk [vmem:[%s172 + $0x518] sm:$0xff] %vm4176, %v4083
        %4341 = vst.msk [vmem:[%s172 + $0x520] sm:$0xff] %vm4176, %v4084
        %4342 = vst.msk [vmem:[%s172 + $0x528] sm:$0xff] %vm4176, %v4085
        %4343 = vst.msk [vmem:[%s172 + $0x530] sm:$0xff] %vm4176, %v4086
        %4344 = vst.msk [vmem:[%s172 + $0x538] sm:$0xff] %vm4176, %v4087
        %4345 = vst.msk [vmem:[%s172 + $0x540] sm:$0xff] %vm4176, %v4088
        %4346 = vst.msk [vmem:[%s172 + $0x548] sm:$0xff] %vm4176, %v4089
        %4347 = vst.msk [vmem:[%s172 + $0x550] sm:$0xff] %vm4176, %v4090
        %4348 = vst.msk [vmem:[%s172 + $0x558] sm:$0xff] %vm4176, %v4091
        %4349 = vst.msk [vmem:[%s172 + $0x560] sm:$0xff] %vm4176, %v4092
        %4350 = vst.msk [vmem:[%s172 + $0x568] sm:$0xff] %vm4176, %v4093
        %4351 = vst.msk [vmem:[%s172 + $0x570] sm:$0xff] %vm4176, %v4094
        %4352 = vst.msk [vmem:[%s172 + $0x578] sm:$0xff] %vm4176, %v4095
        %4353 = vst.msk [vmem:[%s172 + $0x580] sm:$0xff] %vm4176, %v4096
        %4354 = vst.msk [vmem:[%s172 + $0x588] sm:$0xff] %vm4176, %v4097
        %4355 = vst.msk [vmem:[%s172 + $0x590] sm:$0xff] %vm4176, %v4098
        %4356 = vst.msk [vmem:[%s172 + $0x598] sm:$0xff] %vm4176, %v4099
        %4357 = vst.msk [vmem:[%s172 + $0x5a0] sm:$0xff] %vm4176, %v4100
        %4358 = vst.msk [vmem:[%s172 + $0x5a8] sm:$0xff] %vm4176, %v4101
        %4359 = vst.msk [vmem:[%s172 + $0x5b0] sm:$0xff] %vm4176, %v4102
        %4360 = vst.msk [vmem:[%s172 + $0x5b8] sm:$0xff] %vm4176, %v4103
        %4361 = vst.msk [vmem:[%s172 + $0x5c0] sm:$0xff] %vm4176, %v4104
        %4362 = vst.msk [vmem:[%s172 + $0x5c8] sm:$0xff] %vm4176, %v4105
        %4363 = vst.msk [vmem:[%s172 + $0x5d0] sm:$0xff] %vm4176, %v4106
        %4364 = vst.msk [vmem:[%s172 + $0x5d8] sm:$0xff] %vm4176, %v4107
        %4365 = vst.msk [vmem:[%s172 + $0x5e0] sm:$0xff] %vm4176, %v4108
        %4366 = vst.msk [vmem:[%s172 + $0x5e8] sm:$0xff] %vm4176, %v4109
        %4367 = vst.msk [vmem:[%s172 + $0x5f0] sm:$0xff] %vm4176, %v4110
        %4368 = vst.msk [vmem:[%s172 + $0x5f8] sm:$0xff] %vm4176, %v4111
        %4369 = vst.msk [vmem:[%s172 + $0x600] sm:$0xff] %vm4176, %v4112
        %4370 = vst.msk [vmem:[%s172 + $0x608] sm:$0xff] %vm4176, %v4113
        %4371 = vst.msk [vmem:[%s172 + $0x610] sm:$0xff] %vm4176, %v4114
        %4372 = vst.msk [vmem:[%s172 + $0x618] sm:$0xff] %vm4176, %v4115
        %4373 = vst.msk [vmem:[%s172 + $0x620] sm:$0xff] %vm4176, %v4116
        %4374 = vst.msk [vmem:[%s172 + $0x628] sm:$0xff] %vm4176, %v4117
        %4375 = vst.msk [vmem:[%s172 + $0x630] sm:$0xff] %vm4176, %v4118
        %4376 = vst.msk [vmem:[%s172 + $0x638] sm:$0xff] %vm4176, %v4119
        %4377 = vst.msk [vmem:[%s172 + $0x640] sm:$0xff] %vm4176, %v4120
        %4378 = vst.msk [vmem:[%s172 + $0x648] sm:$0xff] %vm4176, %v4121
        %4379 = vst.msk [vmem:[%s172 + $0x650] sm:$0xff] %vm4176, %v4122
        %4380 = vst.msk [vmem:[%s172 + $0x658] sm:$0xff] %vm4176, %v4123
        %4381 = vst.msk [vmem:[%s172 + $0x660] sm:$0xff] %vm4176, %v4124
        %4382 = vst.msk [vmem:[%s172 + $0x668] sm:$0xff] %vm4176, %v4125
        %4383 = vst.msk [vmem:[%s172 + $0x670] sm:$0xff] %vm4176, %v4126
        %4384 = vst.msk [vmem:[%s172 + $0x678] sm:$0xff] %vm4176, %v4127
        %4385 = vst.msk [vmem:[%s172 + $0x680] sm:$0xff] %vm4176, %v4128
        %4386 = vst.msk [vmem:[%s172 + $0x688] sm:$0xff] %vm4176, %v4129
        %4387 = vst.msk [vmem:[%s172 + $0x690] sm:$0xff] %vm4176, %v4130
        %4388 = vst.msk [vmem:[%s172 + $0x698] sm:$0xff] %vm4176, %v4131
        %4389 = vst.msk [vmem:[%s172 + $0x6a0] sm:$0xff] %vm4176, %v4132
        %4390 = vst.msk [vmem:[%s172 + $0x6a8] sm:$0xff] %vm4176, %v4133
        %4391 = vst.msk [vmem:[%s172 + $0x6b0] sm:$0xff] %vm4176, %v4134
        %4392 = vst.msk [vmem:[%s172 + $0x6b8] sm:$0xff] %vm4176, %v4135
        %4393 = vst.msk [vmem:[%s172 + $0x6c0] sm:$0xff] %vm4176, %v4136
        %4394 = vst.msk [vmem:[%s172 + $0x6c8] sm:$0xff] %vm4176, %v4137
        %4395 = vst.msk [vmem:[%s172 + $0x6d0] sm:$0xff] %vm4176, %v4138
        %4396 = vst.msk [vmem:[%s172 + $0x6d8] sm:$0xff] %vm4176, %v4139
        %4397 = vst.msk [vmem:[%s172 + $0x6e0] sm:$0xff] %vm4176, %v4140
        %4398 = vst.msk [vmem:[%s172 + $0x6e8] sm:$0xff] %vm4176, %v4141
        %4399 = vst.msk [vmem:[%s172 + $0x6f0] sm:$0xff] %vm4176, %v4142
        %4400 = vst.msk [vmem:[%s172 + $0x6f8] sm:$0xff] %vm4176, %v4143
        %4401 = vst.msk [vmem:[%s172 + $0x700] sm:$0xff] %vm4176, %v4144
        %4402 = vst.msk [vmem:[%s172 + $0x708] sm:$0xff] %vm4176, %v4145
        %4403 = vst.msk [vmem:[%s172 + $0x710] sm:$0xff] %vm4176, %v4146
        %4404 = vst.msk [vmem:[%s172 + $0x718] sm:$0xff] %vm4176, %v4147
        %4405 = vst.msk [vmem:[%s172 + $0x720] sm:$0xff] %vm4176, %v4148
        %4406 = vst.msk [vmem:[%s172 + $0x728] sm:$0xff] %vm4176, %v4149
        %4407 = vst.msk [vmem:[%s172 + $0x730] sm:$0xff] %vm4176, %v4150
        %4408 = vst.msk [vmem:[%s172 + $0x738] sm:$0xff] %vm4176, %v4151
        %4409 = vst.msk [vmem:[%s172 + $0x740] sm:$0xff] %vm4176, %v4152
        %4410 = vst.msk [vmem:[%s172 + $0x748] sm:$0xff] %vm4176, %v4153
        %4411 = vst.msk [vmem:[%s172 + $0x750] sm:$0xff] %vm4176, %v4154
        %4412 = vst.msk [vmem:[%s172 + $0x758] sm:$0xff] %vm4176, %v4155
        %4413 = vst.msk [vmem:[%s172 + $0x760] sm:$0xff] %vm4176, %v4156
        %4414 = vst.msk [vmem:[%s172 + $0x768] sm:$0xff] %vm4176, %v4157
        %4415 = vst.msk [vmem:[%s172 + $0x770] sm:$0xff] %vm4176, %v4158
        %4416 = vst.msk [vmem:[%s172 + $0x778] sm:$0xff] %vm4176, %v4159
        %4417 = vst.msk [vmem:[%s172 + $0x780] sm:$0xff] %vm4176, %v4160
        %4418 = vst.msk [vmem:[%s172 + $0x788] sm:$0xff] %vm4176, %v4161
        %4419 = vst.msk [vmem:[%s172 + $0x790] sm:$0xff] %vm4176, %v4162
        %4420 = vst.msk [vmem:[%s172 + $0x798] sm:$0xff] %vm4176, %v4163
        %4421 = vst.msk [vmem:[%s172 + $0x7a0] sm:$0xff] %vm4176, %v4164
        %4422 = vst.msk [vmem:[%s172 + $0x7a8] sm:$0xff] %vm4176, %v4165
        %4423 = vst.msk [vmem:[%s172 + $0x7b0] sm:$0xff] %vm4176, %v4166
        %4424 = vst.msk [vmem:[%s172 + $0x7b8] sm:$0xff] %vm4176, %v4167
        %4425 = vst.msk [vmem:[%s172 + $0x7c0] sm:$0xff] %vm4176, %v4168
        %4426 = vst.msk [vmem:[%s172 + $0x7c8] sm:$0xff] %vm4176, %v4169
        %4427 = vst.msk [vmem:[%s172 + $0x7d0] sm:$0xff] %vm4176, %v4170
        %4428 = vst.msk [vmem:[%s172 + $0x7d8] sm:$0xff] %vm4176, %v4171
        %4429 = vst.msk [vmem:[%s172 + $0x7e0] sm:$0xff] %vm4176, %v4172
        %4430 = vst.msk [vmem:[%s172 + $0x7e8] sm:$0xff] %vm4176, %v4173
        %4431 = vst.msk [vmem:[%s172 + $0x7f0] sm:$0xff] %vm4176, %v4174
        %4432 = vst.msk [vmem:[%s172 + $0x7f8] sm:$0xff] %vm4176, %v4175
        %s4433 = sand.u32 %s90, 1
        %s4434 = sand.u32 %s90, 1
        %s4435 = smul.addr %s4434, 2048
        %s4436 = scalar_lea.vmem [#allocation2], %s4435
        // Predicated region
        $region33: #{tpu_custom_call.1} parent=31 // pred_check
          %p4437 = pneg %p100
        $region34: #{tpu_custom_call.1} parent=31 // pred_check_branch
          %4439 = sbr.rel (%p4437) target = $region36
        $region35: #{tpu_custom_call.1} parent=31 // pred_region
          %s4440 = smul.u32 256, %s14
          %s4441 = ssub.s32 520, %s4440
          %p4442 = scmp.lt.s32.totalorder %s4441, 256
          %s4443 = scalar_select %p4442, %s4441, 256
          %s4444 = smul.u32 128, %s4443
          %p4445 = scmp.ne.s32.totalorder 0, %s4444
          %s4446 = smul.addr %s4440, 8
          %s4447 = scalar_lea.vmem %s3, %s4446
          // Predicated region
          $region37: #{tpu_custom_call.1} parent=35 // pred_check
            %p4448 = pneg %p4445
          $region38: #{tpu_custom_call.1} parent=35 // pred_check_branch
            %4450 = sbr.rel (%p4448) target = $region40
          $region39: #{tpu_custom_call.1} parent=35 // pred_region
            // Predicated region
            $region41: #{tpu_custom_call.1} parent=39 // pred_check
              _
            $region42: #{tpu_custom_call.1} parent=39 // pred_check_branch
              %4452 = sbr.rel (0) target = $region44
            $region43: #{tpu_custom_call.1} parent=39 // pred_region
              // Predicated region
              $region63: #{tpu_custom_call.1} parent=43 // pred_check
                _
              $region64: #{tpu_custom_call.1} parent=43 // pred_check_branch
                %4627 = sbr.rel (0) target = $region66
              $region65: #{tpu_custom_call.1} parent=43 // pred_region
                %s4628 = sshrl.u32 %s4443, 6
                // While loop
                $region67: #{tpu_custom_call.1} parent=65 // loop_pre_header
                  _
                $region68: #{tpu_custom_call.1} parent=65 // loop_header
                  %s4630 = sphi 0, %s4632
                  %p4631 = scmp.ge.s32.totalorder %s4630, %s4628
                  %s4635 = sphi 0, %s4768
                  %s4636 = sphi %s4436, %s4771
                  %s4637 = sphi %s4447, %s4772
                $region69: #{tpu_custom_call.1} parent=65 // loop_header_branch
                  %4634 = sbr.rel (%p4631) target = $region73
                $region70: #{tpu_custom_call.1} parent=65 // loop_body
                  %v4638 = vld [vmem:[%s4636] sm:$0xff]
                  %4639 = vst [vmem:[%s4637] sm:$0xff] %v4638
                  %v4640 = vld [vmem:[%s4636 + $0x8] sm:$0xff]
                  %4641 = vst [vmem:[%s4637 + $0x8] sm:$0xff] %v4640
                  %v4642 = vld [vmem:[%s4636 + $0x10] sm:$0xff]
                  %4643 = vst [vmem:[%s4637 + $0x10] sm:$0xff] %v4642
                  %v4644 = vld [vmem:[%s4636 + $0x18] sm:$0xff]
                  %4645 = vst [vmem:[%s4637 + $0x18] sm:$0xff] %v4644
                  %v4646 = vld [vmem:[%s4636 + $0x20] sm:$0xff]
                  %4647 = vst [vmem:[%s4637 + $0x20] sm:$0xff] %v4646
                  %v4648 = vld [vmem:[%s4636 + $0x28] sm:$0xff]
                  %4649 = vst [vmem:[%s4637 + $0x28] sm:$0xff] %v4648
                  %v4650 = vld [vmem:[%s4636 + $0x30] sm:$0xff]
                  %4651 = vst [vmem:[%s4637 + $0x30] sm:$0xff] %v4650
                  %v4652 = vld [vmem:[%s4636 + $0x38] sm:$0xff]
                  %4653 = vst [vmem:[%s4637 + $0x38] sm:$0xff] %v4652
                  %v4654 = vld [vmem:[%s4636 + $0x40] sm:$0xff]
                  %4655 = vst [vmem:[%s4637 + $0x40] sm:$0xff] %v4654
                  %v4656 = vld [vmem:[%s4636 + $0x48] sm:$0xff]
                  %4657 = vst [vmem:[%s4637 + $0x48] sm:$0xff] %v4656
                  %v4658 = vld [vmem:[%s4636 + $0x50] sm:$0xff]
                  %4659 = vst [vmem:[%s4637 + $0x50] sm:$0xff] %v4658
                  %v4660 = vld [vmem:[%s4636 + $0x58] sm:$0xff]
                  %4661 = vst [vmem:[%s4637 + $0x58] sm:$0xff] %v4660
                  %v4662 = vld [vmem:[%s4636 + $0x60] sm:$0xff]
                  %4663 = vst [vmem:[%s4637 + $0x60] sm:$0xff] %v4662
                  %v4664 = vld [vmem:[%s4636 + $0x68] sm:$0xff]
                  %4665 = vst [vmem:[%s4637 + $0x68] sm:$0xff] %v4664
                  %v4666 = vld [vmem:[%s4636 + $0x70] sm:$0xff]
                  %4667 = vst [vmem:[%s4637 + $0x70] sm:$0xff] %v4666
                  %v4668 = vld [vmem:[%s4636 + $0x78] sm:$0xff]
                  %4669 = vst [vmem:[%s4637 + $0x78] sm:$0xff] %v4668
                  %v4670 = vld [vmem:[%s4636 + $0x80] sm:$0xff]
                  %4671 = vst [vmem:[%s4637 + $0x80] sm:$0xff] %v4670
                  %v4672 = vld [vmem:[%s4636 + $0x88] sm:$0xff]
                  %4673 = vst [vmem:[%s4637 + $0x88] sm:$0xff] %v4672
                  %v4674 = vld [vmem:[%s4636 + $0x90] sm:$0xff]
                  %4675 = vst [vmem:[%s4637 + $0x90] sm:$0xff] %v4674
                  %v4676 = vld [vmem:[%s4636 + $0x98] sm:$0xff]
                  %4677 = vst [vmem:[%s4637 + $0x98] sm:$0xff] %v4676
                  %v4678 = vld [vmem:[%s4636 + $0xa0] sm:$0xff]
                  %4679 = vst [vmem:[%s4637 + $0xa0] sm:$0xff] %v4678
                  %v4680 = vld [vmem:[%s4636 + $0xa8] sm:$0xff]
                  %4681 = vst [vmem:[%s4637 + $0xa8] sm:$0xff] %v4680
                  %v4682 = vld [vmem:[%s4636 + $0xb0] sm:$0xff]
                  %4683 = vst [vmem:[%s4637 + $0xb0] sm:$0xff] %v4682
                  %v4684 = vld [vmem:[%s4636 + $0xb8] sm:$0xff]
                  %4685 = vst [vmem:[%s4637 + $0xb8] sm:$0xff] %v4684
                  %v4686 = vld [vmem:[%s4636 + $0xc0] sm:$0xff]
                  %4687 = vst [vmem:[%s4637 + $0xc0] sm:$0xff] %v4686
                  %v4688 = vld [vmem:[%s4636 + $0xc8] sm:$0xff]
                  %4689 = vst [vmem:[%s4637 + $0xc8] sm:$0xff] %v4688
                  %v4690 = vld [vmem:[%s4636 + $0xd0] sm:$0xff]
                  %4691 = vst [vmem:[%s4637 + $0xd0] sm:$0xff] %v4690
                  %v4692 = vld [vmem:[%s4636 + $0xd8] sm:$0xff]
                  %4693 = vst [vmem:[%s4637 + $0xd8] sm:$0xff] %v4692
                  %v4694 = vld [vmem:[%s4636 + $0xe0] sm:$0xff]
                  %4695 = vst [vmem:[%s4637 + $0xe0] sm:$0xff] %v4694
                  %v4696 = vld [vmem:[%s4636 + $0xe8] sm:$0xff]
                  %4697 = vst [vmem:[%s4637 + $0xe8] sm:$0xff] %v4696
                  %v4698 = vld [vmem:[%s4636 + $0xf0] sm:$0xff]
                  %4699 = vst [vmem:[%s4637 + $0xf0] sm:$0xff] %v4698
                  %v4700 = vld [vmem:[%s4636 + $0xf8] sm:$0xff]
                  %4701 = vst [vmem:[%s4637 + $0xf8] sm:$0xff] %v4700
                  %v4702 = vld [vmem:[%s4636 + $0x100] sm:$0xff]
                  %4703 = vst [vmem:[%s4637 + $0x100] sm:$0xff] %v4702
                  %v4704 = vld [vmem:[%s4636 + $0x108] sm:$0xff]
                  %4705 = vst [vmem:[%s4637 + $0x108] sm:$0xff] %v4704
                  %v4706 = vld [vmem:[%s4636 + $0x110] sm:$0xff]
                  %4707 = vst [vmem:[%s4637 + $0x110] sm:$0xff] %v4706
                  %v4708 = vld [vmem:[%s4636 + $0x118] sm:$0xff]
                  %4709 = vst [vmem:[%s4637 + $0x118] sm:$0xff] %v4708
                  %v4710 = vld [vmem:[%s4636 + $0x120] sm:$0xff]
                  %4711 = vst [vmem:[%s4637 + $0x120] sm:$0xff] %v4710
                  %v4712 = vld [vmem:[%s4636 + $0x128] sm:$0xff]
                  %4713 = vst [vmem:[%s4637 + $0x128] sm:$0xff] %v4712
                  %v4714 = vld [vmem:[%s4636 + $0x130] sm:$0xff]
                  %4715 = vst [vmem:[%s4637 + $0x130] sm:$0xff] %v4714
                  %v4716 = vld [vmem:[%s4636 + $0x138] sm:$0xff]
                  %4717 = vst [vmem:[%s4637 + $0x138] sm:$0xff] %v4716
                  %v4718 = vld [vmem:[%s4636 + $0x140] sm:$0xff]
                  %4719 = vst [vmem:[%s4637 + $0x140] sm:$0xff] %v4718
                  %v4720 = vld [vmem:[%s4636 + $0x148] sm:$0xff]
                  %4721 = vst [vmem:[%s4637 + $0x148] sm:$0xff] %v4720
                  %v4722 = vld [vmem:[%s4636 + $0x150] sm:$0xff]
                  %4723 = vst [vmem:[%s4637 + $0x150] sm:$0xff] %v4722
                  %v4724 = vld [vmem:[%s4636 + $0x158] sm:$0xff]
                  %4725 = vst [vmem:[%s4637 + $0x158] sm:$0xff] %v4724
                  %v4726 = vld [vmem:[%s4636 + $0x160] sm:$0xff]
                  %4727 = vst [vmem:[%s4637 + $0x160] sm:$0xff] %v4726
                  %v4728 = vld [vmem:[%s4636 + $0x168] sm:$0xff]
                  %4729 = vst [vmem:[%s4637 + $0x168] sm:$0xff] %v4728
                  %v4730 = vld [vmem:[%s4636 + $0x170] sm:$0xff]
                  %4731 = vst [vmem:[%s4637 + $0x170] sm:$0xff] %v4730
                  %v4732 = vld [vmem:[%s4636 + $0x178] sm:$0xff]
                  %4733 = vst [vmem:[%s4637 + $0x178] sm:$0xff] %v4732
                  %v4734 = vld [vmem:[%s4636 + $0x180] sm:$0xff]
                  %4735 = vst [vmem:[%s4637 + $0x180] sm:$0xff] %v4734
                  %v4736 = vld [vmem:[%s4636 + $0x188] sm:$0xff]
                  %4737 = vst [vmem:[%s4637 + $0x188] sm:$0xff] %v4736
                  %v4738 = vld [vmem:[%s4636 + $0x190] sm:$0xff]
                  %4739 = vst [vmem:[%s4637 + $0x190] sm:$0xff] %v4738
                  %v4740 = vld [vmem:[%s4636 + $0x198] sm:$0xff]
                  %4741 = vst [vmem:[%s4637 + $0x198] sm:$0xff] %v4740
                  %v4742 = vld [vmem:[%s4636 + $0x1a0] sm:$0xff]
                  %4743 = vst [vmem:[%s4637 + $0x1a0] sm:$0xff] %v4742
                  %v4744 = vld [vmem:[%s4636 + $0x1a8] sm:$0xff]
                  %4745 = vst [vmem:[%s4637 + $0x1a8] sm:$0xff] %v4744
                  %v4746 = vld [vmem:[%s4636 + $0x1b0] sm:$0xff]
                  %4747 = vst [vmem:[%s4637 + $0x1b0] sm:$0xff] %v4746
                  %v4748 = vld [vmem:[%s4636 + $0x1b8] sm:$0xff]
                  %4749 = vst [vmem:[%s4637 + $0x1b8] sm:$0xff] %v4748
                  %v4750 = vld [vmem:[%s4636 + $0x1c0] sm:$0xff]
                  %4751 = vst [vmem:[%s4637 + $0x1c0] sm:$0xff] %v4750
                  %v4752 = vld [vmem:[%s4636 + $0x1c8] sm:$0xff]
                  %4753 = vst [vmem:[%s4637 + $0x1c8] sm:$0xff] %v4752
                  %v4754 = vld [vmem:[%s4636 + $0x1d0] sm:$0xff]
                  %4755 = vst [vmem:[%s4637 + $0x1d0] sm:$0xff] %v4754
                  %v4756 = vld [vmem:[%s4636 + $0x1d8] sm:$0xff]
                  %4757 = vst [vmem:[%s4637 + $0x1d8] sm:$0xff] %v4756
                  %v4758 = vld [vmem:[%s4636 + $0x1e0] sm:$0xff]
                  %4759 = vst [vmem:[%s4637 + $0x1e0] sm:$0xff] %v4758
                  %v4760 = vld [vmem:[%s4636 + $0x1e8] sm:$0xff]
                  %4761 = vst [vmem:[%s4637 + $0x1e8] sm:$0xff] %v4760
                  %v4762 = vld [vmem:[%s4636 + $0x1f0] sm:$0xff]
                  %4763 = vst [vmem:[%s4637 + $0x1f0] sm:$0xff] %v4762
                  %v4764 = vld [vmem:[%s4636 + $0x1f8] sm:$0xff]
                  %4765 = vst [vmem:[%s4637 + $0x1f8] sm:$0xff] %v4764
                  %s4766 = sadd.s32 1, %s4635
                  %p4767 = scmp.ge.s32.totalorder %s4766, %s4628
                  %s4768 = scalar_select %p4767, 0, %s4766
                  %s4769 = smul.u32 %s4768, 512
                  %s4770 = smul.u32 %s4768, 512
                  %s4771 = scalar_lea.vmem %s4436, %s4769 [#allocation2]
                  %s4772 = scalar_lea.vmem %s4447, %s4770
                $region71: #{tpu_custom_call.1} parent=65 // loop_footer
                  %s4632 = sadd.s32 %s4630, 1
                $region72: #{tpu_custom_call.1} parent=65 // loop_footer_branch
                  %4629 = sbr.rel target = $region68
                $region73: #{tpu_custom_call.1} parent=65 // loop_exit
                  _
                %s4773 = sshrl.u32 %s4443, 6
                %s4774 = sand.u32 %s4443, 63
                %s4775 = smul.u32 %s4773, 64
                %s4776 = smul.u32 8, %s4775
                %s4777 = scalar_lea.vmem %s4436, %s4776 [#allocation2]
                %s4778 = smul.u32 8, %s4775
                %s4779 = scalar_lea.vmem %s4447, %s4778
                // While loop
                $region74: #{tpu_custom_call.1} parent=65 // loop_pre_header
                  _
                $region75: #{tpu_custom_call.1} parent=65 // loop_header
                  %s4781 = sphi 0, %s4783
                  %p4782 = scmp.ge.s32.totalorder %s4781, %s4774
                  %s4786 = sphi 0, %s4793
                  %s4787 = sphi %s4777, %s4796
                  %s4788 = sphi %s4779, %s4797
                $region76: #{tpu_custom_call.1} parent=65 // loop_header_branch
                  %4785 = sbr.rel (%p4782) target = $region80
                $region77: #{tpu_custom_call.1} parent=65 // loop_body
                  %v4789 = vld [vmem:[%s4787] sm:$0xff]
                  %4790 = vst [vmem:[%s4788] sm:$0xff] %v4789
                  %s4791 = sadd.s32 1, %s4786
                  %p4792 = scmp.ge.s32.totalorder %s4791, %s4774
                  %s4793 = scalar_select %p4792, 0, %s4791
                  %s4794 = smul.u32 %s4793, 8
                  %s4795 = smul.u32 %s4793, 8
                  %s4796 = scalar_lea.vmem %s4777, %s4794 [#allocation2]
                  %s4797 = scalar_lea.vmem %s4779, %s4795
                $region78: #{tpu_custom_call.1} parent=65 // loop_footer
                  %s4783 = sadd.s32 %s4781, 1
                $region79: #{tpu_custom_call.1} parent=65 // loop_footer_branch
                  %4780 = sbr.rel target = $region75
                $region80: #{tpu_custom_call.1} parent=65 // loop_exit
                  _
              $region66: #{tpu_custom_call.1} parent=43 // pred_fallthru
                _
              // Predicated region
              $region81: #{tpu_custom_call.1} parent=43 // pred_check
                _
              $region82: #{tpu_custom_call.1} parent=43 // pred_check_branch
                %4799 = sbr.rel target = $region84
              $region83: #{tpu_custom_call.1} parent=43 // pred_region
                _
              $region84: #{tpu_custom_call.1} parent=43 // pred_fallthru
                _
            $region44: #{tpu_custom_call.1} parent=39 // pred_fallthru
              _
            // Predicated region
            $region45: #{tpu_custom_call.1} parent=39 // pred_check
              _
            $region46: #{tpu_custom_call.1} parent=39 // pred_check_branch
              %4454 = sbr.rel target = $region48
            $region47: #{tpu_custom_call.1} parent=39 // pred_region
              %s4456 = sshrl.u32 %s4443, 6
              // While loop
              $region49: #{tpu_custom_call.1} parent=47 // loop_pre_header
                _
              $region50: #{tpu_custom_call.1} parent=47 // loop_header
                %s4458 = sphi 0, %s4460
                %p4459 = scmp.ge.s32.totalorder %s4458, %s4456
                %s4463 = sphi 0, %s4596
                %s4464 = sphi %s4436, %s4599
                %s4465 = sphi %s4447, %s4600
              $region51: #{tpu_custom_call.1} parent=47 // loop_header_branch
                %4462 = sbr.rel (%p4459) target = $region55
              $region52: #{tpu_custom_call.1} parent=47 // loop_body
                %v4466 = vld [vmem:[%s4464] sm:$0xff]
                %4467 = vst [vmem:[%s4465] sm:$0xff] %v4466
                %v4468 = vld [vmem:[%s4464 + $0x8] sm:$0xff]
                %4469 = vst [vmem:[%s4465 + $0x8] sm:$0xff] %v4468
                %v4470 = vld [vmem:[%s4464 + $0x10] sm:$0xff]
                %4471 = vst [vmem:[%s4465 + $0x10] sm:$0xff] %v4470
                %v4472 = vld [vmem:[%s4464 + $0x18] sm:$0xff]
                %4473 = vst [vmem:[%s4465 + $0x18] sm:$0xff] %v4472
                %v4474 = vld [vmem:[%s4464 + $0x20] sm:$0xff]
                %4475 = vst [vmem:[%s4465 + $0x20] sm:$0xff] %v4474
                %v4476 = vld [vmem:[%s4464 + $0x28] sm:$0xff]
                %4477 = vst [vmem:[%s4465 + $0x28] sm:$0xff] %v4476
                %v4478 = vld [vmem:[%s4464 + $0x30] sm:$0xff]
                %4479 = vst [vmem:[%s4465 + $0x30] sm:$0xff] %v4478
                %v4480 = vld [vmem:[%s4464 + $0x38] sm:$0xff]
                %4481 = vst [vmem:[%s4465 + $0x38] sm:$0xff] %v4480
                %v4482 = vld [vmem:[%s4464 + $0x40] sm:$0xff]
                %4483 = vst [vmem:[%s4465 + $0x40] sm:$0xff] %v4482
                %v4484 = vld [vmem:[%s4464 + $0x48] sm:$0xff]
                %4485 = vst [vmem:[%s4465 + $0x48] sm:$0xff] %v4484
                %v4486 = vld [vmem:[%s4464 + $0x50] sm:$0xff]
                %4487 = vst [vmem:[%s4465 + $0x50] sm:$0xff] %v4486
                %v4488 = vld [vmem:[%s4464 + $0x58] sm:$0xff]
                %4489 = vst [vmem:[%s4465 + $0x58] sm:$0xff] %v4488
                %v4490 = vld [vmem:[%s4464 + $0x60] sm:$0xff]
                %4491 = vst [vmem:[%s4465 + $0x60] sm:$0xff] %v4490
                %v4492 = vld [vmem:[%s4464 + $0x68] sm:$0xff]
                %4493 = vst [vmem:[%s4465 + $0x68] sm:$0xff] %v4492
                %v4494 = vld [vmem:[%s4464 + $0x70] sm:$0xff]
                %4495 = vst [vmem:[%s4465 + $0x70] sm:$0xff] %v4494
                %v4496 = vld [vmem:[%s4464 + $0x78] sm:$0xff]
                %4497 = vst [vmem:[%s4465 + $0x78] sm:$0xff] %v4496
                %v4498 = vld [vmem:[%s4464 + $0x80] sm:$0xff]
                %4499 = vst [vmem:[%s4465 + $0x80] sm:$0xff] %v4498
                %v4500 = vld [vmem:[%s4464 + $0x88] sm:$0xff]
                %4501 = vst [vmem:[%s4465 + $0x88] sm:$0xff] %v4500
                %v4502 = vld [vmem:[%s4464 + $0x90] sm:$0xff]
                %4503 = vst [vmem:[%s4465 + $0x90] sm:$0xff] %v4502
                %v4504 = vld [vmem:[%s4464 + $0x98] sm:$0xff]
                %4505 = vst [vmem:[%s4465 + $0x98] sm:$0xff] %v4504
                %v4506 = vld [vmem:[%s4464 + $0xa0] sm:$0xff]
                %4507 = vst [vmem:[%s4465 + $0xa0] sm:$0xff] %v4506
                %v4508 = vld [vmem:[%s4464 + $0xa8] sm:$0xff]
                %4509 = vst [vmem:[%s4465 + $0xa8] sm:$0xff] %v4508
                %v4510 = vld [vmem:[%s4464 + $0xb0] sm:$0xff]
                %4511 = vst [vmem:[%s4465 + $0xb0] sm:$0xff] %v4510
                %v4512 = vld [vmem:[%s4464 + $0xb8] sm:$0xff]
                %4513 = vst [vmem:[%s4465 + $0xb8] sm:$0xff] %v4512
                %v4514 = vld [vmem:[%s4464 + $0xc0] sm:$0xff]
                %4515 = vst [vmem:[%s4465 + $0xc0] sm:$0xff] %v4514
                %v4516 = vld [vmem:[%s4464 + $0xc8] sm:$0xff]
                %4517 = vst [vmem:[%s4465 + $0xc8] sm:$0xff] %v4516
                %v4518 = vld [vmem:[%s4464 + $0xd0] sm:$0xff]
                %4519 = vst [vmem:[%s4465 + $0xd0] sm:$0xff] %v4518
                %v4520 = vld [vmem:[%s4464 + $0xd8] sm:$0xff]
                %4521 = vst [vmem:[%s4465 + $0xd8] sm:$0xff] %v4520
                %v4522 = vld [vmem:[%s4464 + $0xe0] sm:$0xff]
                %4523 = vst [vmem:[%s4465 + $0xe0] sm:$0xff] %v4522
                %v4524 = vld [vmem:[%s4464 + $0xe8] sm:$0xff]
                %4525 = vst [vmem:[%s4465 + $0xe8] sm:$0xff] %v4524
                %v4526 = vld [vmem:[%s4464 + $0xf0] sm:$0xff]
                %4527 = vst [vmem:[%s4465 + $0xf0] sm:$0xff] %v4526
                %v4528 = vld [vmem:[%s4464 + $0xf8] sm:$0xff]
                %4529 = vst [vmem:[%s4465 + $0xf8] sm:$0xff] %v4528
                %v4530 = vld [vmem:[%s4464 + $0x100] sm:$0xff]
                %4531 = vst [vmem:[%s4465 + $0x100] sm:$0xff] %v4530
                %v4532 = vld [vmem:[%s4464 + $0x108] sm:$0xff]
                %4533 = vst [vmem:[%s4465 + $0x108] sm:$0xff] %v4532
                %v4534 = vld [vmem:[%s4464 + $0x110] sm:$0xff]
                %4535 = vst [vmem:[%s4465 + $0x110] sm:$0xff] %v4534
                %v4536 = vld [vmem:[%s4464 + $0x118] sm:$0xff]
                %4537 = vst [vmem:[%s4465 + $0x118] sm:$0xff] %v4536
                %v4538 = vld [vmem:[%s4464 + $0x120] sm:$0xff]
                %4539 = vst [vmem:[%s4465 + $0x120] sm:$0xff] %v4538
                %v4540 = vld [vmem:[%s4464 + $0x128] sm:$0xff]
                %4541 = vst [vmem:[%s4465 + $0x128] sm:$0xff] %v4540
                %v4542 = vld [vmem:[%s4464 + $0x130] sm:$0xff]
                %4543 = vst [vmem:[%s4465 + $0x130] sm:$0xff] %v4542
                %v4544 = vld [vmem:[%s4464 + $0x138] sm:$0xff]
                %4545 = vst [vmem:[%s4465 + $0x138] sm:$0xff] %v4544
                %v4546 = vld [vmem:[%s4464 + $0x140] sm:$0xff]
                %4547 = vst [vmem:[%s4465 + $0x140] sm:$0xff] %v4546
                %v4548 = vld [vmem:[%s4464 + $0x148] sm:$0xff]
                %4549 = vst [vmem:[%s4465 + $0x148] sm:$0xff] %v4548
                %v4550 = vld [vmem:[%s4464 + $0x150] sm:$0xff]
                %4551 = vst [vmem:[%s4465 + $0x150] sm:$0xff] %v4550
                %v4552 = vld [vmem:[%s4464 + $0x158] sm:$0xff]
                %4553 = vst [vmem:[%s4465 + $0x158] sm:$0xff] %v4552
                %v4554 = vld [vmem:[%s4464 + $0x160] sm:$0xff]
                %4555 = vst [vmem:[%s4465 + $0x160] sm:$0xff] %v4554
                %v4556 = vld [vmem:[%s4464 + $0x168] sm:$0xff]
                %4557 = vst [vmem:[%s4465 + $0x168] sm:$0xff] %v4556
                %v4558 = vld [vmem:[%s4464 + $0x170] sm:$0xff]
                %4559 = vst [vmem:[%s4465 + $0x170] sm:$0xff] %v4558
                %v4560 = vld [vmem:[%s4464 + $0x178] sm:$0xff]
                %4561 = vst [vmem:[%s4465 + $0x178] sm:$0xff] %v4560
                %v4562 = vld [vmem:[%s4464 + $0x180] sm:$0xff]
                %4563 = vst [vmem:[%s4465 + $0x180] sm:$0xff] %v4562
                %v4564 = vld [vmem:[%s4464 + $0x188] sm:$0xff]
                %4565 = vst [vmem:[%s4465 + $0x188] sm:$0xff] %v4564
                %v4566 = vld [vmem:[%s4464 + $0x190] sm:$0xff]
                %4567 = vst [vmem:[%s4465 + $0x190] sm:$0xff] %v4566
                %v4568 = vld [vmem:[%s4464 + $0x198] sm:$0xff]
                %4569 = vst [vmem:[%s4465 + $0x198] sm:$0xff] %v4568
                %v4570 = vld [vmem:[%s4464 + $0x1a0] sm:$0xff]
                %4571 = vst [vmem:[%s4465 + $0x1a0] sm:$0xff] %v4570
                %v4572 = vld [vmem:[%s4464 + $0x1a8] sm:$0xff]
                %4573 = vst [vmem:[%s4465 + $0x1a8] sm:$0xff] %v4572
                %v4574 = vld [vmem:[%s4464 + $0x1b0] sm:$0xff]
                %4575 = vst [vmem:[%s4465 + $0x1b0] sm:$0xff] %v4574
                %v4576 = vld [vmem:[%s4464 + $0x1b8] sm:$0xff]
                %4577 = vst [vmem:[%s4465 + $0x1b8] sm:$0xff] %v4576
                %v4578 = vld [vmem:[%s4464 + $0x1c0] sm:$0xff]
                %4579 = vst [vmem:[%s4465 + $0x1c0] sm:$0xff] %v4578
                %v4580 = vld [vmem:[%s4464 + $0x1c8] sm:$0xff]
                %4581 = vst [vmem:[%s4465 + $0x1c8] sm:$0xff] %v4580
                %v4582 = vld [vmem:[%s4464 + $0x1d0] sm:$0xff]
                %4583 = vst [vmem:[%s4465 + $0x1d0] sm:$0xff] %v4582
                %v4584 = vld [vmem:[%s4464 + $0x1d8] sm:$0xff]
                %4585 = vst [vmem:[%s4465 + $0x1d8] sm:$0xff] %v4584
                %v4586 = vld [vmem:[%s4464 + $0x1e0] sm:$0xff]
                %4587 = vst [vmem:[%s4465 + $0x1e0] sm:$0xff] %v4586
                %v4588 = vld [vmem:[%s4464 + $0x1e8] sm:$0xff]
                %4589 = vst [vmem:[%s4465 + $0x1e8] sm:$0xff] %v4588
                %v4590 = vld [vmem:[%s4464 + $0x1f0] sm:$0xff]
                %4591 = vst [vmem:[%s4465 + $0x1f0] sm:$0xff] %v4590
                %v4592 = vld [vmem:[%s4464 + $0x1f8] sm:$0xff]
                %4593 = vst [vmem:[%s4465 + $0x1f8] sm:$0xff] %v4592
                %s4594 = sadd.s32 1, %s4463
                %p4595 = scmp.ge.s32.totalorder %s4594, %s4456
                %s4596 = scalar_select %p4595, 0, %s4594
                %s4597 = smul.u32 %s4596, 512
                %s4598 = smul.u32 %s4596, 512
                %s4599 = scalar_lea.vmem %s4436, %s4597 [#allocation2]
                %s4600 = scalar_lea.vmem %s4447, %s4598
              $region53: #{tpu_custom_call.1} parent=47 // loop_footer
                %s4460 = sadd.s32 %s4458, 1
              $region54: #{tpu_custom_call.1} parent=47 // loop_footer_branch
                %4457 = sbr.rel target = $region50
              $region55: #{tpu_custom_call.1} parent=47 // loop_exit
                _
              %s4601 = sshrl.u32 %s4443, 6
              %s4602 = sand.u32 %s4443, 63
              %s4603 = smul.u32 %s4601, 64
              %s4604 = smul.u32 8, %s4603
              %s4605 = scalar_lea.vmem %s4436, %s4604 [#allocation2]
              %s4606 = smul.u32 8, %s4603
              %s4607 = scalar_lea.vmem %s4447, %s4606
              // While loop
              $region56: #{tpu_custom_call.1} parent=47 // loop_pre_header
                _
              $region57: #{tpu_custom_call.1} parent=47 // loop_header
                %s4609 = sphi 0, %s4611
                %p4610 = scmp.ge.s32.totalorder %s4609, %s4602
                %s4614 = sphi 0, %s4621
                %s4615 = sphi %s4605, %s4624
                %s4616 = sphi %s4607, %s4625
              $region58: #{tpu_custom_call.1} parent=47 // loop_header_branch
                %4613 = sbr.rel (%p4610) target = $region62
              $region59: #{tpu_custom_call.1} parent=47 // loop_body
                %v4617 = vld [vmem:[%s4615] sm:$0xff]
                %4618 = vst [vmem:[%s4616] sm:$0xff] %v4617
                %s4619 = sadd.s32 1, %s4614
                %p4620 = scmp.ge.s32.totalorder %s4619, %s4602
                %s4621 = scalar_select %p4620, 0, %s4619
                %s4622 = smul.u32 %s4621, 8
                %s4623 = smul.u32 %s4621, 8
                %s4624 = scalar_lea.vmem %s4605, %s4622 [#allocation2]
                %s4625 = scalar_lea.vmem %s4607, %s4623
              $region60: #{tpu_custom_call.1} parent=47 // loop_footer
                %s4611 = sadd.s32 %s4609, 1
              $region61: #{tpu_custom_call.1} parent=47 // loop_footer_branch
                %4608 = sbr.rel target = $region57
              $region62: #{tpu_custom_call.1} parent=47 // loop_exit
                _
            $region48: #{tpu_custom_call.1} parent=39 // pred_fallthru
              _
          $region40: #{tpu_custom_call.1} parent=35 // pred_fallthru
            _
          %4800 = vnop
        $region36: #{tpu_custom_call.1} parent=31 // pred_fallthru
          _
      $region32: #{tpu_custom_call.1} parent=5 // pred_fallthru
        _
      %p4801 = scmp.le.s32.totalorder 2, %s9
      // Predicated region
      $region85: #{tpu_custom_call.1} parent=5 // pred_check
        %p4802 = pneg %p4801
      $region86: #{tpu_custom_call.1} parent=5 // pred_check_branch
        %4804 = sbr.rel (%p4802) target = $region88
      $region87: #{tpu_custom_call.1} parent=5 // pred_region
        %s4805 = ssub.s32 %s9, 2
        // Predicated region
        $region89: #{tpu_custom_call.1} parent=87 // pred_check
          %p4806 = pneg %p106
        $region90: #{tpu_custom_call.1} parent=87 // pred_check_branch
          %4808 = sbr.rel (%p4806) target = $region92
        $region91: #{tpu_custom_call.1} parent=87 // pred_region
          %s4809 = sand.u32 %s91, 1
          %s4810 = sand.u32 %s91, 1
          %s4811 = smul.addr %s4810, 2048
          %s4812 = scalar_lea.vmem [#allocation2], %s4811
        $region92: #{tpu_custom_call.1} parent=87 // pred_fallthru
          _
      $region88: #{tpu_custom_call.1} parent=5 // pred_fallthru
        _
    $region6: #{tpu_custom_call.1} parent=1 // loop_footer
      %s13 = sadd.s32 1, %s9
    $region7: #{tpu_custom_call.1} parent=1 // loop_footer_branch
      %8 = sbr.rel target = $region3
    $region8: #{tpu_custom_call.1} parent=1 // loop_exit
      _

</llo_original>
